<compile_context>
chip_gen: v7x
topology: tpu7x:2x2x1
jax: 0.10.0
libtpu: 0.0.40
codegen_flags: <defaults>
</compile_context>

<pallas_src>
import functools
import math

import jax
import jax.numpy as jnp
from jax.experimental import pallas as pl
from jax.experimental.pallas import tpu as pltpu


def _layernorm(x, g, b, eps=1e-6):
    mu = jnp.mean(x, axis=-1, keepdims=True)
    var = jnp.mean(jnp.square(x - mu), axis=-1, keepdims=True)
    inv = jax.lax.rsqrt(var + eps)
    return (x - mu) * (inv * g) + b


def fused_encoder_kernel(num_heads,
                         x_ref, mask_ref,
                         ln1_g_ref, ln1_b_ref, wqkv_ref, bqkv_ref,
                         wo_ref, bo_ref,
                         ln2_g_ref, ln2_b_ref,
                         w1_ref, b1_ref, w2_ref, b2_ref,
                         lnf_g_ref, lnf_b_ref,
                         o_ref,
                         x_vmem):
    l = pl.program_id(1)
    n_layers = pl.num_programs(1)

    Bt, S, D = x_ref.shape
    H = num_heads
    dh = D // H
    scale = 1.0 / math.sqrt(dh)
    N = Bt * S

    # Load the activations into the resident VMEM carry at the first layer of this batch block.
    @pl.when(l == 0)
    def _():
        x_vmem[...] = x_ref[...]

    x = x_vmem[...].reshape(N, D)                       # (N, D) flat over (batch, seq)
    mask = mask_ref[...]                                # (Bt, 1, S), 1.0 = keep key
    mask_bias = jnp.where(mask > 0, 0.0, -1e30)         # hoisted out of the head loop

    # ---------------- multi-head self-attention sublayer (pre-LN) ----------------
    h = _layernorm(x, ln1_g_ref[0], ln1_b_ref[0])
    qkv = jnp.dot(h, wqkv_ref[0], preferred_element_type=jnp.float32) + bqkv_ref[0]
    q_all = qkv[:, 0 * D:1 * D] * scale                 # fold 1/sqrt(dh) into q
    k_all = qkv[:, 1 * D:2 * D]
    v_all = qkv[:, 2 * D:3 * D]

    head_ctx = []
    for hi in range(H):                                 # static loop over heads; batched over B
        sl = slice(hi * dh, (hi + 1) * dh)
        qh = q_all[:, sl].reshape(Bt, S, dh)
        kh = k_all[:, sl].reshape(Bt, S, dh)
        vh = v_all[:, sl].reshape(Bt, S, dh)
        s = jnp.einsum('bqd,bkd->bqk', qh, kh,
                       preferred_element_type=jnp.float32) + mask_bias
        s = s - jnp.max(s, axis=-1, keepdims=True)
        p = jnp.exp(s)
        p = p * pl.reciprocal(jnp.sum(p, axis=-1, keepdims=True), approx=True)
        head_ctx.append(jnp.einsum('bqk,bkd->bqd', p, vh,
                                   preferred_element_type=jnp.float32))
    attn = jnp.concatenate(head_ctx, axis=-1).reshape(N, D)
    attn = jnp.dot(attn, wo_ref[0], preferred_element_type=jnp.float32) + bo_ref[0]
    x = x + attn                                        # residual (dropout = identity)

    # ---------------- position-wise feed-forward sublayer (pre-LN) ----------------
    h = _layernorm(x, ln2_g_ref[0], ln2_b_ref[0])
    f = jnp.dot(h, w1_ref[0], preferred_element_type=jnp.float32) + b1_ref[0]
    f = jnp.maximum(f, 0.0)
    f = jnp.dot(f, w2_ref[0], preferred_element_type=jnp.float32) + b2_ref[0]
    x = x + f                                           # residual (dropout = identity)

    x_vmem[...] = x.reshape(Bt, S, D)

    # Final LayerNorm fused into the last layer step.
    @pl.when(l == n_layers - 1)
    def _():
        o_ref[...] = _layernorm(x, lnf_g_ref[...], lnf_b_ref[...]).reshape(Bt, S, D)


def encoder_forward(x, mask, params, last_ln, num_heads, *, batch_block=None):
    """x: (B, S, D) float32; mask: (B, 1, S) with 1.0 = keep key, 0.0 = masked."""
    B, S, D = x.shape
    L = params["wqkv"].shape[0]
    Bt = B if batch_block is None else batch_block
    assert B % Bt == 0
    nb = B // Bt

    weight_names = ["ln1_g", "ln1_b", "wqkv", "bqkv", "wo", "bo",
                    "ln2_g", "ln2_b", "w1", "b1", "w2", "b2"]
    weights = [params[n] for n in weight_names]

    def layer_spec(w):
        nd = w.ndim
        return pl.BlockSpec((1,) + w.shape[1:],
                            lambda b, l, nd=nd: (l,) + (0,) * (nd - 1))

    def const_spec(w):
        nd = w.ndim
        return pl.BlockSpec(w.shape, lambda b, l, nd=nd: (0,) * nd)

    in_specs = ([pl.BlockSpec((Bt, S, D), lambda b, l: (b, 0, 0)),
                 pl.BlockSpec((Bt, 1, S), lambda b, l: (b, 0, 0))]
                + [layer_spec(w) for w in weights]
                + [const_spec(last_ln["g"]), const_spec(last_ln["b"])])

    return pl.pallas_call(
        functools.partial(fused_encoder_kernel, num_heads),
        out_shape=jax.ShapeDtypeStruct((B, S, D), jnp.float32),
        grid=(nb, L),
        in_specs=in_specs,
        out_specs=pl.BlockSpec((Bt, S, D), lambda b, l: (b, 0, 0)),
        scratch_shapes=[pltpu.VMEM((Bt, S, D), jnp.float32)],
        compiler_params=pltpu.CompilerParams(
            dimension_semantics=("parallel", "arbitrary")),
    )(x, mask, *weights, last_ln["g"], last_ln["b"])


def init_params(key, num_layers, embed_dim, ff_dim):
    D, Fd, L = embed_dim, ff_dim, num_layers

    def dense(k, shape):
        return jax.random.normal(k, shape, jnp.float32) * 0.02

    ks = jax.random.split(key, 4)
    params = dict(
        ln1_g=jnp.ones((L, 1, D), jnp.float32),
        ln1_b=jnp.zeros((L, 1, D), jnp.float32),
        wqkv=dense(ks[0], (L, D, 3 * D)),          # fused Q|K|V projection
        bqkv=jnp.zeros((L, 1, 3 * D), jnp.float32),
        wo=dense(ks[1], (L, D, D)),
        bo=jnp.zeros((L, 1, D), jnp.float32),
        ln2_g=jnp.ones((L, 1, D), jnp.float32),
        ln2_b=jnp.zeros((L, 1, D), jnp.float32),
        w1=dense(ks[2], (L, D, Fd)),
        b1=jnp.zeros((L, 1, Fd), jnp.float32),
        w2=dense(ks[3], (L, Fd, D)),
        b2=jnp.zeros((L, 1, D), jnp.float32),
    )
    last = dict(g=jnp.ones((1, D), jnp.float32),
                b=jnp.zeros((1, D), jnp.float32))
    return params, last


def encoder_reference(x, mask, params, last_ln, num_heads):
    """Pure-JAX reference of the same forward pass (for validation)."""
    B, S, D = x.shape
    L = params["wqkv"].shape[0]
    H = num_heads
    dh = D // H
    scale = 1.0 / math.sqrt(dh)

    def ln(t, g, b, eps=1e-6):
        mu = t.mean(-1, keepdims=True)
        var = ((t - mu) ** 2).mean(-1, keepdims=True)
        return (t - mu) / jnp.sqrt(var + eps) * g + b

    for l in range(L):
        res = x
        h = ln(x, params["ln1_g"][l], params["ln1_b"][l])
        qkv = h @ params["wqkv"][l] + params["bqkv"][l]
        q, k, v = jnp.split(qkv, 3, axis=-1)
        q = q.reshape(B, S, H, dh).transpose(0, 2, 1, 3)
        k = k.reshape(B, S, H, dh).transpose(0, 2, 1, 3)
        v = v.reshape(B, S, H, dh).transpose(0, 2, 1, 3)
        s = jnp.einsum('bhqd,bhkd->bhqk', q, k) * scale
        s = jnp.where(mask[:, :, None, :] > 0, s, -1e30)
        p = jax.nn.softmax(s, axis=-1)
        ctx = jnp.einsum('bhqk,bhkd->bhqd', p, v).transpose(0, 2, 1, 3).reshape(B, S, D)
        x = res + ctx @ params["wo"][l] + params["bo"][l]
        res = x
        h = ln(x, params["ln2_g"][l], params["ln2_b"][l])
        f = jnp.maximum(h @ params["w1"][l] + params["b1"][l], 0.0)
        x = res + f @ params["w2"][l] + params["b2"][l]
    return ln(x, last_ln["g"], last_ln["b"])


if __name__ == "__main__":
    num_layers, num_heads, embed_dim, ff_dim = 2, 4, 32, 64
    B, S = 2, 8

    key = jax.random.PRNGKey(0)
    kx, kp = jax.random.split(key)
    x = jax.random.normal(kx, (B, S, embed_dim), jnp.float32)

    # mask: 1 = keep key position, 0 = masked.  Mask out last 2 keys of batch 1.
    mask = jnp.ones((B, 1, S), jnp.float32)
    mask = mask.at[1, 0, -2:].set(0.0)

    params, last_ln = init_params(kp, num_layers, embed_dim, ff_dim)

    out = encoder_forward(x, mask, params, last_ln, num_heads)
    out = jax.block_until_ready(out)
    assert out.shape == (B, S, embed_dim)
    assert bool(jnp.all(jnp.isfinite(out)))

    ref = encoder_reference(x, mask, params, last_ln, num_heads)
    assert bool(jnp.allclose(out, ref, atol=2e-2, rtol=2e-2)), \
        float(jnp.max(jnp.abs(out - ref)))

    print("KERNEL_OK")
</pallas_src>

<mosaic_0001>
module attributes {stable_mosaic.version = 11 : i64} {
  func.func @fused_encoder_kernel(%arg0: i32, %arg1: i32, %arg2: memref<2x8x32xf32, #tpu.memory_space<vmem>>, %arg3: memref<2x1x8xf32, #tpu.memory_space<vmem>>, %arg4: memref<1x1x32xf32, #tpu.memory_space<vmem>>, %arg5: memref<1x1x32xf32, #tpu.memory_space<vmem>>, %arg6: memref<1x32x96xf32, #tpu.memory_space<vmem>>, %arg7: memref<1x1x96xf32, #tpu.memory_space<vmem>>, %arg8: memref<1x32x32xf32, #tpu.memory_space<vmem>>, %arg9: memref<1x1x32xf32, #tpu.memory_space<vmem>>, %arg10: memref<1x1x32xf32, #tpu.memory_space<vmem>>, %arg11: memref<1x1x32xf32, #tpu.memory_space<vmem>>, %arg12: memref<1x32x64xf32, #tpu.memory_space<vmem>>, %arg13: memref<1x1x64xf32, #tpu.memory_space<vmem>>, %arg14: memref<1x64x32xf32, #tpu.memory_space<vmem>>, %arg15: memref<1x1x32xf32, #tpu.memory_space<vmem>>, %arg16: memref<1x32xf32, #tpu.memory_space<vmem>>, %arg17: memref<1x32xf32, #tpu.memory_space<vmem>>, %arg18: memref<2x8x32xf32, #tpu.memory_space<vmem>>, %arg19: memref<2x8x32xf32, #tpu.memory_space<vmem>>) attributes {dimension_semantics = [#tpu.dimension_semantics<parallel>, #tpu.dimension_semantics<arbitrary>], iteration_bounds = array<i64: 1, 2>, scalar_prefetch = 0 : i64, scratch_operands = 1 : i64, tpu.core_type = #tpu.core_type<tc>, window_params = [{transform_indices = @transform_0, window_bounds = array<i64: 2, 8, 32>}, {transform_indices = @transform_1, window_bounds = array<i64: 2, 1, 8>}, {transform_indices = @transform_2, window_bounds = array<i64: 1, 1, 32>}, {transform_indices = @transform_3, window_bounds = array<i64: 1, 1, 32>}, {transform_indices = @transform_4, window_bounds = array<i64: 1, 32, 96>}, {transform_indices = @transform_5, window_bounds = array<i64: 1, 1, 96>}, {transform_indices = @transform_6, window_bounds = array<i64: 1, 32, 32>}, {transform_indices = @transform_7, window_bounds = array<i64: 1, 1, 32>}, {transform_indices = @transform_8, window_bounds = array<i64: 1, 1, 32>}, {transform_indices = @transform_9, window_bounds = array<i64: 1, 1, 32>}, {transform_indices = @transform_10, window_bounds = array<i64: 1, 32, 64>}, {transform_indices = @transform_11, window_bounds = array<i64: 1, 1, 64>}, {transform_indices = @transform_12, window_bounds = array<i64: 1, 64, 32>}, {transform_indices = @transform_13, window_bounds = array<i64: 1, 1, 32>}, {pipeline_mode = #tpu.pipeline_mode<synchronous>, transform_indices = @transform_14, window_bounds = array<i64: 1, 32>}, {pipeline_mode = #tpu.pipeline_mode<synchronous>, transform_indices = @transform_15, window_bounds = array<i64: 1, 32>}, {transform_indices = @transform_16, window_bounds = array<i64: 2, 8, 32>}]} {
    %c0_i32 = arith.constant 0 : i32
    %0 = arith.cmpi eq, %arg1, %c0_i32 : i32
    %1 = arith.extui %0 : i1 to i32
    %c0_i32_0 = arith.constant 0 : i32
    %2 = arith.cmpi ne, %1, %c0_i32_0 : i32
    scf.if %2 {
      %c0_80 = arith.constant 0 : index
      %c0_81 = arith.constant 0 : index
      %c0_82 = arith.constant 0 : index
      %187 = vector.load %arg2[%c0_80, %c0_81, %c0_82] : memref<2x8x32xf32, #tpu.memory_space<vmem>>, vector<2x8x32xf32>
      %c0_83 = arith.constant 0 : index
      %c0_84 = arith.constant 0 : index
      %c0_85 = arith.constant 0 : index
      %188 = vector.load %arg19[%c0_83, %c0_84, %c0_85] : memref<2x8x32xf32, #tpu.memory_space<vmem>>, vector<2x8x32xf32>
      tpu.vector_store %arg19[%c0_83, %c0_84, %c0_85], %187 {strides = array<i32>} : memref<2x8x32xf32, #tpu.memory_space<vmem>>, vector<2x8x32xf32>,
    } else {
    }
    %c0 = arith.constant 0 : index
    %c0_1 = arith.constant 0 : index
    %c0_2 = arith.constant 0 : index
    %3 = vector.load %arg19[%c0, %c0_1, %c0_2] : memref<2x8x32xf32, #tpu.memory_space<vmem>>, vector<2x8x32xf32>
    %4 = vector.shape_cast %3 : vector<2x8x32xf32> to vector<16x32xf32>
    %c0_3 = arith.constant 0 : index
    %c0_4 = arith.constant 0 : index
    %c0_5 = arith.constant 0 : index
    %5 = vector.load %arg3[%c0_3, %c0_4, %c0_5] : memref<2x1x8xf32, #tpu.memory_space<vmem>>, vector<2x1x8xf32>
    %cst = arith.constant 0.000000e+00 : f32
    %6 = vector.broadcast %cst : f32 to vector<2x1x8xf32>
    %7 = arith.cmpf ogt, %5, %6 : vector<2x1x8xf32>
    %cst_6 = arith.constant 0.000000e+00 : f32
    %cst_7 = arith.constant -1.000000e+30 : f32
    %8 = vector.broadcast %cst_6 : f32 to vector<2x1x8xf32>
    %9 = vector.broadcast %cst_7 : f32 to vector<2x1x8xf32>
    %10 = arith.select %7, %8, %9 : vector<2x1x8xi1>, vector<2x1x8xf32>
    %c0_8 = arith.constant 0 : index
    %c0_9 = arith.constant 0 : index
    %c0_10 = arith.constant 0 : index
    %11 = vector.load %arg4[%c0_8, %c0_9, %c0_10] : memref<1x1x32xf32, #tpu.memory_space<vmem>>, vector<1x1x32xf32>
    %12 = vector.shape_cast %11 : vector<1x1x32xf32> to vector<1x32xf32>
    %c0_11 = arith.constant 0 : index
    %c0_12 = arith.constant 0 : index
    %c0_13 = arith.constant 0 : index
    %13 = vector.load %arg5[%c0_11, %c0_12, %c0_13] : memref<1x1x32xf32, #tpu.memory_space<vmem>>, vector<1x1x32xf32>
    %14 = vector.shape_cast %13 : vector<1x1x32xf32> to vector<1x32xf32>
    %cst_14 = arith.constant dense<0.000000e+00> : vector<16xf32>
    %15 = vector.multi_reduction <add>, %4, %cst_14 [1] : vector<16x32xf32> to vector<16xf32>
    %16 = vector.shape_cast %15 : vector<16xf32> to vector<16x1xf32>
    %cst_15 = arith.constant 3.200000e+01 : f32
    %17 = vector.broadcast %cst_15 : f32 to vector<16x1xf32>
    %18 = arith.divf %16, %17 : vector<16x1xf32>
    %19 = vector.broadcast %18 : vector<16x1xf32> to vector<16x32xf32>
    %20 = arith.subf %4, %19 : vector<16x32xf32>
    %21 = arith.mulf %20, %20 : vector<16x32xf32>
    %cst_16 = arith.constant dense<0.000000e+00> : vector<16xf32>
    %22 = vector.multi_reduction <add>, %21, %cst_16 [1] : vector<16x32xf32> to vector<16xf32>
    %23 = vector.shape_cast %22 : vector<16xf32> to vector<16x1xf32>
    %cst_17 = arith.constant 3.200000e+01 : f32
    %24 = vector.broadcast %cst_17 : f32 to vector<16x1xf32>
    %25 = arith.divf %23, %24 : vector<16x1xf32>
    %cst_18 = arith.constant 9.99999997E-7 : f32
    %26 = vector.broadcast %cst_18 : f32 to vector<16x1xf32>
    %27 = arith.addf %25, %26 : vector<16x1xf32>
    %28 = math.rsqrt %27 : vector<16x1xf32>
    %29 = vector.broadcast %18 : vector<16x1xf32> to vector<16x32xf32>
    %30 = arith.subf %4, %29 : vector<16x32xf32>
    %31 = vector.broadcast %28 : vector<16x1xf32> to vector<16x32xf32>
    %32 = vector.broadcast %12 : vector<1x32xf32> to vector<16x32xf32>
    %33 = arith.mulf %31, %32 : vector<16x32xf32>
    %34 = arith.mulf %30, %33 : vector<16x32xf32>
    %35 = vector.broadcast %14 : vector<1x32xf32> to vector<16x32xf32>
    %36 = arith.addf %34, %35 : vector<16x32xf32>
    %c0_19 = arith.constant 0 : index
    %c0_20 = arith.constant 0 : index
    %c0_21 = arith.constant 0 : index
    %37 = vector.load %arg6[%c0_19, %c0_20, %c0_21] : memref<1x32x96xf32, #tpu.memory_space<vmem>>, vector<1x32x96xf32>
    %38 = vector.shape_cast %37 : vector<1x32x96xf32> to vector<32x96xf32>
    %cst_22 = arith.constant dense<0.000000e+00> : vector<16x96xf32>
    %39 = tpu.matmul %36, %38, %cst_22 {dimension_numbers = #tpu.dot_dimension_numbers<[1], [0], [0], [1], [0, 0, 1, 1], [], []>} : vector<16x32xf32>, vector<32x96xf32>, vector<16x96xf32> -> vector<16x96xf32>
    %c0_23 = arith.constant 0 : index
    %c0_24 = arith.constant 0 : index
    %c0_25 = arith.constant 0 : index
    %40 = vector.load %arg7[%c0_23, %c0_24, %c0_25] : memref<1x1x96xf32, #tpu.memory_space<vmem>>, vector<1x1x96xf32>
    %41 = vector.shape_cast %40 : vector<1x1x96xf32> to vector<1x96xf32>
    %42 = vector.broadcast %41 : vector<1x96xf32> to vector<16x96xf32>
    %43 = arith.addf %39, %42 : vector<16x96xf32>
    %44 = vector.extract_strided_slice %43 {offsets = [0, 0], sizes = [16, 32], strides = [1, 1]} : vector<16x96xf32> to vector<16x32xf32>
    %cst_26 = arith.constant 0.353553385 : f32
    %45 = vector.broadcast %cst_26 : f32 to vector<16x32xf32>
    %46 = arith.mulf %44, %45 : vector<16x32xf32>
    %47 = vector.extract_strided_slice %43 {offsets = [0, 32], sizes = [16, 32], strides = [1, 1]} : vector<16x96xf32> to vector<16x32xf32>
    %48 = vector.extract_strided_slice %43 {offsets = [0, 64], sizes = [16, 32], strides = [1, 1]} : vector<16x96xf32> to vector<16x32xf32>
    %49 = vector.extract_strided_slice %46 {offsets = [0, 0], sizes = [16, 8], strides = [1, 1]} : vector<16x32xf32> to vector<16x8xf32>
    %50 = vector.shape_cast %49 : vector<16x8xf32> to vector<2x8x8xf32>
    %51 = vector.extract_strided_slice %47 {offsets = [0, 0], sizes = [16, 8], strides = [1, 1]} : vector<16x32xf32> to vector<16x8xf32>
    %52 = vector.shape_cast %51 : vector<16x8xf32> to vector<2x8x8xf32>
    %53 = vector.extract_strided_slice %48 {offsets = [0, 0], sizes = [16, 8], strides = [1, 1]} : vector<16x32xf32> to vector<16x8xf32>
    %54 = vector.shape_cast %53 : vector<16x8xf32> to vector<2x8x8xf32>
    "tpu.trace_start"() <{level = 10 : i32, message = "bqd,bkd->bqk"}> : () -> ()
    %cst_27 = arith.constant dense<0.000000e+00> : vector<2x8x8xf32>
    %55 = tpu.matmul %50, %52, %cst_27 {dimension_numbers = #tpu.dot_dimension_numbers<[2], [2], [1], [1], [0, 0, 0, 1, 1, 1], [0], [0]>} : vector<2x8x8xf32>, vector<2x8x8xf32>, vector<2x8x8xf32> -> vector<2x8x8xf32>
    "tpu.trace_stop"() : () -> ()
    %56 = vector.broadcast %10 : vector<2x1x8xf32> to vector<2x8x8xf32>
    %57 = arith.addf %55, %56 : vector<2x8x8xf32>
    %cst_28 = arith.constant dense<0xFF800000> : vector<2x8xf32>
    %58 = vector.multi_reduction <maximumf>, %57, %cst_28 [2] : vector<2x8x8xf32> to vector<2x8xf32>
    %59 = vector.shape_cast %58 : vector<2x8xf32> to vector<2x8x1xf32>
    %60 = vector.broadcast %59 : vector<2x8x1xf32> to vector<2x8x8xf32>
    %61 = arith.subf %57, %60 : vector<2x8x8xf32>
    %62 = math.exp %61 : vector<2x8x8xf32>
    %cst_29 = arith.constant dense<0.000000e+00> : vector<2x8xf32>
    %63 = vector.multi_reduction <add>, %62, %cst_29 [2] : vector<2x8x8xf32> to vector<2x8xf32>
    %64 = vector.shape_cast %63 : vector<2x8xf32> to vector<2x8x1xf32>
    %65 = tpu.reciprocal %64 {approx = true} : vector<2x8x1xf32> -> vector<2x8x1xf32>
    %66 = vector.broadcast %65 : vector<2x8x1xf32> to vector<2x8x8xf32>
    %67 = arith.mulf %62, %66 : vector<2x8x8xf32>
    "tpu.trace_start"() <{level = 10 : i32, message = "bqk,bkd->bqd"}> : () -> ()
    %cst_30 = arith.constant dense<0.000000e+00> : vector<2x8x8xf32>
    %68 = tpu.matmul %67, %54, %cst_30 {dimension_numbers = #tpu.dot_dimension_numbers<[2], [1], [1], [2], [0, 0, 0, 1, 1, 2], [0], [0]>} : vector<2x8x8xf32>, vector<2x8x8xf32>, vector<2x8x8xf32> -> vector<2x8x8xf32>
    "tpu.trace_stop"() : () -> ()
    %69 = vector.extract_strided_slice %46 {offsets = [0, 8], sizes = [16, 8], strides = [1, 1]} : vector<16x32xf32> to vector<16x8xf32>
    %70 = vector.shape_cast %69 : vector<16x8xf32> to vector<2x8x8xf32>
    %71 = vector.extract_strided_slice %47 {offsets = [0, 8], sizes = [16, 8], strides = [1, 1]} : vector<16x32xf32> to vector<16x8xf32>
    %72 = vector.shape_cast %71 : vector<16x8xf32> to vector<2x8x8xf32>
    %73 = vector.extract_strided_slice %48 {offsets = [0, 8], sizes = [16, 8], strides = [1, 1]} : vector<16x32xf32> to vector<16x8xf32>
    %74 = vector.shape_cast %73 : vector<16x8xf32> to vector<2x8x8xf32>
    "tpu.trace_start"() <{level = 10 : i32, message = "bqd,bkd->bqk"}> : () -> ()
    %cst_31 = arith.constant dense<0.000000e+00> : vector<2x8x8xf32>
    %75 = tpu.matmul %70, %72, %cst_31 {dimension_numbers = #tpu.dot_dimension_numbers<[2], [2], [1], [1], [0, 0, 0, 1, 1, 1], [0], [0]>} : vector<2x8x8xf32>, vector<2x8x8xf32>, vector<2x8x8xf32> -> vector<2x8x8xf32>
    "tpu.trace_stop"() : () -> ()
    %76 = vector.broadcast %10 : vector<2x1x8xf32> to vector<2x8x8xf32>
    %77 = arith.addf %75, %76 : vector<2x8x8xf32>
    %cst_32 = arith.constant dense<0xFF800000> : vector<2x8xf32>
    %78 = vector.multi_reduction <maximumf>, %77, %cst_32 [2] : vector<2x8x8xf32> to vector<2x8xf32>
    %79 = vector.shape_cast %78 : vector<2x8xf32> to vector<2x8x1xf32>
    %80 = vector.broadcast %79 : vector<2x8x1xf32> to vector<2x8x8xf32>
    %81 = arith.subf %77, %80 : vector<2x8x8xf32>
    %82 = math.exp %81 : vector<2x8x8xf32>
    %cst_33 = arith.constant dense<0.000000e+00> : vector<2x8xf32>
    %83 = vector.multi_reduction <add>, %82, %cst_33 [2] : vector<2x8x8xf32> to vector<2x8xf32>
    %84 = vector.shape_cast %83 : vector<2x8xf32> to vector<2x8x1xf32>
    %85 = tpu.reciprocal %84 {approx = true} : vector<2x8x1xf32> -> vector<2x8x1xf32>
    %86 = vector.broadcast %85 : vector<2x8x1xf32> to vector<2x8x8xf32>
    %87 = arith.mulf %82, %86 : vector<2x8x8xf32>
    "tpu.trace_start"() <{level = 10 : i32, message = "bqk,bkd->bqd"}> : () -> ()
    %cst_34 = arith.constant dense<0.000000e+00> : vector<2x8x8xf32>
    %88 = tpu.matmul %87, %74, %cst_34 {dimension_numbers = #tpu.dot_dimension_numbers<[2], [1], [1], [2], [0, 0, 0, 1, 1, 2], [0], [0]>} : vector<2x8x8xf32>, vector<2x8x8xf32>, vector<2x8x8xf32> -> vector<2x8x8xf32>
    "tpu.trace_stop"() : () -> ()
    %89 = vector.extract_strided_slice %46 {offsets = [0, 16], sizes = [16, 8], strides = [1, 1]} : vector<16x32xf32> to vector<16x8xf32>
    %90 = vector.shape_cast %89 : vector<16x8xf32> to vector<2x8x8xf32>
    %91 = vector.extract_strided_slice %47 {offsets = [0, 16], sizes = [16, 8], strides = [1, 1]} : vector<16x32xf32> to vector<16x8xf32>
    %92 = vector.shape_cast %91 : vector<16x8xf32> to vector<2x8x8xf32>
    %93 = vector.extract_strided_slice %48 {offsets = [0, 16], sizes = [16, 8], strides = [1, 1]} : vector<16x32xf32> to vector<16x8xf32>
    %94 = vector.shape_cast %93 : vector<16x8xf32> to vector<2x8x8xf32>
    "tpu.trace_start"() <{level = 10 : i32, message = "bqd,bkd->bqk"}> : () -> ()
    %cst_35 = arith.constant dense<0.000000e+00> : vector<2x8x8xf32>
    %95 = tpu.matmul %90, %92, %cst_35 {dimension_numbers = #tpu.dot_dimension_numbers<[2], [2], [1], [1], [0, 0, 0, 1, 1, 1], [0], [0]>} : vector<2x8x8xf32>, vector<2x8x8xf32>, vector<2x8x8xf32> -> vector<2x8x8xf32>
    "tpu.trace_stop"() : () -> ()
    %96 = vector.broadcast %10 : vector<2x1x8xf32> to vector<2x8x8xf32>
    %97 = arith.addf %95, %96 : vector<2x8x8xf32>
    %cst_36 = arith.constant dense<0xFF800000> : vector<2x8xf32>
    %98 = vector.multi_reduction <maximumf>, %97, %cst_36 [2] : vector<2x8x8xf32> to vector<2x8xf32>
    %99 = vector.shape_cast %98 : vector<2x8xf32> to vector<2x8x1xf32>
    %100 = vector.broadcast %99 : vector<2x8x1xf32> to vector<2x8x8xf32>
    %101 = arith.subf %97, %100 : vector<2x8x8xf32>
    %102 = math.exp %101 : vector<2x8x8xf32>
    %cst_37 = arith.constant dense<0.000000e+00> : vector<2x8xf32>
    %103 = vector.multi_reduction <add>, %102, %cst_37 [2] : vector<2x8x8xf32> to vector<2x8xf32>
    %104 = vector.shape_cast %103 : vector<2x8xf32> to vector<2x8x1xf32>
    %105 = tpu.reciprocal %104 {approx = true} : vector<2x8x1xf32> -> vector<2x8x1xf32>
    %106 = vector.broadcast %105 : vector<2x8x1xf32> to vector<2x8x8xf32>
    %107 = arith.mulf %102, %106 : vector<2x8x8xf32>
    "tpu.trace_start"() <{level = 10 : i32, message = "bqk,bkd->bqd"}> : () -> ()
    %cst_38 = arith.constant dense<0.000000e+00> : vector<2x8x8xf32>
    %108 = tpu.matmul %107, %94, %cst_38 {dimension_numbers = #tpu.dot_dimension_numbers<[2], [1], [1], [2], [0, 0, 0, 1, 1, 2], [0], [0]>} : vector<2x8x8xf32>, vector<2x8x8xf32>, vector<2x8x8xf32> -> vector<2x8x8xf32>
    "tpu.trace_stop"() : () -> ()
    %109 = vector.extract_strided_slice %46 {offsets = [0, 24], sizes = [16, 8], strides = [1, 1]} : vector<16x32xf32> to vector<16x8xf32>
    %110 = vector.shape_cast %109 : vector<16x8xf32> to vector<2x8x8xf32>
    %111 = vector.extract_strided_slice %47 {offsets = [0, 24], sizes = [16, 8], strides = [1, 1]} : vector<16x32xf32> to vector<16x8xf32>
    %112 = vector.shape_cast %111 : vector<16x8xf32> to vector<2x8x8xf32>
    %113 = vector.extract_strided_slice %48 {offsets = [0, 24], sizes = [16, 8], strides = [1, 1]} : vector<16x32xf32> to vector<16x8xf32>
    %114 = vector.shape_cast %113 : vector<16x8xf32> to vector<2x8x8xf32>
    "tpu.trace_start"() <{level = 10 : i32, message = "bqd,bkd->bqk"}> : () -> ()
    %cst_39 = arith.constant dense<0.000000e+00> : vector<2x8x8xf32>
    %115 = tpu.matmul %110, %112, %cst_39 {dimension_numbers = #tpu.dot_dimension_numbers<[2], [2], [1], [1], [0, 0, 0, 1, 1, 1], [0], [0]>} : vector<2x8x8xf32>, vector<2x8x8xf32>, vector<2x8x8xf32> -> vector<2x8x8xf32>
    "tpu.trace_stop"() : () -> ()
    %116 = vector.broadcast %10 : vector<2x1x8xf32> to vector<2x8x8xf32>
    %117 = arith.addf %115, %116 : vector<2x8x8xf32>
    %cst_40 = arith.constant dense<0xFF800000> : vector<2x8xf32>
    %118 = vector.multi_reduction <maximumf>, %117, %cst_40 [2] : vector<2x8x8xf32> to vector<2x8xf32>
    %119 = vector.shape_cast %118 : vector<2x8xf32> to vector<2x8x1xf32>
    %120 = vector.broadcast %119 : vector<2x8x1xf32> to vector<2x8x8xf32>
    %121 = arith.subf %117, %120 : vector<2x8x8xf32>
    %122 = math.exp %121 : vector<2x8x8xf32>
    %cst_41 = arith.constant dense<0.000000e+00> : vector<2x8xf32>
    %123 = vector.multi_reduction <add>, %122, %cst_41 [2] : vector<2x8x8xf32> to vector<2x8xf32>
    %124 = vector.shape_cast %123 : vector<2x8xf32> to vector<2x8x1xf32>
    %125 = tpu.reciprocal %124 {approx = true} : vector<2x8x1xf32> -> vector<2x8x1xf32>
    %126 = vector.broadcast %125 : vector<2x8x1xf32> to vector<2x8x8xf32>
    %127 = arith.mulf %122, %126 : vector<2x8x8xf32>
    "tpu.trace_start"() <{level = 10 : i32, message = "bqk,bkd->bqd"}> : () -> ()
    %cst_42 = arith.constant dense<0.000000e+00> : vector<2x8x8xf32>
    %128 = tpu.matmul %127, %114, %cst_42 {dimension_numbers = #tpu.dot_dimension_numbers<[2], [1], [1], [2], [0, 0, 0, 1, 1, 2], [0], [0]>} : vector<2x8x8xf32>, vector<2x8x8xf32>, vector<2x8x8xf32> -> vector<2x8x8xf32>
    "tpu.trace_stop"() : () -> ()
    %129 = tpu.concatenate %68, %88, %108, %128 in 2 : vector<2x8x8xf32>, vector<2x8x8xf32>, vector<2x8x8xf32>, vector<2x8x8xf32> -> vector<2x8x32xf32>
    %130 = vector.shape_cast %129 : vector<2x8x32xf32> to vector<16x32xf32>
    %c0_43 = arith.constant 0 : index
    %c0_44 = arith.constant 0 : index
    %c0_45 = arith.constant 0 : index
    %131 = vector.load %arg8[%c0_43, %c0_44, %c0_45] : memref<1x32x32xf32, #tpu.memory_space<vmem>>, vector<1x32x32xf32>
    %132 = vector.shape_cast %131 : vector<1x32x32xf32> to vector<32x32xf32>
    %cst_46 = arith.constant dense<0.000000e+00> : vector<16x32xf32>
    %133 = tpu.matmul %130, %132, %cst_46 {dimension_numbers = #tpu.dot_dimension_numbers<[1], [0], [0], [1], [0, 0, 1, 1], [], []>} : vector<16x32xf32>, vector<32x32xf32>, vector<16x32xf32> -> vector<16x32xf32>
    %c0_47 = arith.constant 0 : index
    %c0_48 = arith.constant 0 : index
    %c0_49 = arith.constant 0 : index
    %134 = vector.load %arg9[%c0_47, %c0_48, %c0_49] : memref<1x1x32xf32, #tpu.memory_space<vmem>>, vector<1x1x32xf32>
    %135 = vector.shape_cast %134 : vector<1x1x32xf32> to vector<1x32xf32>
    %136 = vector.broadcast %135 : vector<1x32xf32> to vector<16x32xf32>
    %137 = arith.addf %133, %136 : vector<16x32xf32>
    %138 = arith.addf %4, %137 : vector<16x32xf32>
    %c0_50 = arith.constant 0 : index
    %c0_51 = arith.constant 0 : index
    %c0_52 = arith.constant 0 : index
    %139 = vector.load %arg10[%c0_50, %c0_51, %c0_52] : memref<1x1x32xf32, #tpu.memory_space<vmem>>, vector<1x1x32xf32>
    %140 = vector.shape_cast %139 : vector<1x1x32xf32> to vector<1x32xf32>
    %c0_53 = arith.constant 0 : index
    %c0_54 = arith.constant 0 : index
    %c0_55 = arith.constant 0 : index
    %141 = vector.load %arg11[%c0_53, %c0_54, %c0_55] : memref<1x1x32xf32, #tpu.memory_space<vmem>>, vector<1x1x32xf32>
    %142 = vector.shape_cast %141 : vector<1x1x32xf32> to vector<1x32xf32>
    %cst_56 = arith.constant dense<0.000000e+00> : vector<16xf32>
    %143 = vector.multi_reduction <add>, %138, %cst_56 [1] : vector<16x32xf32> to vector<16xf32>
    %144 = vector.shape_cast %143 : vector<16xf32> to vector<16x1xf32>
    %cst_57 = arith.constant 3.200000e+01 : f32
    %145 = vector.broadcast %cst_57 : f32 to vector<16x1xf32>
    %146 = arith.divf %144, %145 : vector<16x1xf32>
    %147 = vector.broadcast %146 : vector<16x1xf32> to vector<16x32xf32>
    %148 = arith.subf %138, %147 : vector<16x32xf32>
    %149 = arith.mulf %148, %148 : vector<16x32xf32>
    %cst_58 = arith.constant dense<0.000000e+00> : vector<16xf32>
    %150 = vector.multi_reduction <add>, %149, %cst_58 [1] : vector<16x32xf32> to vector<16xf32>
    %151 = vector.shape_cast %150 : vector<16xf32> to vector<16x1xf32>
    %cst_59 = arith.constant 3.200000e+01 : f32
    %152 = vector.broadcast %cst_59 : f32 to vector<16x1xf32>
    %153 = arith.divf %151, %152 : vector<16x1xf32>
    %cst_60 = arith.constant 9.99999997E-7 : f32
    %154 = vector.broadcast %cst_60 : f32 to vector<16x1xf32>
    %155 = arith.addf %153, %154 : vector<16x1xf32>
    %156 = math.rsqrt %155 : vector<16x1xf32>
    %157 = vector.broadcast %146 : vector<16x1xf32> to vector<16x32xf32>
    %158 = arith.subf %138, %157 : vector<16x32xf32>
    %159 = vector.broadcast %156 : vector<16x1xf32> to vector<16x32xf32>
    %160 = vector.broadcast %140 : vector<1x32xf32> to vector<16x32xf32>
    %161 = arith.mulf %159, %160 : vector<16x32xf32>
    %162 = arith.mulf %158, %161 : vector<16x32xf32>
    %163 = vector.broadcast %142 : vector<1x32xf32> to vector<16x32xf32>
    %164 = arith.addf %162, %163 : vector<16x32xf32>
    %c0_61 = arith.constant 0 : index
    %c0_62 = arith.constant 0 : index
    %c0_63 = arith.constant 0 : index
    %165 = vector.load %arg12[%c0_61, %c0_62, %c0_63] : memref<1x32x64xf32, #tpu.memory_space<vmem>>, vector<1x32x64xf32>
    %166 = vector.shape_cast %165 : vector<1x32x64xf32> to vector<32x64xf32>
    %cst_64 = arith.constant dense<0.000000e+00> : vector<16x64xf32>
    %167 = tpu.matmul %164, %166, %cst_64 {dimension_numbers = #tpu.dot_dimension_numbers<[1], [0], [0], [1], [0, 0, 1, 1], [], []>} : vector<16x32xf32>, vector<32x64xf32>, vector<16x64xf32> -> vector<16x64xf32>
    %c0_65 = arith.constant 0 : index
    %c0_66 = arith.constant 0 : index
    %c0_67 = arith.constant 0 : index
    %168 = vector.load %arg13[%c0_65, %c0_66, %c0_67] : memref<1x1x64xf32, #tpu.memory_space<vmem>>, vector<1x1x64xf32>
    %169 = vector.shape_cast %168 : vector<1x1x64xf32> to vector<1x64xf32>
    %170 = vector.broadcast %169 : vector<1x64xf32> to vector<16x64xf32>
    %171 = arith.addf %167, %170 : vector<16x64xf32>
    %cst_68 = arith.constant 0.000000e+00 : f32
    %172 = vector.broadcast %cst_68 : f32 to vector<16x64xf32>
    %173 = arith.maximumf %171, %172 : vector<16x64xf32>
    %c0_69 = arith.constant 0 : index
    %c0_70 = arith.constant 0 : index
    %c0_71 = arith.constant 0 : index
    %174 = vector.load %arg14[%c0_69, %c0_70, %c0_71] : memref<1x64x32xf32, #tpu.memory_space<vmem>>, vector<1x64x32xf32>
    %175 = vector.shape_cast %174 : vector<1x64x32xf32> to vector<64x32xf32>
    %cst_72 = arith.constant dense<0.000000e+00> : vector<16x32xf32>
    %176 = tpu.matmul %173, %175, %cst_72 {dimension_numbers = #tpu.dot_dimension_numbers<[1], [0], [0], [1], [0, 0, 1, 1], [], []>} : vector<16x64xf32>, vector<64x32xf32>, vector<16x32xf32> -> vector<16x32xf32>
    %c0_73 = arith.constant 0 : index
    %c0_74 = arith.constant 0 : index
    %c0_75 = arith.constant 0 : index
    %177 = vector.load %arg15[%c0_73, %c0_74, %c0_75] : memref<1x1x32xf32, #tpu.memory_space<vmem>>, vector<1x1x32xf32>
    %178 = vector.shape_cast %177 : vector<1x1x32xf32> to vector<1x32xf32>
    %179 = vector.broadcast %178 : vector<1x32xf32> to vector<16x32xf32>
    %180 = arith.addf %176, %179 : vector<16x32xf32>
    %181 = arith.addf %138, %180 : vector<16x32xf32>
    %182 = vector.shape_cast %181 : vector<16x32xf32> to vector<2x8x32xf32>
    %c0_76 = arith.constant 0 : index
    %c0_77 = arith.constant 0 : index
    %c0_78 = arith.constant 0 : index
    %183 = vector.load %arg19[%c0_76, %c0_77, %c0_78] : memref<2x8x32xf32, #tpu.memory_space<vmem>>, vector<2x8x32xf32>
    tpu.vector_store %arg19[%c0_76, %c0_77, %c0_78], %182 {strides = array<i32>} : memref<2x8x32xf32, #tpu.memory_space<vmem>>, vector<2x8x32xf32>,
    %c1_i32 = arith.constant 1 : i32
    %184 = arith.cmpi eq, %arg1, %c1_i32 : i32
    %185 = arith.extui %184 : i1 to i32
    %c0_i32_79 = arith.constant 0 : i32
    %186 = arith.cmpi ne, %185, %c0_i32_79 : i32
    scf.if %186 {
      %c0_80 = arith.constant 0 : index
      %c0_81 = arith.constant 0 : index
      %187 = vector.load %arg16[%c0_80, %c0_81] : memref<1x32xf32, #tpu.memory_space<vmem>>, vector<1x32xf32>
      %c0_82 = arith.constant 0 : index
      %c0_83 = arith.constant 0 : index
      %188 = vector.load %arg17[%c0_82, %c0_83] : memref<1x32xf32, #tpu.memory_space<vmem>>, vector<1x32xf32>
      %cst_84 = arith.constant dense<0.000000e+00> : vector<16xf32>
      %189 = vector.multi_reduction <add>, %181, %cst_84 [1] : vector<16x32xf32> to vector<16xf32>
      %190 = vector.shape_cast %189 : vector<16xf32> to vector<16x1xf32>
      %cst_85 = arith.constant 3.200000e+01 : f32
      %191 = vector.broadcast %cst_85 : f32 to vector<16x1xf32>
      %192 = arith.divf %190, %191 : vector<16x1xf32>
      %193 = vector.broadcast %192 : vector<16x1xf32> to vector<16x32xf32>
      %194 = arith.subf %181, %193 : vector<16x32xf32>
      %195 = arith.mulf %194, %194 : vector<16x32xf32>
      %cst_86 = arith.constant dense<0.000000e+00> : vector<16xf32>
      %196 = vector.multi_reduction <add>, %195, %cst_86 [1] : vector<16x32xf32> to vector<16xf32>
      %197 = vector.shape_cast %196 : vector<16xf32> to vector<16x1xf32>
      %cst_87 = arith.constant 3.200000e+01 : f32
      %198 = vector.broadcast %cst_87 : f32 to vector<16x1xf32>
      %199 = arith.divf %197, %198 : vector<16x1xf32>
      %cst_88 = arith.constant 9.99999997E-7 : f32
      %200 = vector.broadcast %cst_88 : f32 to vector<16x1xf32>
      %201 = arith.addf %199, %200 : vector<16x1xf32>
      %202 = math.rsqrt %201 : vector<16x1xf32>
      %203 = vector.broadcast %192 : vector<16x1xf32> to vector<16x32xf32>
      %204 = arith.subf %181, %203 : vector<16x32xf32>
      %205 = vector.broadcast %202 : vector<16x1xf32> to vector<16x32xf32>
      %206 = vector.broadcast %187 : vector<1x32xf32> to vector<16x32xf32>
      %207 = arith.mulf %205, %206 : vector<16x32xf32>
      %208 = arith.mulf %204, %207 : vector<16x32xf32>
      %209 = vector.broadcast %188 : vector<1x32xf32> to vector<16x32xf32>
      %210 = arith.addf %208, %209 : vector<16x32xf32>
      %211 = vector.shape_cast %210 : vector<16x32xf32> to vector<2x8x32xf32>
      %c0_89 = arith.constant 0 : index
      %c0_90 = arith.constant 0 : index
      %c0_91 = arith.constant 0 : index
      %212 = vector.load %arg18[%c0_89, %c0_90, %c0_91] : memref<2x8x32xf32, #tpu.memory_space<vmem>>, vector<2x8x32xf32>
      tpu.vector_store %arg18[%c0_89, %c0_90, %c0_91], %211 {strides = array<i32>} : memref<2x8x32xf32, #tpu.memory_space<vmem>>, vector<2x8x32xf32>,
    } else {
    }
    return
  }
  func.func @transform_0(%arg0: i32, %arg1: i32) -> (i32, i32, i32) {
    %c0_i32 = arith.constant 0 : i32
    %c0_i32_0 = arith.constant 0 : i32
    %c0_i32_1 = arith.constant 0 : i32
    return %arg0, %c0_i32, %c0_i32_0 : i32, i32, i32
  }
  func.func @transform_1(%arg0: i32, %arg1: i32) -> (i32, i32, i32) {
    %c0_i32 = arith.constant 0 : i32
    %c0_i32_0 = arith.constant 0 : i32
    %c0_i32_1 = arith.constant 0 : i32
    return %arg0, %c0_i32, %c0_i32_0 : i32, i32, i32
  }
  func.func @transform_2(%arg0: i32, %arg1: i32) -> (i32, i32, i32) {
    %c0_i32 = arith.constant 0 : i32
    %c0_i32_0 = arith.constant 0 : i32
    %c0_i32_1 = arith.constant 0 : i32
    return %arg1, %c0_i32, %c0_i32_0 : i32, i32, i32
  }
  func.func @transform_3(%arg0: i32, %arg1: i32) -> (i32, i32, i32) {
    %c0_i32 = arith.constant 0 : i32
    %c0_i32_0 = arith.constant 0 : i32
    %c0_i32_1 = arith.constant 0 : i32
    return %arg1, %c0_i32, %c0_i32_0 : i32, i32, i32
  }
  func.func @transform_4(%arg0: i32, %arg1: i32) -> (i32, i32, i32) {
    %c0_i32 = arith.constant 0 : i32
    %c0_i32_0 = arith.constant 0 : i32
    %c0_i32_1 = arith.constant 0 : i32
    return %arg1, %c0_i32, %c0_i32_0 : i32, i32, i32
  }
  func.func @transform_5(%arg0: i32, %arg1: i32) -> (i32, i32, i32) {
    %c0_i32 = arith.constant 0 : i32
    %c0_i32_0 = arith.constant 0 : i32
    %c0_i32_1 = arith.constant 0 : i32
    return %arg1, %c0_i32, %c0_i32_0 : i32, i32, i32
  }
  func.func @transform_6(%arg0: i32, %arg1: i32) -> (i32, i32, i32) {
    %c0_i32 = arith.constant 0 : i32
    %c0_i32_0 = arith.constant 0 : i32
    %c0_i32_1 = arith.constant 0 : i32
    return %arg1, %c0_i32, %c0_i32_0 : i32, i32, i32
  }
  func.func @transform_7(%arg0: i32, %arg1: i32) -> (i32, i32, i32) {
    %c0_i32 = arith.constant 0 : i32
    %c0_i32_0 = arith.constant 0 : i32
    %c0_i32_1 = arith.constant 0 : i32
    return %arg1, %c0_i32, %c0_i32_0 : i32, i32, i32
  }
  func.func @transform_8(%arg0: i32, %arg1: i32) -> (i32, i32, i32) {
    %c0_i32 = arith.constant 0 : i32
    %c0_i32_0 = arith.constant 0 : i32
    %c0_i32_1 = arith.constant 0 : i32
    return %arg1, %c0_i32, %c0_i32_0 : i32, i32, i32
  }
  func.func @transform_9(%arg0: i32, %arg1: i32) -> (i32, i32, i32) {
    %c0_i32 = arith.constant 0 : i32
    %c0_i32_0 = arith.constant 0 : i32
    %c0_i32_1 = arith.constant 0 : i32
    return %arg1, %c0_i32, %c0_i32_0 : i32, i32, i32
  }
  func.func @transform_10(%arg0: i32, %arg1: i32) -> (i32, i32, i32) {
    %c0_i32 = arith.constant 0 : i32
    %c0_i32_0 = arith.constant 0 : i32
    %c0_i32_1 = arith.constant 0 : i32
    return %arg1, %c0_i32, %c0_i32_0 : i32, i32, i32
  }
  func.func @transform_11(%arg0: i32, %arg1: i32) -> (i32, i32, i32) {
    %c0_i32 = arith.constant 0 : i32
    %c0_i32_0 = arith.constant 0 : i32
    %c0_i32_1 = arith.constant 0 : i32
    return %arg1, %c0_i32, %c0_i32_0 : i32, i32, i32
  }
  func.func @transform_12(%arg0: i32, %arg1: i32) -> (i32, i32, i32) {
    %c0_i32 = arith.constant 0 : i32
    %c0_i32_0 = arith.constant 0 : i32
    %c0_i32_1 = arith.constant 0 : i32
    return %arg1, %c0_i32, %c0_i32_0 : i32, i32, i32
  }
  func.func @transform_13(%arg0: i32, %arg1: i32) -> (i32, i32, i32) {
    %c0_i32 = arith.constant 0 : i32
    %c0_i32_0 = arith.constant 0 : i32
    %c0_i32_1 = arith.constant 0 : i32
    return %arg1, %c0_i32, %c0_i32_0 : i32, i32, i32
  }
  func.func @transform_14(%arg0: i32, %arg1: i32) -> (i32, i32) {
    %c0_i32 = arith.constant 0 : i32
    %c0_i32_0 = arith.constant 0 : i32
    %c0_i32_1 = arith.constant 0 : i32
    return %c0_i32, %c0_i32_0 : i32, i32
  }
  func.func @transform_15(%arg0: i32, %arg1: i32) -> (i32, i32) {
    %c0_i32 = arith.constant 0 : i32
    %c0_i32_0 = arith.constant 0 : i32
    %c0_i32_1 = arith.constant 0 : i32
    return %c0_i32, %c0_i32_0 : i32, i32
  }
  func.func @transform_16(%arg0: i32, %arg1: i32) -> (i32, i32, i32) {
    %c0_i32 = arith.constant 0 : i32
    %c0_i32_0 = arith.constant 0 : i32
    %c0_i32_1 = arith.constant 0 : i32
    return %arg0, %c0_i32, %c0_i32_0 : i32, i32, i32
  }
}

</mosaic_0001>

<llo_original>
// kernel: tpu_custom_call.1
$region0: #{tpu_custom_call.1}
  #allocation0 [shape = 'u32[]', space=smem, size = 0x4, offset = 0x4, fixed_abs, tag = 'smem constant byte address 0x4 - core index']
  #allocation1 [shape = 'u32[144,128]{1,0:T(1,128)}', space=vmem, size = 0x12000, scoped, tag = 'internal scratch']
  #allocation2 [shape = 'f32[2,8,32]{2,1,0:T(8,128)}', space=vmem, size = 0x2000, scoped, tag = 'scratch operand']
  %s0 = inlined_call_operand.hbm [shape: f32[2,8,32], index: 0, kind: input, shape index: {}]
  %s1 = inlined_call_operand.vmem [shape: f32[2,1,8], index: 1, kind: input, shape index: {}]
  %s2 = inlined_call_operand.vmem [shape: f32[2,1,32], index: 2, kind: input, shape index: {}]
  %s3 = inlined_call_operand.vmem [shape: f32[2,1,32], index: 3, kind: input, shape index: {}]
  %s4 = inlined_call_operand.vmem [shape: f32[2,32,96], index: 4, kind: input, shape index: {}]
  %s5 = inlined_call_operand.vmem [shape: f32[2,1,96], index: 5, kind: input, shape index: {}]
  %s6 = inlined_call_operand.vmem [shape: f32[2,32,32], index: 6, kind: input, shape index: {}]
  %s7 = inlined_call_operand.vmem [shape: f32[2,1,32], index: 7, kind: input, shape index: {}]
  %s8 = inlined_call_operand.vmem [shape: f32[2,1,32], index: 8, kind: input, shape index: {}]
  %s9 = inlined_call_operand.vmem [shape: f32[2,1,32], index: 9, kind: input, shape index: {}]
  %s10 = inlined_call_operand.vmem [shape: f32[2,32,64], index: 10, kind: input, shape index: {}]
  %s11 = inlined_call_operand.vmem [shape: f32[2,1,64], index: 11, kind: input, shape index: {}]
  %s12 = inlined_call_operand.vmem [shape: f32[2,64,32], index: 12, kind: input, shape index: {}]
  %s13 = inlined_call_operand.vmem [shape: f32[2,1,32], index: 13, kind: input, shape index: {}]
  %s14 = inlined_call_operand.vmem [shape: f32[1,32], index: 14, kind: input, shape index: {}]
  %s15 = inlined_call_operand.vmem [shape: f32[1,32], index: 15, kind: input, shape index: {}]
  %s16 = inlined_call_operand.hbm [shape: f32[2,8,32], index: 16, kind: output, shape index: {}]
  %s17 = sld [smem:[#allocation0]]
  $region109: #{tpu_custom_call.1} parent=0
    _
  %s19 = ssub.s32 1, %s17
  %s20 = scalar_select 0, %s19, %s17
  $region1: #{tpu_custom_call.1} parent=0
    #allocation3 [shape = 'u8[8192]{0}', space=vmem, size = 0x2000, scoped, tag = 'input window, operand 0, single buffered']
    #allocation4 [shape = 's32[2]{0}', space=sflag, size = 0x8, scoped, tag = 'scoped memory for tpu_custom_call.1']
    #allocation5 [shape = 's32[2]{0}', space=sflag, size = 0x8, scoped, tag = 'scoped memory for tpu_custom_call.1']
    #allocation6 [shape = 'u8[8192]{0}', space=vmem, size = 0x2000, scoped, tag = 'output window, operand 0, single buffered']
    %21 = vsyncpa [#allocation4], 0
    %22 = vsyncpa [#allocation5], 0
    loop: start=0, step=1, limit=4
    $region2: #{tpu_custom_call.1} parent=1 // loop_pre_header
      _
    $region3: #{tpu_custom_call.1} parent=1 // loop_header
      %s24 = sphi 0, %s28
      %p25 = scmp.ge.s32.totalorder %s24, 4
      %s31 = sphi 0, %s43
      %s32 = sphi 0, %s39
      %s33 = sphi 0, %s31
      %s34 = sphi 0, %s32
      %s35 = sphi 0, %s33
      %s36 = sphi 0, %s34
      %s46 = sphi 0, %s48
      %s49 = sphi 0, %s46
      %s50 = sphi 0, %s49
      %s66 = sphi 0, %s50
      %s72 = sphi 0, %s74
      %s75 = sphi 0, %s72
      %s76 = sphi 0, %s75
      %s92 = sphi 0, %s76
      %s98 = sphi 0, %s100
      %s101 = sphi 0, %s98
      %s102 = sphi 0, %s101
      %s118 = sphi 0, %s102
      %s124 = sphi 0, %s126
      %s127 = sphi 0, %s124
      %s128 = sphi 0, %s127
      %s144 = sphi 0, %s128
      %s150 = sphi 0, %s152
      %s153 = sphi 0, %s150
      %s154 = sphi 0, %s153
      %s170 = sphi 0, %s154
      %s176 = sphi 0, %s178
      %s179 = sphi 0, %s176
      %s180 = sphi 0, %s179
      %s196 = sphi 0, %s180
      %s202 = sphi 0, %s204
      %s205 = sphi 0, %s202
      %s206 = sphi 0, %s205
      %s222 = sphi 0, %s206
      %s228 = sphi 0, %s230
      %s231 = sphi 0, %s228
      %s232 = sphi 0, %s231
      %s248 = sphi 0, %s232
      %s254 = sphi 0, %s256
      %s257 = sphi 0, %s254
      %s258 = sphi 0, %s257
      %s274 = sphi 0, %s258
      %s280 = sphi 0, %s282
      %s283 = sphi 0, %s280
      %s284 = sphi 0, %s283
      %s300 = sphi 0, %s284
      %s306 = sphi 0, %s308
      %s309 = sphi 0, %s306
      %s310 = sphi 0, %s309
      %s326 = sphi 0, %s310
      %s332 = sphi 0, %s334
      %s335 = sphi 0, %s332
      %s336 = sphi 0, %s335
      %s352 = sphi 0, %s336
      %s358 = sphi 0, %s360
      %s361 = sphi 0, %s358
      %s362 = sphi 0, %s361
      %s378 = sphi 0, %s362
      %s384 = sphi 0, %s386
      %s387 = sphi 0, %s384
      %s388 = sphi 0, %s387
      %s404 = sphi 0, %s388
      %s408 = sphi 0, %s408
      %s410 = sphi 0, %s408
      %s411 = sphi 0, %s410
      %s425 = sphi 0, %s411
      %s429 = sphi 0, %s429
      %s431 = sphi 0, %s429
      %s432 = sphi 0, %s431
      %s446 = sphi 0, %s432
      %s452 = sphi 0, %s454
      %s455 = sphi 0, %s452
      %s456 = sphi 0, %s455
      %s472 = sphi 0, %s456
    $region4: #{tpu_custom_call.1} parent=1 // loop_header_branch
      %27 = sbr.rel (%p25) target = $region8
    $region5: #{tpu_custom_call.1} parent=1 // loop_body
      %s29 = ssub.s32 %s24, 1
      %s30 = ssub.s32 %s24, 2
      %s37 = sadd.s32 1, %s32
      %p38 = scmp.ge.s32.totalorder %s37, 2
      %s39 = scalar_select %p38, 0, %s37
      %s40 = sadd.s32 1, %s31
      %s41 = scalar_select %p38, %s40, %s31
      %p42 = scmp.ge.s32.totalorder %s41, 1
      %s43 = scalar_select %p42, 0, %s41
      %s44 = ssub.s32 %s31, %s43
      %p45 = scmp.eq.s32.totalorder %s44, 0
      %s47 = sadd.s32 %s46, 1
      %s48 = scalar_select %p45, %s46, %s47
      %p51 = pneg %p45
      %p52 = scmp.eq.s32.totalorder %s24, 1
      %p53 = por %p51, %p52
      %p54 = scmp.ne.s32.totalorder %s46, %s49
      %p55 = scmp.eq.s32.totalorder %s24, 0
      %p56 = por %p54, %p55
      %p57 = scmp.ne.s32.totalorder %s46, %s49
      %p58 = scmp.eq.s32.totalorder %s29, 1
      %p59 = por %p57, %p58
      %p60 = scmp.ne.s32.totalorder %s49, %s50
      %p61 = scmp.eq.s32.totalorder %s29, 0
      %p62 = por %p60, %p61
      %p63 = scmp.ne.s32.totalorder %s49, %s50
      %p64 = scmp.eq.s32.totalorder %s30, 1
      %p65 = por %p63, %p64
      %p67 = scmp.ne.s32.totalorder %s50, %s66
      %p68 = scmp.eq.s32.totalorder %s30, 0
      %p69 = por %p67, %p68
      %s70 = ssub.s32 %s31, %s43
      %p71 = scmp.eq.s32.totalorder %s70, 0
      %s73 = sadd.s32 %s72, 1
      %s74 = scalar_select %p71, %s72, %s73
      %p77 = pneg %p71
      %p78 = scmp.eq.s32.totalorder %s24, 1
      %p79 = por %p77, %p78
      %p80 = scmp.ne.s32.totalorder %s72, %s75
      %p81 = scmp.eq.s32.totalorder %s24, 0
      %p82 = por %p80, %p81
      %p83 = scmp.ne.s32.totalorder %s72, %s75
      %p84 = scmp.eq.s32.totalorder %s29, 1
      %p85 = por %p83, %p84
      %p86 = scmp.ne.s32.totalorder %s75, %s76
      %p87 = scmp.eq.s32.totalorder %s29, 0
      %p88 = por %p86, %p87
      %p89 = scmp.ne.s32.totalorder %s75, %s76
      %p90 = scmp.eq.s32.totalorder %s30, 1
      %p91 = por %p89, %p90
      %p93 = scmp.ne.s32.totalorder %s76, %s92
      %p94 = scmp.eq.s32.totalorder %s30, 0
      %p95 = por %p93, %p94
      %s96 = ssub.s32 %s32, %s39
      %p97 = scmp.eq.s32.totalorder %s96, 0
      %s99 = sadd.s32 %s98, 1
      %s100 = scalar_select %p97, %s98, %s99
      %p103 = pneg %p97
      %p104 = scmp.eq.s32.totalorder %s24, 1
      %p105 = por %p103, %p104
      %p106 = scmp.ne.s32.totalorder %s98, %s101
      %p107 = scmp.eq.s32.totalorder %s24, 0
      %p108 = por %p106, %p107
      %p109 = scmp.ne.s32.totalorder %s98, %s101
      %p110 = scmp.eq.s32.totalorder %s29, 1
      %p111 = por %p109, %p110
      %p112 = scmp.ne.s32.totalorder %s101, %s102
      %p113 = scmp.eq.s32.totalorder %s29, 0
      %p114 = por %p112, %p113
      %p115 = scmp.ne.s32.totalorder %s101, %s102
      %p116 = scmp.eq.s32.totalorder %s30, 1
      %p117 = por %p115, %p116
      %p119 = scmp.ne.s32.totalorder %s102, %s118
      %p120 = scmp.eq.s32.totalorder %s30, 0
      %p121 = por %p119, %p120
      %s122 = ssub.s32 %s32, %s39
      %p123 = scmp.eq.s32.totalorder %s122, 0
      %s125 = sadd.s32 %s124, 1
      %s126 = scalar_select %p123, %s124, %s125
      %p129 = pneg %p123
      %p130 = scmp.eq.s32.totalorder %s24, 1
      %p131 = por %p129, %p130
      %p132 = scmp.ne.s32.totalorder %s124, %s127
      %p133 = scmp.eq.s32.totalorder %s24, 0
      %p134 = por %p132, %p133
      %p135 = scmp.ne.s32.totalorder %s124, %s127
      %p136 = scmp.eq.s32.totalorder %s29, 1
      %p137 = por %p135, %p136
      %p138 = scmp.ne.s32.totalorder %s127, %s128
      %p139 = scmp.eq.s32.totalorder %s29, 0
      %p140 = por %p138, %p139
      %p141 = scmp.ne.s32.totalorder %s127, %s128
      %p142 = scmp.eq.s32.totalorder %s30, 1
      %p143 = por %p141, %p142
      %p145 = scmp.ne.s32.totalorder %s128, %s144
      %p146 = scmp.eq.s32.totalorder %s30, 0
      %p147 = por %p145, %p146
      %s148 = ssub.s32 %s32, %s39
      %p149 = scmp.eq.s32.totalorder %s148, 0
      %s151 = sadd.s32 %s150, 1
      %s152 = scalar_select %p149, %s150, %s151
      %p155 = pneg %p149
      %p156 = scmp.eq.s32.totalorder %s24, 1
      %p157 = por %p155, %p156
      %p158 = scmp.ne.s32.totalorder %s150, %s153
      %p159 = scmp.eq.s32.totalorder %s24, 0
      %p160 = por %p158, %p159
      %p161 = scmp.ne.s32.totalorder %s150, %s153
      %p162 = scmp.eq.s32.totalorder %s29, 1
      %p163 = por %p161, %p162
      %p164 = scmp.ne.s32.totalorder %s153, %s154
      %p165 = scmp.eq.s32.totalorder %s29, 0
      %p166 = por %p164, %p165
      %p167 = scmp.ne.s32.totalorder %s153, %s154
      %p168 = scmp.eq.s32.totalorder %s30, 1
      %p169 = por %p167, %p168
      %p171 = scmp.ne.s32.totalorder %s154, %s170
      %p172 = scmp.eq.s32.totalorder %s30, 0
      %p173 = por %p171, %p172
      %s174 = ssub.s32 %s32, %s39
      %p175 = scmp.eq.s32.totalorder %s174, 0
      %s177 = sadd.s32 %s176, 1
      %s178 = scalar_select %p175, %s176, %s177
      %p181 = pneg %p175
      %p182 = scmp.eq.s32.totalorder %s24, 1
      %p183 = por %p181, %p182
      %p184 = scmp.ne.s32.totalorder %s176, %s179
      %p185 = scmp.eq.s32.totalorder %s24, 0
      %p186 = por %p184, %p185
      %p187 = scmp.ne.s32.totalorder %s176, %s179
      %p188 = scmp.eq.s32.totalorder %s29, 1
      %p189 = por %p187, %p188
      %p190 = scmp.ne.s32.totalorder %s179, %s180
      %p191 = scmp.eq.s32.totalorder %s29, 0
      %p192 = por %p190, %p191
      %p193 = scmp.ne.s32.totalorder %s179, %s180
      %p194 = scmp.eq.s32.totalorder %s30, 1
      %p195 = por %p193, %p194
      %p197 = scmp.ne.s32.totalorder %s180, %s196
      %p198 = scmp.eq.s32.totalorder %s30, 0
      %p199 = por %p197, %p198
      %s200 = ssub.s32 %s32, %s39
      %p201 = scmp.eq.s32.totalorder %s200, 0
      %s203 = sadd.s32 %s202, 1
      %s204 = scalar_select %p201, %s202, %s203
      %p207 = pneg %p201
      %p208 = scmp.eq.s32.totalorder %s24, 1
      %p209 = por %p207, %p208
      %p210 = scmp.ne.s32.totalorder %s202, %s205
      %p211 = scmp.eq.s32.totalorder %s24, 0
      %p212 = por %p210, %p211
      %p213 = scmp.ne.s32.totalorder %s202, %s205
      %p214 = scmp.eq.s32.totalorder %s29, 1
      %p215 = por %p213, %p214
      %p216 = scmp.ne.s32.totalorder %s205, %s206
      %p217 = scmp.eq.s32.totalorder %s29, 0
      %p218 = por %p216, %p217
      %p219 = scmp.ne.s32.totalorder %s205, %s206
      %p220 = scmp.eq.s32.totalorder %s30, 1
      %p221 = por %p219, %p220
      %p223 = scmp.ne.s32.totalorder %s206, %s222
      %p224 = scmp.eq.s32.totalorder %s30, 0
      %p225 = por %p223, %p224
      %s226 = ssub.s32 %s32, %s39
      %p227 = scmp.eq.s32.totalorder %s226, 0
      %s229 = sadd.s32 %s228, 1
      %s230 = scalar_select %p227, %s228, %s229
      %p233 = pneg %p227
      %p234 = scmp.eq.s32.totalorder %s24, 1
      %p235 = por %p233, %p234
      %p236 = scmp.ne.s32.totalorder %s228, %s231
      %p237 = scmp.eq.s32.totalorder %s24, 0
      %p238 = por %p236, %p237
      %p239 = scmp.ne.s32.totalorder %s228, %s231
      %p240 = scmp.eq.s32.totalorder %s29, 1
      %p241 = por %p239, %p240
      %p242 = scmp.ne.s32.totalorder %s231, %s232
      %p243 = scmp.eq.s32.totalorder %s29, 0
      %p244 = por %p242, %p243
      %p245 = scmp.ne.s32.totalorder %s231, %s232
      %p246 = scmp.eq.s32.totalorder %s30, 1
      %p247 = por %p245, %p246
      %p249 = scmp.ne.s32.totalorder %s232, %s248
      %p250 = scmp.eq.s32.totalorder %s30, 0
      %p251 = por %p249, %p250
      %s252 = ssub.s32 %s32, %s39
      %p253 = scmp.eq.s32.totalorder %s252, 0
      %s255 = sadd.s32 %s254, 1
      %s256 = scalar_select %p253, %s254, %s255
      %p259 = pneg %p253
      %p260 = scmp.eq.s32.totalorder %s24, 1
      %p261 = por %p259, %p260
      %p262 = scmp.ne.s32.totalorder %s254, %s257
      %p263 = scmp.eq.s32.totalorder %s24, 0
      %p264 = por %p262, %p263
      %p265 = scmp.ne.s32.totalorder %s254, %s257
      %p266 = scmp.eq.s32.totalorder %s29, 1
      %p267 = por %p265, %p266
      %p268 = scmp.ne.s32.totalorder %s257, %s258
      %p269 = scmp.eq.s32.totalorder %s29, 0
      %p270 = por %p268, %p269
      %p271 = scmp.ne.s32.totalorder %s257, %s258
      %p272 = scmp.eq.s32.totalorder %s30, 1
      %p273 = por %p271, %p272
      %p275 = scmp.ne.s32.totalorder %s258, %s274
      %p276 = scmp.eq.s32.totalorder %s30, 0
      %p277 = por %p275, %p276
      %s278 = ssub.s32 %s32, %s39
      %p279 = scmp.eq.s32.totalorder %s278, 0
      %s281 = sadd.s32 %s280, 1
      %s282 = scalar_select %p279, %s280, %s281
      %p285 = pneg %p279
      %p286 = scmp.eq.s32.totalorder %s24, 1
      %p287 = por %p285, %p286
      %p288 = scmp.ne.s32.totalorder %s280, %s283
      %p289 = scmp.eq.s32.totalorder %s24, 0
      %p290 = por %p288, %p289
      %p291 = scmp.ne.s32.totalorder %s280, %s283
      %p292 = scmp.eq.s32.totalorder %s29, 1
      %p293 = por %p291, %p292
      %p294 = scmp.ne.s32.totalorder %s283, %s284
      %p295 = scmp.eq.s32.totalorder %s29, 0
      %p296 = por %p294, %p295
      %p297 = scmp.ne.s32.totalorder %s283, %s284
      %p298 = scmp.eq.s32.totalorder %s30, 1
      %p299 = por %p297, %p298
      %p301 = scmp.ne.s32.totalorder %s284, %s300
      %p302 = scmp.eq.s32.totalorder %s30, 0
      %p303 = por %p301, %p302
      %s304 = ssub.s32 %s32, %s39
      %p305 = scmp.eq.s32.totalorder %s304, 0
      %s307 = sadd.s32 %s306, 1
      %s308 = scalar_select %p305, %s306, %s307
      %p311 = pneg %p305
      %p312 = scmp.eq.s32.totalorder %s24, 1
      %p313 = por %p311, %p312
      %p314 = scmp.ne.s32.totalorder %s306, %s309
      %p315 = scmp.eq.s32.totalorder %s24, 0
      %p316 = por %p314, %p315
      %p317 = scmp.ne.s32.totalorder %s306, %s309
      %p318 = scmp.eq.s32.totalorder %s29, 1
      %p319 = por %p317, %p318
      %p320 = scmp.ne.s32.totalorder %s309, %s310
      %p321 = scmp.eq.s32.totalorder %s29, 0
      %p322 = por %p320, %p321
      %p323 = scmp.ne.s32.totalorder %s309, %s310
      %p324 = scmp.eq.s32.totalorder %s30, 1
      %p325 = por %p323, %p324
      %p327 = scmp.ne.s32.totalorder %s310, %s326
      %p328 = scmp.eq.s32.totalorder %s30, 0
      %p329 = por %p327, %p328
      %s330 = ssub.s32 %s32, %s39
      %p331 = scmp.eq.s32.totalorder %s330, 0
      %s333 = sadd.s32 %s332, 1
      %s334 = scalar_select %p331, %s332, %s333
      %p337 = pneg %p331
      %p338 = scmp.eq.s32.totalorder %s24, 1
      %p339 = por %p337, %p338
      %p340 = scmp.ne.s32.totalorder %s332, %s335
      %p341 = scmp.eq.s32.totalorder %s24, 0
      %p342 = por %p340, %p341
      %p343 = scmp.ne.s32.totalorder %s332, %s335
      %p344 = scmp.eq.s32.totalorder %s29, 1
      %p345 = por %p343, %p344
      %p346 = scmp.ne.s32.totalorder %s335, %s336
      %p347 = scmp.eq.s32.totalorder %s29, 0
      %p348 = por %p346, %p347
      %p349 = scmp.ne.s32.totalorder %s335, %s336
      %p350 = scmp.eq.s32.totalorder %s30, 1
      %p351 = por %p349, %p350
      %p353 = scmp.ne.s32.totalorder %s336, %s352
      %p354 = scmp.eq.s32.totalorder %s30, 0
      %p355 = por %p353, %p354
      %s356 = ssub.s32 %s32, %s39
      %p357 = scmp.eq.s32.totalorder %s356, 0
      %s359 = sadd.s32 %s358, 1
      %s360 = scalar_select %p357, %s358, %s359
      %p363 = pneg %p357
      %p364 = scmp.eq.s32.totalorder %s24, 1
      %p365 = por %p363, %p364
      %p366 = scmp.ne.s32.totalorder %s358, %s361
      %p367 = scmp.eq.s32.totalorder %s24, 0
      %p368 = por %p366, %p367
      %p369 = scmp.ne.s32.totalorder %s358, %s361
      %p370 = scmp.eq.s32.totalorder %s29, 1
      %p371 = por %p369, %p370
      %p372 = scmp.ne.s32.totalorder %s361, %s362
      %p373 = scmp.eq.s32.totalorder %s29, 0
      %p374 = por %p372, %p373
      %p375 = scmp.ne.s32.totalorder %s361, %s362
      %p376 = scmp.eq.s32.totalorder %s30, 1
      %p377 = por %p375, %p376
      %p379 = scmp.ne.s32.totalorder %s362, %s378
      %p380 = scmp.eq.s32.totalorder %s30, 0
      %p381 = por %p379, %p380
      %s382 = ssub.s32 %s32, %s39
      %p383 = scmp.eq.s32.totalorder %s382, 0
      %s385 = sadd.s32 %s384, 1
      %s386 = scalar_select %p383, %s384, %s385
      %p389 = pneg %p383
      %p390 = scmp.eq.s32.totalorder %s24, 1
      %p391 = por %p389, %p390
      %p392 = scmp.ne.s32.totalorder %s384, %s387
      %p393 = scmp.eq.s32.totalorder %s24, 0
      %p394 = por %p392, %p393
      %p395 = scmp.ne.s32.totalorder %s384, %s387
      %p396 = scmp.eq.s32.totalorder %s29, 1
      %p397 = por %p395, %p396
      %p398 = scmp.ne.s32.totalorder %s387, %s388
      %p399 = scmp.eq.s32.totalorder %s29, 0
      %p400 = por %p398, %p399
      %p401 = scmp.ne.s32.totalorder %s387, %s388
      %p402 = scmp.eq.s32.totalorder %s30, 1
      %p403 = por %p401, %p402
      %p405 = scmp.ne.s32.totalorder %s388, %s404
      %p406 = scmp.eq.s32.totalorder %s30, 0
      %p407 = por %p405, %p406
      %s409 = sadd.s32 %s408, 1
      %p412 = scmp.eq.s32.totalorder %s24, 1
      %p413 = scmp.ne.s32.totalorder %s408, %s410
      %p414 = scmp.eq.s32.totalorder %s24, 0
      %p415 = por %p413, %p414
      %p416 = scmp.ne.s32.totalorder %s408, %s410
      %p417 = scmp.eq.s32.totalorder %s29, 1
      %p418 = por %p416, %p417
      %p419 = scmp.ne.s32.totalorder %s410, %s411
      %p420 = scmp.eq.s32.totalorder %s29, 0
      %p421 = por %p419, %p420
      %p422 = scmp.ne.s32.totalorder %s410, %s411
      %p423 = scmp.eq.s32.totalorder %s30, 1
      %p424 = por %p422, %p423
      %p426 = scmp.ne.s32.totalorder %s411, %s425
      %p427 = scmp.eq.s32.totalorder %s30, 0
      %p428 = por %p426, %p427
      %s430 = sadd.s32 %s429, 1
      %p433 = scmp.eq.s32.totalorder %s24, 1
      %p434 = scmp.ne.s32.totalorder %s429, %s431
      %p435 = scmp.eq.s32.totalorder %s24, 0
      %p436 = por %p434, %p435
      %p437 = scmp.ne.s32.totalorder %s429, %s431
      %p438 = scmp.eq.s32.totalorder %s29, 1
      %p439 = por %p437, %p438
      %p440 = scmp.ne.s32.totalorder %s431, %s432
      %p441 = scmp.eq.s32.totalorder %s29, 0
      %p442 = por %p440, %p441
      %p443 = scmp.ne.s32.totalorder %s431, %s432
      %p444 = scmp.eq.s32.totalorder %s30, 1
      %p445 = por %p443, %p444
      %p447 = scmp.ne.s32.totalorder %s432, %s446
      %p448 = scmp.eq.s32.totalorder %s30, 0
      %p449 = por %p447, %p448
      %s450 = ssub.s32 %s31, %s43
      %p451 = scmp.eq.s32.totalorder %s450, 0
      %s453 = sadd.s32 %s452, 1
      %s454 = scalar_select %p451, %s452, %s453
      %p457 = pneg %p451
      %p458 = scmp.eq.s32.totalorder %s24, 1
      %p459 = por %p457, %p458
      %p460 = scmp.ne.s32.totalorder %s452, %s455
      %p461 = scmp.eq.s32.totalorder %s24, 0
      %p462 = por %p460, %p461
      %p463 = scmp.ne.s32.totalorder %s452, %s455
      %p464 = scmp.eq.s32.totalorder %s29, 1
      %p465 = por %p463, %p464
      %p466 = scmp.ne.s32.totalorder %s455, %s456
      %p467 = scmp.eq.s32.totalorder %s29, 0
      %p468 = por %p466, %p467
      %p469 = scmp.ne.s32.totalorder %s455, %s456
      %p470 = scmp.eq.s32.totalorder %s30, 1
      %p471 = por %p469, %p470
      %p473 = scmp.ne.s32.totalorder %s456, %s472
      %p474 = scmp.eq.s32.totalorder %s30, 0
      %p475 = por %p473, %p474
      %p476 = scmp.le.s32.totalorder 1, %s24
      %p477 = scmp.lt.s32.totalorder %s24, 3
      %p478 = pnand %p476, %p477
      %p479 = pneg %p478
      // Predicated region
      $region9: #{tpu_custom_call.1} parent=5 // pred_check
        _
      $region10: #{tpu_custom_call.1} parent=5 // pred_check_branch
        %481 = sbr.rel (%p478) target = $region12
      $region11: #{tpu_custom_call.1} parent=5 // pred_region
        %s482 = ssub.s32 %s24, 1
        // Predicated region
        $region13: #{tpu_custom_call.1} parent=11 // pred_check
          %p483 = pneg %p62
        $region14: #{tpu_custom_call.1} parent=11 // pred_check_branch
          %485 = sbr.rel (%p483) target = $region16
        $region15: #{tpu_custom_call.1} parent=11 // pred_region
          %s486 = smul.u32 2, %s33
          %s488 = ssub.s32 256, 256
          %489 = vsyncadd [#allocation4], %s488
          %s490 = smul.addr %s486, 128
          %s491 = scalar_lea.hbm %s0, %s490
          %s492 = sshll.u32 [#allocation3], 4
          %s493 = int_to_ptr.vmem [resolvable:$true] %s492
          %498 = dma.hbm_to_vmem [thread:$0]  %s491, 256, %s493, [#allocation4], 128, 128, 8
        $region16: #{tpu_custom_call.1} parent=11 // pred_fallthru
          _
        // Predicated region
        $region17: #{tpu_custom_call.1} parent=11 // pred_check
          %p499 = pneg %p88
        $region18: #{tpu_custom_call.1} parent=11 // pred_check_branch
          %501 = sbr.rel (%p499) target = $region20
        $region19: #{tpu_custom_call.1} parent=11 // pred_region
          %s502 = smul.u32 2, %s33
          %p503 = scmp.lt.s32.totalorder %s502, 1
          %s504 = scalar_select %p503, %s502, 1
          %s505 = scalar_lea.vmem %s1, %s504
          %s506 = smul.u32 2, %s33
        $region20: #{tpu_custom_call.1} parent=11 // pred_fallthru
          _
        // Predicated region
        $region21: #{tpu_custom_call.1} parent=11 // pred_check
          %p507 = pneg %p421
        $region22: #{tpu_custom_call.1} parent=11 // pred_check_branch
          %509 = sbr.rel (%p507) target = $region24
        $region23: #{tpu_custom_call.1} parent=11 // pred_region
          _
        $region24: #{tpu_custom_call.1} parent=11 // pred_fallthru
          _
        // Predicated region
        $region25: #{tpu_custom_call.1} parent=11 // pred_check
          %p510 = pneg %p442
        $region26: #{tpu_custom_call.1} parent=11 // pred_check_branch
          %512 = sbr.rel (%p510) target = $region28
        $region27: #{tpu_custom_call.1} parent=11 // pred_region
          _
        $region28: #{tpu_custom_call.1} parent=11 // pred_fallthru
          _
      $region12: #{tpu_custom_call.1} parent=5 // pred_fallthru
        _
      %p513 = scmp.lt.s32.totalorder %s24, 2
      // Predicated region
      $region29: #{tpu_custom_call.1} parent=5 // pred_check
        %p514 = pneg %p513
      $region30: #{tpu_custom_call.1} parent=5 // pred_check_branch
        %516 = sbr.rel (%p514) target = $region32
      $region31: #{tpu_custom_call.1} parent=5 // pred_region
        // Predicated region
        $region33: #{tpu_custom_call.1} parent=31 // pred_check
          %p517 = pneg %p108
        $region34: #{tpu_custom_call.1} parent=31 // pred_check_branch
          %519 = sbr.rel (%p517) target = $region36
        $region35: #{tpu_custom_call.1} parent=31 // pred_region
          %p520 = scmp.lt.s32.totalorder %s32, 1
          %s521 = scalar_select %p520, %s32, 1
          %s522 = scalar_lea.vmem %s2, %s521
        $region36: #{tpu_custom_call.1} parent=31 // pred_fallthru
          _
        // Predicated region
        $region37: #{tpu_custom_call.1} parent=31 // pred_check
          %p523 = pneg %p134
        $region38: #{tpu_custom_call.1} parent=31 // pred_check_branch
          %525 = sbr.rel (%p523) target = $region40
        $region39: #{tpu_custom_call.1} parent=31 // pred_region
          %p526 = scmp.lt.s32.totalorder %s32, 1
          %s527 = scalar_select %p526, %s32, 1
          %s528 = scalar_lea.vmem %s3, %s527
        $region40: #{tpu_custom_call.1} parent=31 // pred_fallthru
          _
        // Predicated region
        $region41: #{tpu_custom_call.1} parent=31 // pred_check
          %p529 = pneg %p160
        $region42: #{tpu_custom_call.1} parent=31 // pred_check_branch
          %531 = sbr.rel (%p529) target = $region44
        $region43: #{tpu_custom_call.1} parent=31 // pred_region
          %p532 = scmp.lt.s32.totalorder %s32, 1
          %s533 = scalar_select %p532, %s32, 1
          %s534 = smul.addr %s533, 4
          %s535 = smul.addr %s534, 8
          %s536 = scalar_lea.vmem %s4, %s535
        $region44: #{tpu_custom_call.1} parent=31 // pred_fallthru
          _
        // Predicated region
        $region45: #{tpu_custom_call.1} parent=31 // pred_check
          %p537 = pneg %p186
        $region46: #{tpu_custom_call.1} parent=31 // pred_check_branch
          %539 = sbr.rel (%p537) target = $region48
        $region47: #{tpu_custom_call.1} parent=31 // pred_region
          %p540 = scmp.lt.s32.totalorder %s32, 1
          %s541 = scalar_select %p540, %s32, 1
          %s542 = scalar_lea.vmem %s5, %s541
        $region48: #{tpu_custom_call.1} parent=31 // pred_fallthru
          _
        // Predicated region
        $region49: #{tpu_custom_call.1} parent=31 // pred_check
          %p543 = pneg %p212
        $region50: #{tpu_custom_call.1} parent=31 // pred_check_branch
          %545 = sbr.rel (%p543) target = $region52
        $region51: #{tpu_custom_call.1} parent=31 // pred_region
          %p546 = scmp.lt.s32.totalorder %s32, 1
          %s547 = scalar_select %p546, %s32, 1
          %s548 = smul.addr %s547, 4
          %s549 = smul.addr %s548, 8
          %s550 = scalar_lea.vmem %s6, %s549
        $region52: #{tpu_custom_call.1} parent=31 // pred_fallthru
          _
        // Predicated region
        $region53: #{tpu_custom_call.1} parent=31 // pred_check
          %p551 = pneg %p238
        $region54: #{tpu_custom_call.1} parent=31 // pred_check_branch
          %553 = sbr.rel (%p551) target = $region56
        $region55: #{tpu_custom_call.1} parent=31 // pred_region
          %p554 = scmp.lt.s32.totalorder %s32, 1
          %s555 = scalar_select %p554, %s32, 1
          %s556 = scalar_lea.vmem %s7, %s555
        $region56: #{tpu_custom_call.1} parent=31 // pred_fallthru
          _
        // Predicated region
        $region57: #{tpu_custom_call.1} parent=31 // pred_check
          %p557 = pneg %p264
        $region58: #{tpu_custom_call.1} parent=31 // pred_check_branch
          %559 = sbr.rel (%p557) target = $region60
        $region59: #{tpu_custom_call.1} parent=31 // pred_region
          %p560 = scmp.lt.s32.totalorder %s32, 1
          %s561 = scalar_select %p560, %s32, 1
          %s562 = scalar_lea.vmem %s8, %s561
        $region60: #{tpu_custom_call.1} parent=31 // pred_fallthru
          _
        // Predicated region
        $region61: #{tpu_custom_call.1} parent=31 // pred_check
          %p563 = pneg %p290
        $region62: #{tpu_custom_call.1} parent=31 // pred_check_branch
          %565 = sbr.rel (%p563) target = $region64
        $region63: #{tpu_custom_call.1} parent=31 // pred_region
          %p566 = scmp.lt.s32.totalorder %s32, 1
          %s567 = scalar_select %p566, %s32, 1
          %s568 = scalar_lea.vmem %s9, %s567
        $region64: #{tpu_custom_call.1} parent=31 // pred_fallthru
          _
        // Predicated region
        $region65: #{tpu_custom_call.1} parent=31 // pred_check
          %p569 = pneg %p316
        $region66: #{tpu_custom_call.1} parent=31 // pred_check_branch
          %571 = sbr.rel (%p569) target = $region68
        $region67: #{tpu_custom_call.1} parent=31 // pred_region
          %p572 = scmp.lt.s32.totalorder %s32, 1
          %s573 = scalar_select %p572, %s32, 1
          %s574 = smul.addr %s573, 4
          %s575 = smul.addr %s574, 8
          %s576 = scalar_lea.vmem %s10, %s575
        $region68: #{tpu_custom_call.1} parent=31 // pred_fallthru
          _
        // Predicated region
        $region69: #{tpu_custom_call.1} parent=31 // pred_check
          %p577 = pneg %p342
        $region70: #{tpu_custom_call.1} parent=31 // pred_check_branch
          %579 = sbr.rel (%p577) target = $region72
        $region71: #{tpu_custom_call.1} parent=31 // pred_region
          %p580 = scmp.lt.s32.totalorder %s32, 1
          %s581 = scalar_select %p580, %s32, 1
          %s582 = scalar_lea.vmem %s11, %s581
        $region72: #{tpu_custom_call.1} parent=31 // pred_fallthru
          _
        // Predicated region
        $region73: #{tpu_custom_call.1} parent=31 // pred_check
          %p583 = pneg %p368
        $region74: #{tpu_custom_call.1} parent=31 // pred_check_branch
          %585 = sbr.rel (%p583) target = $region76
        $region75: #{tpu_custom_call.1} parent=31 // pred_region
          %p586 = scmp.lt.s32.totalorder %s32, 1
          %s587 = scalar_select %p586, %s32, 1
          %s588 = smul.addr %s587, 8
          %s589 = smul.addr %s588, 8
          %s590 = scalar_lea.vmem %s12, %s589
        $region76: #{tpu_custom_call.1} parent=31 // pred_fallthru
          _
        // Predicated region
        $region77: #{tpu_custom_call.1} parent=31 // pred_check
          %p591 = pneg %p394
        $region78: #{tpu_custom_call.1} parent=31 // pred_check_branch
          %593 = sbr.rel (%p591) target = $region80
        $region79: #{tpu_custom_call.1} parent=31 // pred_region
          %p594 = scmp.lt.s32.totalorder %s32, 1
          %s595 = scalar_select %p594, %s32, 1
          %s596 = scalar_lea.vmem %s13, %s595
        $region80: #{tpu_custom_call.1} parent=31 // pred_fallthru
          _
      $region32: #{tpu_custom_call.1} parent=5 // pred_fallthru
        _
      %p597 = scmp.le.s32.totalorder 1, %s24
      %p598 = scmp.lt.s32.totalorder %s24, 3
      %p599 = pnand %p597, %p598
      %p600 = pneg %p599
      // Predicated region
      $region81: #{tpu_custom_call.1} parent=5 // pred_check
        _
      $region82: #{tpu_custom_call.1} parent=5 // pred_check_branch
        %602 = sbr.rel (%p599) target = $region84
      $region83: #{tpu_custom_call.1} parent=5 // pred_region
        %s603 = ssub.s32 %s24, 1
        // Predicated region
        $region85: #{tpu_custom_call.1} parent=83 // pred_check
          %p604 = pneg %p62
        $region86: #{tpu_custom_call.1} parent=83 // pred_check_branch
          %606 = sbr.rel (%p604) target = $region88
        $region87: #{tpu_custom_call.1} parent=83 // pred_region
          %607 = dma.done [#allocation4], 256
        $region88: #{tpu_custom_call.1} parent=83 // pred_fallthru
          _
        %p608 = pneg %p62
        %p609 = pneg %p59
        %s610 = smul.u32 2, %s33
        %p611 = scmp.lt.s32.totalorder %s610, 1
        %s612 = scalar_select %p611, %s610, 1
        %s613 = scalar_lea.vmem %s1, %s612
        %p614 = pneg %p88
        %p615 = pneg %p85
        %p616 = scmp.lt.s32.totalorder %s34, 1
        %s617 = scalar_select %p616, %s34, 1
        %s618 = scalar_lea.vmem %s2, %s617
        %p619 = pneg %p114
        %p620 = pneg %p111
        %p621 = scmp.lt.s32.totalorder %s34, 1
        %s622 = scalar_select %p621, %s34, 1
        %s623 = scalar_lea.vmem %s3, %s622
        %p624 = pneg %p140
        %p625 = pneg %p137
        %p626 = scmp.lt.s32.totalorder %s34, 1
        %s627 = scalar_select %p626, %s34, 1
        %s628 = smul.addr %s627, 4
        %s629 = smul.addr %s628, 8
        %s630 = scalar_lea.vmem %s4, %s629
        %p631 = pneg %p166
        %p632 = pneg %p163
        %p633 = scmp.lt.s32.totalorder %s34, 1
        %s634 = scalar_select %p633, %s34, 1
        %s635 = scalar_lea.vmem %s5, %s634
        %p636 = pneg %p192
        %p637 = pneg %p189
        %p638 = scmp.lt.s32.totalorder %s34, 1
        %s639 = scalar_select %p638, %s34, 1
        %s640 = smul.addr %s639, 4
        %s641 = smul.addr %s640, 8
        %s642 = scalar_lea.vmem %s6, %s641
        %p643 = pneg %p218
        %p644 = pneg %p215
        %p645 = scmp.lt.s32.totalorder %s34, 1
        %s646 = scalar_select %p645, %s34, 1
        %s647 = scalar_lea.vmem %s7, %s646
        %p648 = pneg %p244
        %p649 = pneg %p241
        %p650 = scmp.lt.s32.totalorder %s34, 1
        %s651 = scalar_select %p650, %s34, 1
        %s652 = scalar_lea.vmem %s8, %s651
        %p653 = pneg %p270
        %p654 = pneg %p267
        %p655 = scmp.lt.s32.totalorder %s34, 1
        %s656 = scalar_select %p655, %s34, 1
        %s657 = scalar_lea.vmem %s9, %s656
        %p658 = pneg %p296
        %p659 = pneg %p293
        %p660 = scmp.lt.s32.totalorder %s34, 1
        %s661 = scalar_select %p660, %s34, 1
        %s662 = smul.addr %s661, 4
        %s663 = smul.addr %s662, 8
        %s664 = scalar_lea.vmem %s10, %s663
        %p665 = pneg %p322
        %p666 = pneg %p319
        %p667 = scmp.lt.s32.totalorder %s34, 1
        %s668 = scalar_select %p667, %s34, 1
        %s669 = scalar_lea.vmem %s11, %s668
        %p670 = pneg %p348
        %p671 = pneg %p345
        %p672 = scmp.lt.s32.totalorder %s34, 1
        %s673 = scalar_select %p672, %s34, 1
        %s674 = smul.addr %s673, 8
        %s675 = smul.addr %s674, 8
        %s676 = scalar_lea.vmem %s12, %s675
        %p677 = pneg %p374
        %p678 = pneg %p371
        %p679 = scmp.lt.s32.totalorder %s34, 1
        %s680 = scalar_select %p679, %s34, 1
        %s681 = scalar_lea.vmem %s13, %s680
        %p682 = pneg %p400
        %p683 = pneg %p397
        %p684 = pneg %p421
        %p685 = pneg %p418
        %p686 = pneg %p442
        %p687 = pneg %p439
        %p688 = pneg %p468
        %p689 = pneg %p465
        %s690 = smul.u32 2, %s33
        %s691 = smul.u32 2, %s33
        %p692 = scmp.lt.s32.totalorder %s691, 1
        %s693 = scalar_select %p692, %s691, 1
        %s694 = scalar_lea.vmem %s1, %s693
        %s695 = smul.u32 2, %s33
        %p696 = scmp.lt.s32.totalorder %s34, 1
        %s697 = scalar_select %p696, %s34, 1
        %s698 = scalar_lea.vmem %s2, %s697
        %p699 = scmp.lt.s32.totalorder %s34, 1
        %s700 = scalar_select %p699, %s34, 1
        %s701 = scalar_lea.vmem %s3, %s700
        %p702 = scmp.lt.s32.totalorder %s34, 1
        %s703 = scalar_select %p702, %s34, 1
        %s704 = smul.addr %s703, 4
        %s705 = smul.addr %s704, 8
        %s706 = scalar_lea.vmem %s4, %s705
        %p707 = scmp.lt.s32.totalorder %s34, 1
        %s708 = scalar_select %p707, %s34, 1
        %s709 = scalar_lea.vmem %s5, %s708
        %p710 = scmp.lt.s32.totalorder %s34, 1
        %s711 = scalar_select %p710, %s34, 1
        %s712 = smul.addr %s711, 4
        %s713 = smul.addr %s712, 8
        %s714 = scalar_lea.vmem %s6, %s713
        %p715 = scmp.lt.s32.totalorder %s34, 1
        %s716 = scalar_select %p715, %s34, 1
        %s717 = scalar_lea.vmem %s7, %s716
        %p718 = scmp.lt.s32.totalorder %s34, 1
        %s719 = scalar_select %p718, %s34, 1
        %s720 = scalar_lea.vmem %s8, %s719
        %p721 = scmp.lt.s32.totalorder %s34, 1
        %s722 = scalar_select %p721, %s34, 1
        %s723 = scalar_lea.vmem %s9, %s722
        %p724 = scmp.lt.s32.totalorder %s34, 1
        %s725 = scalar_select %p724, %s34, 1
        %s726 = smul.addr %s725, 4
        %s727 = smul.addr %s726, 8
        %s728 = scalar_lea.vmem %s10, %s727
        %p729 = scmp.lt.s32.totalorder %s34, 1
        %s730 = scalar_select %p729, %s34, 1
        %s731 = scalar_lea.vmem %s11, %s730
        %p732 = scmp.lt.s32.totalorder %s34, 1
        %s733 = scalar_select %p732, %s34, 1
        %s734 = smul.addr %s733, 8
        %s735 = smul.addr %s734, 8
        %s736 = scalar_lea.vmem %s12, %s735
        %p737 = scmp.lt.s32.totalorder %s34, 1
        %s738 = scalar_select %p737, %s34, 1
        %s739 = scalar_lea.vmem %s13, %s738
        %s740 = smul.u32 2, %s33
        %p741 = scmp.eq.s32.totalorder %s34, 0
        // Predicated region
        $region89: #{tpu_custom_call.1} parent=83 // pred_check
          %p742 = pneg %p741
        $region90: #{tpu_custom_call.1} parent=83 // pred_check_branch
          %744 = sbr.rel (%p742) target = $region92
        $region91: #{tpu_custom_call.1} parent=83 // pred_region
          %v745 = vld [vmem:[#allocation3] sm:$0xff]
          %v746 = vld [vmem:[#allocation3 + $0x8] sm:$0xff]
          %vm747 = vcmask 261120
          %748 = vst.msk [vmem:[#allocation2] sm:$0xff] %vm747, %v745
          %749 = vst.msk [vmem:[#allocation2 + $0x8] sm:$0xff] %vm747, %v746
        $region92: #{tpu_custom_call.1} parent=83 // pred_fallthru
          _
        %v750 = vld [vmem:[#allocation2] sm:$0xff]
        %v751 = vld [vmem:[#allocation2 + $0x8] sm:$0xff]
        %v752 = vld [vmem:[%s694] sm:$0x1]
        %v753 = vld [vmem:[%s694 + $0x1] sm:$0x1]
        %vm754 = vcmp.gt.f32.partialorder %v752, 0.0
        %vm755 = vcmp.gt.f32.partialorder %v753, 0.0
        %v756 = vsel %vm754, 0.0, -1e+30
        %v757 = vsel %vm755, 0.0, -1e+30
        %v758 = vld [vmem:[%s698] sm:$0x1]
        %v759 = vld [vmem:[%s701] sm:$0x1]
        %vm760 = vcmask 261120
        %v761 = vsel %vm760, %v750, 0.0
        %762 = vadd.xlane.f32.xlu0 %v761
        %v763 = vpop.xlane.xlu0 %762
        %v764 = vsel %vm760, %v751, 0.0
        %765 = vadd.xlane.f32.xlu0 %v764
        %v766 = vpop.xlane.xlu0 %765
        %v767 = vrcp.pop 32.0
        %v768 = vmul.f32 %v763, %v767
        %v769 = vmul.f32 %v766, %v767
        %v770 = vsub.f32 %v750, %v768
        %v771 = vsub.f32 %v751, %v769
        %v772 = vmul.f32 %v770, %v770
        %v773 = vmul.f32 %v771, %v771
        %v774 = vsel %vm760, %v772, 0.0
        %775 = vadd.xlane.f32.xlu0 %v774
        %v776 = vpop.xlane.xlu0 %775
        %v777 = vsel %vm760, %v773, 0.0
        %778 = vadd.xlane.f32.xlu0 %v777
        %v779 = vpop.xlane.xlu0 %778
        %v780 = vmul.f32 %v776, %v767
        %v781 = vmul.f32 %v779, %v767
        %v782 = vadd.f32 %v780, 1e-06
        %v783 = vadd.f32 %v781, 1e-06
        %v784 = vrsqrt.pop %v782
        %v785 = vrsqrt.pop %v783
        %v787 = vlaneseq
        %v788 = vshrl.u32 %v787, 7
        %v789 = vsub.s32 0, %v788
        %v790 = vrot.slane %v758, %v789
        %v792 = vmul.f32 %v784, %v790
        %v793 = vmul.f32 %v785, %v790
        %v794 = vmul.f32 %v770, %v792
        %v795 = vmul.f32 %v771, %v793
        %v797 = vlaneseq
        %v798 = vshrl.u32 %v797, 7
        %v799 = vsub.s32 0, %v798
        %v800 = vrot.slane %v759, %v799
        %v802 = vadd.f32 %v794, %v800
        %v803 = vadd.f32 %v795, %v800
        %v804 = vld [vmem:[%s706] sm:$0xff]
        %v805 = vld [vmem:[%s706 + $0x8] sm:$0xff]
        %v806 = vld [vmem:[%s706 + $0x10] sm:$0xff]
        %v807 = vld [vmem:[%s706 + $0x18] sm:$0xff]
        %v808 = vld [vmem:[%s709] sm:$0x1]
        %v810 = vlaneseq
        %v811 = vshrl.u32 %v810, 7
        %v812 = vsub.s32 0, %v811
        %v813 = vrot.slane %v808, %v812
        %v816 = vsel %vm760, %v802, 0
        %v819 = vsel %vm760, %v803, 0
        %821 = vmatprep.subr.mxu0 0.0
        %822 = vmatpush1.msra.mxu0 %v804
        %823 = vmatprep.subr.mxu0 0.0
        %824 = vmatpush1.msra.mxu0 %v805
        %825 = vmatprep.subr.mxu0 0.0
        %826 = vmatpush1.msra.mxu0 %v806
        %827 = vmatprep.subr.mxu0 0.0
        %828 = vmatpush1.msra.mxu0 %v807
        %829 = vmatprep.subr.mxu0 0.0
        %830 = vmatpush1.msra.mxu0 0.0
        %831 = vmatprep.subr.mxu0 0.0
        %832 = vmatpush1.msra.mxu0 0.0
        %833 = vmatprep.subr.mxu0 0.0
        %834 = vmatpush1.msra.mxu0 0.0
        %835 = vmatprep.subr.mxu0 0.0
        %836 = vmatpush1.msra.mxu0 0.0
        %837 = vmatprep.subr.mxu0 0.0
        %838 = vmatpush1.msra.mxu0 0.0
        %839 = vmatprep.subr.mxu0 0.0
        %840 = vmatpush1.msra.mxu0 0.0
        %841 = vmatprep.subr.mxu0 0.0
        %842 = vmatpush1.msra.mxu0 0.0
        %843 = vmatprep.subr.mxu0 0.0
        %844 = vmatpush1.msra.mxu0 0.0
        %845 = vmatprep.subr.mxu0 0.0
        %846 = vmatpush1.msra.mxu0 0.0
        %847 = vmatprep.subr.mxu0 0.0
        %848 = vmatpush1.msra.mxu0 0.0
        %849 = vmatprep.subr.mxu0 0.0
        %850 = vmatpush1.msra.mxu0 0.0
        %851 = vmatprep.subr.mxu0 0.0
        %852 = vmatpush1.msra.mxu0 0.0
        %853 = vmatprep.subr.mxu0 0.0
        %854 = vmatpush1.msra.mxu0 0.0
        %855 = vmatprep.subr.mxu0 0.0
        %856 = vmatpush1.msra.mxu0 0.0
        %857 = vmatprep.subr.mxu0 0.0
        %858 = vmatpush1.msra.mxu0 0.0
        %859 = vmatprep.subr.mxu0 0.0
        %860 = vmatpush1.msra.mxu0 0.0
        %861 = vmatprep.subr.mxu0 0.0
        %862 = vmatpush1.msra.mxu0 0.0
        %863 = vmatprep.subr.mxu0 0.0
        %864 = vmatpush1.msra.mxu0 0.0
        %865 = vmatprep.subr.mxu0 0.0
        %866 = vmatpush1.msra.mxu0 0.0
        %867 = vmatprep.subr.mxu0 0.0
        %868 = vmatpush1.msra.mxu0 0.0
        %869 = vmatprep.subr.mxu0 0.0
        %870 = vmatpush1.msra.mxu0 0.0
        %871 = vmatprep.subr.mxu0 0.0
        %872 = vmatpush1.msra.mxu0 0.0
        %873 = vmatprep.subr.mxu0 0.0
        %874 = vmatpush1.msra.mxu0 0.0
        %875 = vmatprep.subr.mxu0 0.0
        %876 = vmatpush1.msra.mxu0 0.0
        %877 = vmatprep.subr.mxu0 0.0
        %878 = vmatpush1.msra.mxu0 0.0
        %879 = vmatprep.subr.mxu0 0.0
        %880 = vmatpush1.msra.mxu0 0.0
        %881 = vmatprep.subr.mxu0 0.0
        %882 = vmatpush1.msra.mxu0 0.0
        %883 = vmatprep.subr.mxu0 0.0
        %884 = vmatpush1.msra.mxu0 0.0
        %885 = vmatprep.mubr.f32.mxu0 0.0
        %886 = vmatmul.mubr.f32.gmra.mrb[0].mxu0 %v816
        %v887 = vpop.f32.mrb[0].mxu0
        %v888 = vadd.f32 %v813, %v887
        %v889 = vpop.f32.mrb[0].mxu0
        %890 = vmatprep.mubr.f32.mxu0 0.0
        %891 = vmatmul.mubr.f32.gmra.mrb[0].mxu0 %v819
        %v892 = vpop.f32.mrb[0].mxu0
        %v893 = vadd.f32 %v813, %v892
        %v894 = vpop.f32.mrb[0].mxu0
        %895 = vdwg.mxu0
        %v896 = vmul.f32 %v888, 0.35355338
        %v897 = vmul.f32 %v893, 0.35355338
        %v900 = vlaneseq
        %v901 = vshrl.u32 %v900, 7
        %v902 = vsub.s32 0, %v901
        %v903 = vrot.slane %v756, %v902
        %v904 = vlaneseq
        %v905 = vshrl.u32 %v904, 7
        %v906 = vsub.s32 0, %v905
        %v907 = vrot.slane %v757, %v906
        %911 = vrot.lane.b32.xlu0 %v888, 96
        %v912 = vpop.permute.xlu0 %911
        %vm913 = vcmask 64512
        %v915 = vsel %vm913, %v896, 0
        %v917 = vsel %vm913, %v912, 0
        %919 = vmatprep.subr.mxu0 0.0
        %920 = vmatpush1.xpose.msra.mxu0 %v917
        %921 = vmatprep.subr.mxu0 0.0
        %922 = vmatpush1.xpose.msra.mxu0 0.0
        %923 = vmatprep.subr.mxu0 0.0
        %924 = vmatpush1.xpose.msra.mxu0 0.0
        %925 = vmatprep.subr.mxu0 0.0
        %926 = vmatpush1.xpose.msra.mxu0 0.0
        %927 = vmatprep.subr.mxu0 0.0
        %928 = vmatpush1.xpose.msra.mxu0 0.0
        %929 = vmatprep.subr.mxu0 0.0
        %930 = vmatpush1.xpose.msra.mxu0 0.0
        %931 = vmatprep.subr.mxu0 0.0
        %932 = vmatpush1.xpose.msra.mxu0 0.0
        %933 = vmatprep.subr.mxu0 0.0
        %934 = vmatpush1.xpose.msra.mxu0 0.0
        %935 = vmatprep.subr.mxu0 0.0
        %936 = vmatpush1.xpose.msra.mxu0 0.0
        %937 = vmatprep.subr.mxu0 0.0
        %938 = vmatpush1.xpose.msra.mxu0 0.0
        %939 = vmatprep.subr.mxu0 0.0
        %940 = vmatpush1.xpose.msra.mxu0 0.0
        %941 = vmatprep.subr.mxu0 0.0
        %942 = vmatpush1.xpose.msra.mxu0 0.0
        %943 = vmatprep.subr.mxu0 0.0
        %944 = vmatpush1.xpose.msra.mxu0 0.0
        %945 = vmatprep.subr.mxu0 0.0
        %946 = vmatpush1.xpose.msra.mxu0 0.0
        %947 = vmatprep.subr.mxu0 0.0
        %948 = vmatpush1.xpose.msra.mxu0 0.0
        %949 = vmatprep.subr.mxu0 0.0
        %950 = vmatpush1.xpose.msra.mxu0 0.0
        %951 = vmatprep.subr.mxu0 0.0
        %952 = vmatpush1.xpose.msra.mxu0 0.0
        %953 = vmatprep.subr.mxu0 0.0
        %954 = vmatpush1.xpose.msra.mxu0 0.0
        %955 = vmatprep.subr.mxu0 0.0
        %956 = vmatpush1.xpose.msra.mxu0 0.0
        %957 = vmatprep.subr.mxu0 0.0
        %958 = vmatpush1.xpose.msra.mxu0 0.0
        %959 = vmatprep.subr.mxu0 0.0
        %960 = vmatpush1.xpose.msra.mxu0 0.0
        %961 = vmatprep.subr.mxu0 0.0
        %962 = vmatpush1.xpose.msra.mxu0 0.0
        %963 = vmatprep.subr.mxu0 0.0
        %964 = vmatpush1.xpose.msra.mxu0 0.0
        %965 = vmatprep.subr.mxu0 0.0
        %966 = vmatpush1.xpose.msra.mxu0 0.0
        %967 = vmatprep.subr.mxu0 0.0
        %968 = vmatpush1.xpose.msra.mxu0 0.0
        %969 = vmatprep.subr.mxu0 0.0
        %970 = vmatpush1.xpose.msra.mxu0 0.0
        %971 = vmatprep.subr.mxu0 0.0
        %972 = vmatpush1.xpose.msra.mxu0 0.0
        %973 = vmatprep.subr.mxu0 0.0
        %974 = vmatpush1.xpose.msra.mxu0 0.0
        %975 = vmatprep.subr.mxu0 0.0
        %976 = vmatpush1.xpose.msra.mxu0 0.0
        %977 = vmatprep.subr.mxu0 0.0
        %978 = vmatpush1.xpose.msra.mxu0 0.0
        %979 = vmatprep.subr.mxu0 0.0
        %980 = vmatpush1.xpose.msra.mxu0 0.0
        %981 = vmatprep.subr.mxu0 0.0
        %982 = vmatpush1.xpose.msra.mxu0 0.0
        %983 = vmatprep.mubr.f32.mxu0 0.0
        %984 = vmatmul.mubr.f32.gmra.mrb[0].mxu0 %v915
        %v985 = vpop.f32.mrb[0].mxu0
        %v986 = vadd.f32 %v903, %v985
        %v987 = vpop.f32.mrb[0].mxu0
        %988 = vdwg.mxu0
        %990 = vrot.lane.b32.xlu0 %v893, 96
        %v991 = vpop.permute.xlu0 %990
        %v993 = vsel %vm913, %v897, 0
        %v995 = vsel %vm913, %v991, 0
        %997 = vmatprep.subr.mxu0 0.0
        %998 = vmatpush1.xpose.msra.mxu0 %v995
        %999 = vmatprep.subr.mxu0 0.0
        %1000 = vmatpush1.xpose.msra.mxu0 0.0
        %1001 = vmatprep.subr.mxu0 0.0
        %1002 = vmatpush1.xpose.msra.mxu0 0.0
        %1003 = vmatprep.subr.mxu0 0.0
        %1004 = vmatpush1.xpose.msra.mxu0 0.0
        %1005 = vmatprep.subr.mxu0 0.0
        %1006 = vmatpush1.xpose.msra.mxu0 0.0
        %1007 = vmatprep.subr.mxu0 0.0
        %1008 = vmatpush1.xpose.msra.mxu0 0.0
        %1009 = vmatprep.subr.mxu0 0.0
        %1010 = vmatpush1.xpose.msra.mxu0 0.0
        %1011 = vmatprep.subr.mxu0 0.0
        %1012 = vmatpush1.xpose.msra.mxu0 0.0
        %1013 = vmatprep.subr.mxu0 0.0
        %1014 = vmatpush1.xpose.msra.mxu0 0.0
        %1015 = vmatprep.subr.mxu0 0.0
        %1016 = vmatpush1.xpose.msra.mxu0 0.0
        %1017 = vmatprep.subr.mxu0 0.0
        %1018 = vmatpush1.xpose.msra.mxu0 0.0
        %1019 = vmatprep.subr.mxu0 0.0
        %1020 = vmatpush1.xpose.msra.mxu0 0.0
        %1021 = vmatprep.subr.mxu0 0.0
        %1022 = vmatpush1.xpose.msra.mxu0 0.0
        %1023 = vmatprep.subr.mxu0 0.0
        %1024 = vmatpush1.xpose.msra.mxu0 0.0
        %1025 = vmatprep.subr.mxu0 0.0
        %1026 = vmatpush1.xpose.msra.mxu0 0.0
        %1027 = vmatprep.subr.mxu0 0.0
        %1028 = vmatpush1.xpose.msra.mxu0 0.0
        %1029 = vmatprep.subr.mxu0 0.0
        %1030 = vmatpush1.xpose.msra.mxu0 0.0
        %1031 = vmatprep.subr.mxu0 0.0
        %1032 = vmatpush1.xpose.msra.mxu0 0.0
        %1033 = vmatprep.subr.mxu0 0.0
        %1034 = vmatpush1.xpose.msra.mxu0 0.0
        %1035 = vmatprep.subr.mxu0 0.0
        %1036 = vmatpush1.xpose.msra.mxu0 0.0
        %1037 = vmatprep.subr.mxu0 0.0
        %1038 = vmatpush1.xpose.msra.mxu0 0.0
        %1039 = vmatprep.subr.mxu0 0.0
        %1040 = vmatpush1.xpose.msra.mxu0 0.0
        %1041 = vmatprep.subr.mxu0 0.0
        %1042 = vmatpush1.xpose.msra.mxu0 0.0
        %1043 = vmatprep.subr.mxu0 0.0
        %1044 = vmatpush1.xpose.msra.mxu0 0.0
        %1045 = vmatprep.subr.mxu0 0.0
        %1046 = vmatpush1.xpose.msra.mxu0 0.0
        %1047 = vmatprep.subr.mxu0 0.0
        %1048 = vmatpush1.xpose.msra.mxu0 0.0
        %1049 = vmatprep.subr.mxu0 0.0
        %1050 = vmatpush1.xpose.msra.mxu0 0.0
        %1051 = vmatprep.subr.mxu0 0.0
        %1052 = vmatpush1.xpose.msra.mxu0 0.0
        %1053 = vmatprep.subr.mxu0 0.0
        %1054 = vmatpush1.xpose.msra.mxu0 0.0
        %1055 = vmatprep.subr.mxu0 0.0
        %1056 = vmatpush1.xpose.msra.mxu0 0.0
        %1057 = vmatprep.subr.mxu0 0.0
        %1058 = vmatpush1.xpose.msra.mxu0 0.0
        %1059 = vmatprep.subr.mxu0 0.0
        %1060 = vmatpush1.xpose.msra.mxu0 0.0
        %1061 = vmatprep.mubr.f32.mxu0 0.0
        %1062 = vmatmul.mubr.f32.gmra.mrb[0].mxu0 %v993
        %v1063 = vpop.f32.mrb[0].mxu0
        %v1064 = vadd.f32 %v907, %v1063
        %v1065 = vpop.f32.mrb[0].mxu0
        %1066 = vdwg.mxu0
        %v1067 = vsel %vm913, %v986, -inf
        %1068 = vmax.xlane.f32.xlu0 %v1067
        %v1069 = vpop.xlane.xlu0 %1068
        %v1070 = vsel %vm913, %v1064, -inf
        %1071 = vmax.xlane.f32.xlu0 %v1070
        %v1072 = vpop.xlane.xlu0 %1071
        %v1073 = vsub.f32 %v986, %v1069
        %v1074 = vsub.f32 %v1064, %v1072
        %v1075 = vmul.f32 %v1073, 1.442695
        %v1076 = vpow.pop %v1075
        %v1077 = vmul.f32 %v1074, 1.442695
        %v1078 = vpow.pop %v1077
        %v1079 = vsel %vm913, %v1076, 0.0
        %1080 = vadd.xlane.f32.xlu0 %v1079
        %v1081 = vpop.xlane.xlu0 %1080
        %v1082 = vsel %vm913, %v1078, 0.0
        %1083 = vadd.xlane.f32.xlu0 %v1082
        %v1084 = vpop.xlane.xlu0 %1083
        %v1085 = vrcp.pop %v1081
        %v1086 = vrcp.pop %v1084
        %v1087 = vmul.f32 %v1076, %v1085
        %v1088 = vmul.f32 %v1078, %v1086
        %1089 = vrot.lane.b32.xlu0 %v888, 64
        %v1090 = vpop.permute.xlu0 %1089
        %v1093 = vsel %vm913, %v1087, 0
        %1095 = vmatprep.subr.mxu0 0.0
        %1096 = vmatpush1.msra.mxu0 %v1090
        %1097 = vmatprep.subr.mxu0 0.0
        %1098 = vmatpush1.msra.mxu0 0.0
        %1099 = vmatprep.subr.mxu0 0.0
        %1100 = vmatpush1.msra.mxu0 0.0
        %1101 = vmatprep.subr.mxu0 0.0
        %1102 = vmatpush1.msra.mxu0 0.0
        %1103 = vmatprep.subr.mxu0 0.0
        %1104 = vmatpush1.msra.mxu0 0.0
        %1105 = vmatprep.subr.mxu0 0.0
        %1106 = vmatpush1.msra.mxu0 0.0
        %1107 = vmatprep.subr.mxu0 0.0
        %1108 = vmatpush1.msra.mxu0 0.0
        %1109 = vmatprep.subr.mxu0 0.0
        %1110 = vmatpush1.msra.mxu0 0.0
        %1111 = vmatprep.subr.mxu0 0.0
        %1112 = vmatpush1.msra.mxu0 0.0
        %1113 = vmatprep.subr.mxu0 0.0
        %1114 = vmatpush1.msra.mxu0 0.0
        %1115 = vmatprep.subr.mxu0 0.0
        %1116 = vmatpush1.msra.mxu0 0.0
        %1117 = vmatprep.subr.mxu0 0.0
        %1118 = vmatpush1.msra.mxu0 0.0
        %1119 = vmatprep.subr.mxu0 0.0
        %1120 = vmatpush1.msra.mxu0 0.0
        %1121 = vmatprep.subr.mxu0 0.0
        %1122 = vmatpush1.msra.mxu0 0.0
        %1123 = vmatprep.subr.mxu0 0.0
        %1124 = vmatpush1.msra.mxu0 0.0
        %1125 = vmatprep.subr.mxu0 0.0
        %1126 = vmatpush1.msra.mxu0 0.0
        %1127 = vmatprep.subr.mxu0 0.0
        %1128 = vmatpush1.msra.mxu0 0.0
        %1129 = vmatprep.subr.mxu0 0.0
        %1130 = vmatpush1.msra.mxu0 0.0
        %1131 = vmatprep.subr.mxu0 0.0
        %1132 = vmatpush1.msra.mxu0 0.0
        %1133 = vmatprep.subr.mxu0 0.0
        %1134 = vmatpush1.msra.mxu0 0.0
        %1135 = vmatprep.subr.mxu0 0.0
        %1136 = vmatpush1.msra.mxu0 0.0
        %1137 = vmatprep.subr.mxu0 0.0
        %1138 = vmatpush1.msra.mxu0 0.0
        %1139 = vmatprep.subr.mxu0 0.0
        %1140 = vmatpush1.msra.mxu0 0.0
        %1141 = vmatprep.subr.mxu0 0.0
        %1142 = vmatpush1.msra.mxu0 0.0
        %1143 = vmatprep.subr.mxu0 0.0
        %1144 = vmatpush1.msra.mxu0 0.0
        %1145 = vmatprep.subr.mxu0 0.0
        %1146 = vmatpush1.msra.mxu0 0.0
        %1147 = vmatprep.subr.mxu0 0.0
        %1148 = vmatpush1.msra.mxu0 0.0
        %1149 = vmatprep.subr.mxu0 0.0
        %1150 = vmatpush1.msra.mxu0 0.0
        %1151 = vmatprep.subr.mxu0 0.0
        %1152 = vmatpush1.msra.mxu0 0.0
        %1153 = vmatprep.subr.mxu0 0.0
        %1154 = vmatpush1.msra.mxu0 0.0
        %1155 = vmatprep.subr.mxu0 0.0
        %1156 = vmatpush1.msra.mxu0 0.0
        %1157 = vmatprep.subr.mxu0 0.0
        %1158 = vmatpush1.msra.mxu0 0.0
        %1159 = vmatprep.mubr.f32.mxu0 0.0
        %1160 = vmatmul.mubr.f32.gmra.mrb[0].mxu0 %v1093
        %v1161 = vpop.f32.mrb[0].mxu0
        %v1162 = vadd.f32 0.0, %v1161
        %v1163 = vpop.f32.mrb[0].mxu0
        %1164 = vdwg.mxu0
        %1165 = vrot.lane.b32.xlu0 %v893, 64
        %v1166 = vpop.permute.xlu0 %1165
        %v1169 = vsel %vm913, %v1088, 0
        %1171 = vmatprep.subr.mxu0 0.0
        %1172 = vmatpush1.msra.mxu0 %v1166
        %1173 = vmatprep.subr.mxu0 0.0
        %1174 = vmatpush1.msra.mxu0 0.0
        %1175 = vmatprep.subr.mxu0 0.0
        %1176 = vmatpush1.msra.mxu0 0.0
        %1177 = vmatprep.subr.mxu0 0.0
        %1178 = vmatpush1.msra.mxu0 0.0
        %1179 = vmatprep.subr.mxu0 0.0
        %1180 = vmatpush1.msra.mxu0 0.0
        %1181 = vmatprep.subr.mxu0 0.0
        %1182 = vmatpush1.msra.mxu0 0.0
        %1183 = vmatprep.subr.mxu0 0.0
        %1184 = vmatpush1.msra.mxu0 0.0
        %1185 = vmatprep.subr.mxu0 0.0
        %1186 = vmatpush1.msra.mxu0 0.0
        %1187 = vmatprep.subr.mxu0 0.0
        %1188 = vmatpush1.msra.mxu0 0.0
        %1189 = vmatprep.subr.mxu0 0.0
        %1190 = vmatpush1.msra.mxu0 0.0
        %1191 = vmatprep.subr.mxu0 0.0
        %1192 = vmatpush1.msra.mxu0 0.0
        %1193 = vmatprep.subr.mxu0 0.0
        %1194 = vmatpush1.msra.mxu0 0.0
        %1195 = vmatprep.subr.mxu0 0.0
        %1196 = vmatpush1.msra.mxu0 0.0
        %1197 = vmatprep.subr.mxu0 0.0
        %1198 = vmatpush1.msra.mxu0 0.0
        %1199 = vmatprep.subr.mxu0 0.0
        %1200 = vmatpush1.msra.mxu0 0.0
        %1201 = vmatprep.subr.mxu0 0.0
        %1202 = vmatpush1.msra.mxu0 0.0
        %1203 = vmatprep.subr.mxu0 0.0
        %1204 = vmatpush1.msra.mxu0 0.0
        %1205 = vmatprep.subr.mxu0 0.0
        %1206 = vmatpush1.msra.mxu0 0.0
        %1207 = vmatprep.subr.mxu0 0.0
        %1208 = vmatpush1.msra.mxu0 0.0
        %1209 = vmatprep.subr.mxu0 0.0
        %1210 = vmatpush1.msra.mxu0 0.0
        %1211 = vmatprep.subr.mxu0 0.0
        %1212 = vmatpush1.msra.mxu0 0.0
        %1213 = vmatprep.subr.mxu0 0.0
        %1214 = vmatpush1.msra.mxu0 0.0
        %1215 = vmatprep.subr.mxu0 0.0
        %1216 = vmatpush1.msra.mxu0 0.0
        %1217 = vmatprep.subr.mxu0 0.0
        %1218 = vmatpush1.msra.mxu0 0.0
        %1219 = vmatprep.subr.mxu0 0.0
        %1220 = vmatpush1.msra.mxu0 0.0
        %1221 = vmatprep.subr.mxu0 0.0
        %1222 = vmatpush1.msra.mxu0 0.0
        %1223 = vmatprep.subr.mxu0 0.0
        %1224 = vmatpush1.msra.mxu0 0.0
        %1225 = vmatprep.subr.mxu0 0.0
        %1226 = vmatpush1.msra.mxu0 0.0
        %1227 = vmatprep.subr.mxu0 0.0
        %1228 = vmatpush1.msra.mxu0 0.0
        %1229 = vmatprep.subr.mxu0 0.0
        %1230 = vmatpush1.msra.mxu0 0.0
        %1231 = vmatprep.subr.mxu0 0.0
        %1232 = vmatpush1.msra.mxu0 0.0
        %1233 = vmatprep.subr.mxu0 0.0
        %1234 = vmatpush1.msra.mxu0 0.0
        %1235 = vmatprep.mubr.f32.mxu0 0.0
        %1236 = vmatmul.mubr.f32.gmra.mrb[0].mxu0 %v1169
        %v1237 = vpop.f32.mrb[0].mxu0
        %v1238 = vadd.f32 0.0, %v1237
        %v1239 = vpop.f32.mrb[0].mxu0
        %1240 = vdwg.mxu0
        %1241 = vrot.lane.b32.xlu0 %v896, 120
        %v1242 = vpop.permute.xlu0 %1241
        %1243 = vrot.lane.b32.xlu0 %v888, 88
        %v1244 = vpop.permute.xlu0 %1243
        %v1245 = vsel %vm913, %v1242, 0
        %v1247 = vsel %vm913, %v1244, 0
        %1249 = vmatprep.subr.mxu0 0.0
        %1250 = vmatpush1.xpose.msra.mxu0 %v1247
        %1251 = vmatprep.subr.mxu0 0.0
        %1252 = vmatpush1.xpose.msra.mxu0 0.0
        %1253 = vmatprep.subr.mxu0 0.0
        %1254 = vmatpush1.xpose.msra.mxu0 0.0
        %1255 = vmatprep.subr.mxu0 0.0
        %1256 = vmatpush1.xpose.msra.mxu0 0.0
        %1257 = vmatprep.subr.mxu0 0.0
        %1258 = vmatpush1.xpose.msra.mxu0 0.0
        %1259 = vmatprep.subr.mxu0 0.0
        %1260 = vmatpush1.xpose.msra.mxu0 0.0
        %1261 = vmatprep.subr.mxu0 0.0
        %1262 = vmatpush1.xpose.msra.mxu0 0.0
        %1263 = vmatprep.subr.mxu0 0.0
        %1264 = vmatpush1.xpose.msra.mxu0 0.0
        %1265 = vmatprep.subr.mxu0 0.0
        %1266 = vmatpush1.xpose.msra.mxu0 0.0
        %1267 = vmatprep.subr.mxu0 0.0
        %1268 = vmatpush1.xpose.msra.mxu0 0.0
        %1269 = vmatprep.subr.mxu0 0.0
        %1270 = vmatpush1.xpose.msra.mxu0 0.0
        %1271 = vmatprep.subr.mxu0 0.0
        %1272 = vmatpush1.xpose.msra.mxu0 0.0
        %1273 = vmatprep.subr.mxu0 0.0
        %1274 = vmatpush1.xpose.msra.mxu0 0.0
        %1275 = vmatprep.subr.mxu0 0.0
        %1276 = vmatpush1.xpose.msra.mxu0 0.0
        %1277 = vmatprep.subr.mxu0 0.0
        %1278 = vmatpush1.xpose.msra.mxu0 0.0
        %1279 = vmatprep.subr.mxu0 0.0
        %1280 = vmatpush1.xpose.msra.mxu0 0.0
        %1281 = vmatprep.subr.mxu0 0.0
        %1282 = vmatpush1.xpose.msra.mxu0 0.0
        %1283 = vmatprep.subr.mxu0 0.0
        %1284 = vmatpush1.xpose.msra.mxu0 0.0
        %1285 = vmatprep.subr.mxu0 0.0
        %1286 = vmatpush1.xpose.msra.mxu0 0.0
        %1287 = vmatprep.subr.mxu0 0.0
        %1288 = vmatpush1.xpose.msra.mxu0 0.0
        %1289 = vmatprep.subr.mxu0 0.0
        %1290 = vmatpush1.xpose.msra.mxu0 0.0
        %1291 = vmatprep.subr.mxu0 0.0
        %1292 = vmatpush1.xpose.msra.mxu0 0.0
        %1293 = vmatprep.subr.mxu0 0.0
        %1294 = vmatpush1.xpose.msra.mxu0 0.0
        %1295 = vmatprep.subr.mxu0 0.0
        %1296 = vmatpush1.xpose.msra.mxu0 0.0
        %1297 = vmatprep.subr.mxu0 0.0
        %1298 = vmatpush1.xpose.msra.mxu0 0.0
        %1299 = vmatprep.subr.mxu0 0.0
        %1300 = vmatpush1.xpose.msra.mxu0 0.0
        %1301 = vmatprep.subr.mxu0 0.0
        %1302 = vmatpush1.xpose.msra.mxu0 0.0
        %1303 = vmatprep.subr.mxu0 0.0
        %1304 = vmatpush1.xpose.msra.mxu0 0.0
        %1305 = vmatprep.subr.mxu0 0.0
        %1306 = vmatpush1.xpose.msra.mxu0 0.0
        %1307 = vmatprep.subr.mxu0 0.0
        %1308 = vmatpush1.xpose.msra.mxu0 0.0
        %1309 = vmatprep.subr.mxu0 0.0
        %1310 = vmatpush1.xpose.msra.mxu0 0.0
        %1311 = vmatprep.subr.mxu0 0.0
        %1312 = vmatpush1.xpose.msra.mxu0 0.0
        %1313 = vmatprep.mubr.f32.mxu0 0.0
        %1314 = vmatmul.mubr.f32.gmra.mrb[0].mxu0 %v1245
        %v1315 = vpop.f32.mrb[0].mxu0
        %v1316 = vadd.f32 %v903, %v1315
        %v1317 = vpop.f32.mrb[0].mxu0
        %1318 = vdwg.mxu0
        %1319 = vrot.lane.b32.xlu0 %v897, 120
        %v1320 = vpop.permute.xlu0 %1319
        %1321 = vrot.lane.b32.xlu0 %v893, 88
        %v1322 = vpop.permute.xlu0 %1321
        %v1323 = vsel %vm913, %v1320, 0
        %v1325 = vsel %vm913, %v1322, 0
        %1327 = vmatprep.subr.mxu0 0.0
        %1328 = vmatpush1.xpose.msra.mxu0 %v1325
        %1329 = vmatprep.subr.mxu0 0.0
        %1330 = vmatpush1.xpose.msra.mxu0 0.0
        %1331 = vmatprep.subr.mxu0 0.0
        %1332 = vmatpush1.xpose.msra.mxu0 0.0
        %1333 = vmatprep.subr.mxu0 0.0
        %1334 = vmatpush1.xpose.msra.mxu0 0.0
        %1335 = vmatprep.subr.mxu0 0.0
        %1336 = vmatpush1.xpose.msra.mxu0 0.0
        %1337 = vmatprep.subr.mxu0 0.0
        %1338 = vmatpush1.xpose.msra.mxu0 0.0
        %1339 = vmatprep.subr.mxu0 0.0
        %1340 = vmatpush1.xpose.msra.mxu0 0.0
        %1341 = vmatprep.subr.mxu0 0.0
        %1342 = vmatpush1.xpose.msra.mxu0 0.0
        %1343 = vmatprep.subr.mxu0 0.0
        %1344 = vmatpush1.xpose.msra.mxu0 0.0
        %1345 = vmatprep.subr.mxu0 0.0
        %1346 = vmatpush1.xpose.msra.mxu0 0.0
        %1347 = vmatprep.subr.mxu0 0.0
        %1348 = vmatpush1.xpose.msra.mxu0 0.0
        %1349 = vmatprep.subr.mxu0 0.0
        %1350 = vmatpush1.xpose.msra.mxu0 0.0
        %1351 = vmatprep.subr.mxu0 0.0
        %1352 = vmatpush1.xpose.msra.mxu0 0.0
        %1353 = vmatprep.subr.mxu0 0.0
        %1354 = vmatpush1.xpose.msra.mxu0 0.0
        %1355 = vmatprep.subr.mxu0 0.0
        %1356 = vmatpush1.xpose.msra.mxu0 0.0
        %1357 = vmatprep.subr.mxu0 0.0
        %1358 = vmatpush1.xpose.msra.mxu0 0.0
        %1359 = vmatprep.subr.mxu0 0.0
        %1360 = vmatpush1.xpose.msra.mxu0 0.0
        %1361 = vmatprep.subr.mxu0 0.0
        %1362 = vmatpush1.xpose.msra.mxu0 0.0
        %1363 = vmatprep.subr.mxu0 0.0
        %1364 = vmatpush1.xpose.msra.mxu0 0.0
        %1365 = vmatprep.subr.mxu0 0.0
        %1366 = vmatpush1.xpose.msra.mxu0 0.0
        %1367 = vmatprep.subr.mxu0 0.0
        %1368 = vmatpush1.xpose.msra.mxu0 0.0
        %1369 = vmatprep.subr.mxu0 0.0
        %1370 = vmatpush1.xpose.msra.mxu0 0.0
        %1371 = vmatprep.subr.mxu0 0.0
        %1372 = vmatpush1.xpose.msra.mxu0 0.0
        %1373 = vmatprep.subr.mxu0 0.0
        %1374 = vmatpush1.xpose.msra.mxu0 0.0
        %1375 = vmatprep.subr.mxu0 0.0
        %1376 = vmatpush1.xpose.msra.mxu0 0.0
        %1377 = vmatprep.subr.mxu0 0.0
        %1378 = vmatpush1.xpose.msra.mxu0 0.0
        %1379 = vmatprep.subr.mxu0 0.0
        %1380 = vmatpush1.xpose.msra.mxu0 0.0
        %1381 = vmatprep.subr.mxu0 0.0
        %1382 = vmatpush1.xpose.msra.mxu0 0.0
        %1383 = vmatprep.subr.mxu0 0.0
        %1384 = vmatpush1.xpose.msra.mxu0 0.0
        %1385 = vmatprep.subr.mxu0 0.0
        %1386 = vmatpush1.xpose.msra.mxu0 0.0
        %1387 = vmatprep.subr.mxu0 0.0
        %1388 = vmatpush1.xpose.msra.mxu0 0.0
        %1389 = vmatprep.subr.mxu0 0.0
        %1390 = vmatpush1.xpose.msra.mxu0 0.0
        %1391 = vmatprep.mubr.f32.mxu0 0.0
        %1392 = vmatmul.mubr.f32.gmra.mrb[0].mxu0 %v1323
        %v1393 = vpop.f32.mrb[0].mxu0
        %v1394 = vadd.f32 %v907, %v1393
        %v1395 = vpop.f32.mrb[0].mxu0
        %1396 = vdwg.mxu0
        %v1397 = vsel %vm913, %v1316, -inf
        %1398 = vmax.xlane.f32.xlu0 %v1397
        %v1399 = vpop.xlane.xlu0 %1398
        %v1400 = vsel %vm913, %v1394, -inf
        %1401 = vmax.xlane.f32.xlu0 %v1400
        %v1402 = vpop.xlane.xlu0 %1401
        %v1403 = vsub.f32 %v1316, %v1399
        %v1404 = vsub.f32 %v1394, %v1402
        %v1405 = vmul.f32 %v1403, 1.442695
        %v1406 = vpow.pop %v1405
        %v1407 = vmul.f32 %v1404, 1.442695
        %v1408 = vpow.pop %v1407
        %v1409 = vsel %vm913, %v1406, 0.0
        %1410 = vadd.xlane.f32.xlu0 %v1409
        %v1411 = vpop.xlane.xlu0 %1410
        %v1412 = vsel %vm913, %v1408, 0.0
        %1413 = vadd.xlane.f32.xlu0 %v1412
        %v1414 = vpop.xlane.xlu0 %1413
        %v1415 = vrcp.pop %v1411
        %v1416 = vrcp.pop %v1414
        %v1417 = vmul.f32 %v1406, %v1415
        %v1418 = vmul.f32 %v1408, %v1416
        %1419 = vrot.lane.b32.xlu0 %v888, 56
        %v1420 = vpop.permute.xlu0 %1419
        %v1423 = vsel %vm913, %v1417, 0
        %1425 = vmatprep.subr.mxu0 0.0
        %1426 = vmatpush1.msra.mxu0 %v1420
        %1427 = vmatprep.subr.mxu0 0.0
        %1428 = vmatpush1.msra.mxu0 0.0
        %1429 = vmatprep.subr.mxu0 0.0
        %1430 = vmatpush1.msra.mxu0 0.0
        %1431 = vmatprep.subr.mxu0 0.0
        %1432 = vmatpush1.msra.mxu0 0.0
        %1433 = vmatprep.subr.mxu0 0.0
        %1434 = vmatpush1.msra.mxu0 0.0
        %1435 = vmatprep.subr.mxu0 0.0
        %1436 = vmatpush1.msra.mxu0 0.0
        %1437 = vmatprep.subr.mxu0 0.0
        %1438 = vmatpush1.msra.mxu0 0.0
        %1439 = vmatprep.subr.mxu0 0.0
        %1440 = vmatpush1.msra.mxu0 0.0
        %1441 = vmatprep.subr.mxu0 0.0
        %1442 = vmatpush1.msra.mxu0 0.0
        %1443 = vmatprep.subr.mxu0 0.0
        %1444 = vmatpush1.msra.mxu0 0.0
        %1445 = vmatprep.subr.mxu0 0.0
        %1446 = vmatpush1.msra.mxu0 0.0
        %1447 = vmatprep.subr.mxu0 0.0
        %1448 = vmatpush1.msra.mxu0 0.0
        %1449 = vmatprep.subr.mxu0 0.0
        %1450 = vmatpush1.msra.mxu0 0.0
        %1451 = vmatprep.subr.mxu0 0.0
        %1452 = vmatpush1.msra.mxu0 0.0
        %1453 = vmatprep.subr.mxu0 0.0
        %1454 = vmatpush1.msra.mxu0 0.0
        %1455 = vmatprep.subr.mxu0 0.0
        %1456 = vmatpush1.msra.mxu0 0.0
        %1457 = vmatprep.subr.mxu0 0.0
        %1458 = vmatpush1.msra.mxu0 0.0
        %1459 = vmatprep.subr.mxu0 0.0
        %1460 = vmatpush1.msra.mxu0 0.0
        %1461 = vmatprep.subr.mxu0 0.0
        %1462 = vmatpush1.msra.mxu0 0.0
        %1463 = vmatprep.subr.mxu0 0.0
        %1464 = vmatpush1.msra.mxu0 0.0
        %1465 = vmatprep.subr.mxu0 0.0
        %1466 = vmatpush1.msra.mxu0 0.0
        %1467 = vmatprep.subr.mxu0 0.0
        %1468 = vmatpush1.msra.mxu0 0.0
        %1469 = vmatprep.subr.mxu0 0.0
        %1470 = vmatpush1.msra.mxu0 0.0
        %1471 = vmatprep.subr.mxu0 0.0
        %1472 = vmatpush1.msra.mxu0 0.0
        %1473 = vmatprep.subr.mxu0 0.0
        %1474 = vmatpush1.msra.mxu0 0.0
        %1475 = vmatprep.subr.mxu0 0.0
        %1476 = vmatpush1.msra.mxu0 0.0
        %1477 = vmatprep.subr.mxu0 0.0
        %1478 = vmatpush1.msra.mxu0 0.0
        %1479 = vmatprep.subr.mxu0 0.0
        %1480 = vmatpush1.msra.mxu0 0.0
        %1481 = vmatprep.subr.mxu0 0.0
        %1482 = vmatpush1.msra.mxu0 0.0
        %1483 = vmatprep.subr.mxu0 0.0
        %1484 = vmatpush1.msra.mxu0 0.0
        %1485 = vmatprep.subr.mxu0 0.0
        %1486 = vmatpush1.msra.mxu0 0.0
        %1487 = vmatprep.subr.mxu0 0.0
        %1488 = vmatpush1.msra.mxu0 0.0
        %1489 = vmatprep.mubr.f32.mxu0 0.0
        %1490 = vmatmul.mubr.f32.gmra.mrb[0].mxu0 %v1423
        %v1491 = vpop.f32.mrb[0].mxu0
        %v1492 = vadd.f32 0.0, %v1491
        %v1493 = vpop.f32.mrb[0].mxu0
        %1494 = vdwg.mxu0
        %1495 = vrot.lane.b32.xlu0 %v893, 56
        %v1496 = vpop.permute.xlu0 %1495
        %v1499 = vsel %vm913, %v1418, 0
        %1501 = vmatprep.subr.mxu0 0.0
        %1502 = vmatpush1.msra.mxu0 %v1496
        %1503 = vmatprep.subr.mxu0 0.0
        %1504 = vmatpush1.msra.mxu0 0.0
        %1505 = vmatprep.subr.mxu0 0.0
        %1506 = vmatpush1.msra.mxu0 0.0
        %1507 = vmatprep.subr.mxu0 0.0
        %1508 = vmatpush1.msra.mxu0 0.0
        %1509 = vmatprep.subr.mxu0 0.0
        %1510 = vmatpush1.msra.mxu0 0.0
        %1511 = vmatprep.subr.mxu0 0.0
        %1512 = vmatpush1.msra.mxu0 0.0
        %1513 = vmatprep.subr.mxu0 0.0
        %1514 = vmatpush1.msra.mxu0 0.0
        %1515 = vmatprep.subr.mxu0 0.0
        %1516 = vmatpush1.msra.mxu0 0.0
        %1517 = vmatprep.subr.mxu0 0.0
        %1518 = vmatpush1.msra.mxu0 0.0
        %1519 = vmatprep.subr.mxu0 0.0
        %1520 = vmatpush1.msra.mxu0 0.0
        %1521 = vmatprep.subr.mxu0 0.0
        %1522 = vmatpush1.msra.mxu0 0.0
        %1523 = vmatprep.subr.mxu0 0.0
        %1524 = vmatpush1.msra.mxu0 0.0
        %1525 = vmatprep.subr.mxu0 0.0
        %1526 = vmatpush1.msra.mxu0 0.0
        %1527 = vmatprep.subr.mxu0 0.0
        %1528 = vmatpush1.msra.mxu0 0.0
        %1529 = vmatprep.subr.mxu0 0.0
        %1530 = vmatpush1.msra.mxu0 0.0
        %1531 = vmatprep.subr.mxu0 0.0
        %1532 = vmatpush1.msra.mxu0 0.0
        %1533 = vmatprep.subr.mxu0 0.0
        %1534 = vmatpush1.msra.mxu0 0.0
        %1535 = vmatprep.subr.mxu0 0.0
        %1536 = vmatpush1.msra.mxu0 0.0
        %1537 = vmatprep.subr.mxu0 0.0
        %1538 = vmatpush1.msra.mxu0 0.0
        %1539 = vmatprep.subr.mxu0 0.0
        %1540 = vmatpush1.msra.mxu0 0.0
        %1541 = vmatprep.subr.mxu0 0.0
        %1542 = vmatpush1.msra.mxu0 0.0
        %1543 = vmatprep.subr.mxu0 0.0
        %1544 = vmatpush1.msra.mxu0 0.0
        %1545 = vmatprep.subr.mxu0 0.0
        %1546 = vmatpush1.msra.mxu0 0.0
        %1547 = vmatprep.subr.mxu0 0.0
        %1548 = vmatpush1.msra.mxu0 0.0
        %1549 = vmatprep.subr.mxu0 0.0
        %1550 = vmatpush1.msra.mxu0 0.0
        %1551 = vmatprep.subr.mxu0 0.0
        %1552 = vmatpush1.msra.mxu0 0.0
        %1553 = vmatprep.subr.mxu0 0.0
        %1554 = vmatpush1.msra.mxu0 0.0
        %1555 = vmatprep.subr.mxu0 0.0
        %1556 = vmatpush1.msra.mxu0 0.0
        %1557 = vmatprep.subr.mxu0 0.0
        %1558 = vmatpush1.msra.mxu0 0.0
        %1559 = vmatprep.subr.mxu0 0.0
        %1560 = vmatpush1.msra.mxu0 0.0
        %1561 = vmatprep.subr.mxu0 0.0
        %1562 = vmatpush1.msra.mxu0 0.0
        %1563 = vmatprep.subr.mxu0 0.0
        %1564 = vmatpush1.msra.mxu0 0.0
        %1565 = vmatprep.mubr.f32.mxu0 0.0
        %1566 = vmatmul.mubr.f32.gmra.mrb[0].mxu0 %v1499
        %v1567 = vpop.f32.mrb[0].mxu0
        %v1568 = vadd.f32 0.0, %v1567
        %v1569 = vpop.f32.mrb[0].mxu0
        %1570 = vdwg.mxu0
        %1571 = vrot.lane.b32.xlu0 %v896, 112
        %v1572 = vpop.permute.xlu0 %1571
        %1573 = vrot.lane.b32.xlu0 %v888, 80
        %v1574 = vpop.permute.xlu0 %1573
        %v1575 = vsel %vm913, %v1572, 0
        %v1577 = vsel %vm913, %v1574, 0
        %1579 = vmatprep.subr.mxu0 0.0
        %1580 = vmatpush1.xpose.msra.mxu0 %v1577
        %1581 = vmatprep.subr.mxu0 0.0
        %1582 = vmatpush1.xpose.msra.mxu0 0.0
        %1583 = vmatprep.subr.mxu0 0.0
        %1584 = vmatpush1.xpose.msra.mxu0 0.0
        %1585 = vmatprep.subr.mxu0 0.0
        %1586 = vmatpush1.xpose.msra.mxu0 0.0
        %1587 = vmatprep.subr.mxu0 0.0
        %1588 = vmatpush1.xpose.msra.mxu0 0.0
        %1589 = vmatprep.subr.mxu0 0.0
        %1590 = vmatpush1.xpose.msra.mxu0 0.0
        %1591 = vmatprep.subr.mxu0 0.0
        %1592 = vmatpush1.xpose.msra.mxu0 0.0
        %1593 = vmatprep.subr.mxu0 0.0
        %1594 = vmatpush1.xpose.msra.mxu0 0.0
        %1595 = vmatprep.subr.mxu0 0.0
        %1596 = vmatpush1.xpose.msra.mxu0 0.0
        %1597 = vmatprep.subr.mxu0 0.0
        %1598 = vmatpush1.xpose.msra.mxu0 0.0
        %1599 = vmatprep.subr.mxu0 0.0
        %1600 = vmatpush1.xpose.msra.mxu0 0.0
        %1601 = vmatprep.subr.mxu0 0.0
        %1602 = vmatpush1.xpose.msra.mxu0 0.0
        %1603 = vmatprep.subr.mxu0 0.0
        %1604 = vmatpush1.xpose.msra.mxu0 0.0
        %1605 = vmatprep.subr.mxu0 0.0
        %1606 = vmatpush1.xpose.msra.mxu0 0.0
        %1607 = vmatprep.subr.mxu0 0.0
        %1608 = vmatpush1.xpose.msra.mxu0 0.0
        %1609 = vmatprep.subr.mxu0 0.0
        %1610 = vmatpush1.xpose.msra.mxu0 0.0
        %1611 = vmatprep.subr.mxu0 0.0
        %1612 = vmatpush1.xpose.msra.mxu0 0.0
        %1613 = vmatprep.subr.mxu0 0.0
        %1614 = vmatpush1.xpose.msra.mxu0 0.0
        %1615 = vmatprep.subr.mxu0 0.0
        %1616 = vmatpush1.xpose.msra.mxu0 0.0
        %1617 = vmatprep.subr.mxu0 0.0
        %1618 = vmatpush1.xpose.msra.mxu0 0.0
        %1619 = vmatprep.subr.mxu0 0.0
        %1620 = vmatpush1.xpose.msra.mxu0 0.0
        %1621 = vmatprep.subr.mxu0 0.0
        %1622 = vmatpush1.xpose.msra.mxu0 0.0
        %1623 = vmatprep.subr.mxu0 0.0
        %1624 = vmatpush1.xpose.msra.mxu0 0.0
        %1625 = vmatprep.subr.mxu0 0.0
        %1626 = vmatpush1.xpose.msra.mxu0 0.0
        %1627 = vmatprep.subr.mxu0 0.0
        %1628 = vmatpush1.xpose.msra.mxu0 0.0
        %1629 = vmatprep.subr.mxu0 0.0
        %1630 = vmatpush1.xpose.msra.mxu0 0.0
        %1631 = vmatprep.subr.mxu0 0.0
        %1632 = vmatpush1.xpose.msra.mxu0 0.0
        %1633 = vmatprep.subr.mxu0 0.0
        %1634 = vmatpush1.xpose.msra.mxu0 0.0
        %1635 = vmatprep.subr.mxu0 0.0
        %1636 = vmatpush1.xpose.msra.mxu0 0.0
        %1637 = vmatprep.subr.mxu0 0.0
        %1638 = vmatpush1.xpose.msra.mxu0 0.0
        %1639 = vmatprep.subr.mxu0 0.0
        %1640 = vmatpush1.xpose.msra.mxu0 0.0
        %1641 = vmatprep.subr.mxu0 0.0
        %1642 = vmatpush1.xpose.msra.mxu0 0.0
        %1643 = vmatprep.mubr.f32.mxu0 0.0
        %1644 = vmatmul.mubr.f32.gmra.mrb[0].mxu0 %v1575
        %v1645 = vpop.f32.mrb[0].mxu0
        %v1646 = vadd.f32 %v903, %v1645
        %v1647 = vpop.f32.mrb[0].mxu0
        %1648 = vdwg.mxu0
        %1649 = vrot.lane.b32.xlu0 %v897, 112
        %v1650 = vpop.permute.xlu0 %1649
        %1651 = vrot.lane.b32.xlu0 %v893, 80
        %v1652 = vpop.permute.xlu0 %1651
        %v1653 = vsel %vm913, %v1650, 0
        %v1655 = vsel %vm913, %v1652, 0
        %1657 = vmatprep.subr.mxu0 0.0
        %1658 = vmatpush1.xpose.msra.mxu0 %v1655
        %1659 = vmatprep.subr.mxu0 0.0
        %1660 = vmatpush1.xpose.msra.mxu0 0.0
        %1661 = vmatprep.subr.mxu0 0.0
        %1662 = vmatpush1.xpose.msra.mxu0 0.0
        %1663 = vmatprep.subr.mxu0 0.0
        %1664 = vmatpush1.xpose.msra.mxu0 0.0
        %1665 = vmatprep.subr.mxu0 0.0
        %1666 = vmatpush1.xpose.msra.mxu0 0.0
        %1667 = vmatprep.subr.mxu0 0.0
        %1668 = vmatpush1.xpose.msra.mxu0 0.0
        %1669 = vmatprep.subr.mxu0 0.0
        %1670 = vmatpush1.xpose.msra.mxu0 0.0
        %1671 = vmatprep.subr.mxu0 0.0
        %1672 = vmatpush1.xpose.msra.mxu0 0.0
        %1673 = vmatprep.subr.mxu0 0.0
        %1674 = vmatpush1.xpose.msra.mxu0 0.0
        %1675 = vmatprep.subr.mxu0 0.0
        %1676 = vmatpush1.xpose.msra.mxu0 0.0
        %1677 = vmatprep.subr.mxu0 0.0
        %1678 = vmatpush1.xpose.msra.mxu0 0.0
        %1679 = vmatprep.subr.mxu0 0.0
        %1680 = vmatpush1.xpose.msra.mxu0 0.0
        %1681 = vmatprep.subr.mxu0 0.0
        %1682 = vmatpush1.xpose.msra.mxu0 0.0
        %1683 = vmatprep.subr.mxu0 0.0
        %1684 = vmatpush1.xpose.msra.mxu0 0.0
        %1685 = vmatprep.subr.mxu0 0.0
        %1686 = vmatpush1.xpose.msra.mxu0 0.0
        %1687 = vmatprep.subr.mxu0 0.0
        %1688 = vmatpush1.xpose.msra.mxu0 0.0
        %1689 = vmatprep.subr.mxu0 0.0
        %1690 = vmatpush1.xpose.msra.mxu0 0.0
        %1691 = vmatprep.subr.mxu0 0.0
        %1692 = vmatpush1.xpose.msra.mxu0 0.0
        %1693 = vmatprep.subr.mxu0 0.0
        %1694 = vmatpush1.xpose.msra.mxu0 0.0
        %1695 = vmatprep.subr.mxu0 0.0
        %1696 = vmatpush1.xpose.msra.mxu0 0.0
        %1697 = vmatprep.subr.mxu0 0.0
        %1698 = vmatpush1.xpose.msra.mxu0 0.0
        %1699 = vmatprep.subr.mxu0 0.0
        %1700 = vmatpush1.xpose.msra.mxu0 0.0
        %1701 = vmatprep.subr.mxu0 0.0
        %1702 = vmatpush1.xpose.msra.mxu0 0.0
        %1703 = vmatprep.subr.mxu0 0.0
        %1704 = vmatpush1.xpose.msra.mxu0 0.0
        %1705 = vmatprep.subr.mxu0 0.0
        %1706 = vmatpush1.xpose.msra.mxu0 0.0
        %1707 = vmatprep.subr.mxu0 0.0
        %1708 = vmatpush1.xpose.msra.mxu0 0.0
        %1709 = vmatprep.subr.mxu0 0.0
        %1710 = vmatpush1.xpose.msra.mxu0 0.0
        %1711 = vmatprep.subr.mxu0 0.0
        %1712 = vmatpush1.xpose.msra.mxu0 0.0
        %1713 = vmatprep.subr.mxu0 0.0
        %1714 = vmatpush1.xpose.msra.mxu0 0.0
        %1715 = vmatprep.subr.mxu0 0.0
        %1716 = vmatpush1.xpose.msra.mxu0 0.0
        %1717 = vmatprep.subr.mxu0 0.0
        %1718 = vmatpush1.xpose.msra.mxu0 0.0
        %1719 = vmatprep.subr.mxu0 0.0
        %1720 = vmatpush1.xpose.msra.mxu0 0.0
        %1721 = vmatprep.mubr.f32.mxu0 0.0
        %1722 = vmatmul.mubr.f32.gmra.mrb[0].mxu0 %v1653
        %v1723 = vpop.f32.mrb[0].mxu0
        %v1724 = vadd.f32 %v907, %v1723
        %v1725 = vpop.f32.mrb[0].mxu0
        %1726 = vdwg.mxu0
        %v1727 = vsel %vm913, %v1646, -inf
        %1728 = vmax.xlane.f32.xlu0 %v1727
        %v1729 = vpop.xlane.xlu0 %1728
        %v1730 = vsel %vm913, %v1724, -inf
        %1731 = vmax.xlane.f32.xlu0 %v1730
        %v1732 = vpop.xlane.xlu0 %1731
        %v1733 = vsub.f32 %v1646, %v1729
        %v1734 = vsub.f32 %v1724, %v1732
        %v1735 = vmul.f32 %v1733, 1.442695
        %v1736 = vpow.pop %v1735
        %v1737 = vmul.f32 %v1734, 1.442695
        %v1738 = vpow.pop %v1737
        %v1739 = vsel %vm913, %v1736, 0.0
        %1740 = vadd.xlane.f32.xlu0 %v1739
        %v1741 = vpop.xlane.xlu0 %1740
        %v1742 = vsel %vm913, %v1738, 0.0
        %1743 = vadd.xlane.f32.xlu0 %v1742
        %v1744 = vpop.xlane.xlu0 %1743
        %v1745 = vrcp.pop %v1741
        %v1746 = vrcp.pop %v1744
        %v1747 = vmul.f32 %v1736, %v1745
        %v1748 = vmul.f32 %v1738, %v1746
        %1749 = vrot.lane.b32.xlu0 %v888, 48
        %v1750 = vpop.permute.xlu0 %1749
        %v1753 = vsel %vm913, %v1747, 0
        %1755 = vmatprep.subr.mxu0 0.0
        %1756 = vmatpush1.msra.mxu0 %v1750
        %1757 = vmatprep.subr.mxu0 0.0
        %1758 = vmatpush1.msra.mxu0 0.0
        %1759 = vmatprep.subr.mxu0 0.0
        %1760 = vmatpush1.msra.mxu0 0.0
        %1761 = vmatprep.subr.mxu0 0.0
        %1762 = vmatpush1.msra.mxu0 0.0
        %1763 = vmatprep.subr.mxu0 0.0
        %1764 = vmatpush1.msra.mxu0 0.0
        %1765 = vmatprep.subr.mxu0 0.0
        %1766 = vmatpush1.msra.mxu0 0.0
        %1767 = vmatprep.subr.mxu0 0.0
        %1768 = vmatpush1.msra.mxu0 0.0
        %1769 = vmatprep.subr.mxu0 0.0
        %1770 = vmatpush1.msra.mxu0 0.0
        %1771 = vmatprep.subr.mxu0 0.0
        %1772 = vmatpush1.msra.mxu0 0.0
        %1773 = vmatprep.subr.mxu0 0.0
        %1774 = vmatpush1.msra.mxu0 0.0
        %1775 = vmatprep.subr.mxu0 0.0
        %1776 = vmatpush1.msra.mxu0 0.0
        %1777 = vmatprep.subr.mxu0 0.0
        %1778 = vmatpush1.msra.mxu0 0.0
        %1779 = vmatprep.subr.mxu0 0.0
        %1780 = vmatpush1.msra.mxu0 0.0
        %1781 = vmatprep.subr.mxu0 0.0
        %1782 = vmatpush1.msra.mxu0 0.0
        %1783 = vmatprep.subr.mxu0 0.0
        %1784 = vmatpush1.msra.mxu0 0.0
        %1785 = vmatprep.subr.mxu0 0.0
        %1786 = vmatpush1.msra.mxu0 0.0
        %1787 = vmatprep.subr.mxu0 0.0
        %1788 = vmatpush1.msra.mxu0 0.0
        %1789 = vmatprep.subr.mxu0 0.0
        %1790 = vmatpush1.msra.mxu0 0.0
        %1791 = vmatprep.subr.mxu0 0.0
        %1792 = vmatpush1.msra.mxu0 0.0
        %1793 = vmatprep.subr.mxu0 0.0
        %1794 = vmatpush1.msra.mxu0 0.0
        %1795 = vmatprep.subr.mxu0 0.0
        %1796 = vmatpush1.msra.mxu0 0.0
        %1797 = vmatprep.subr.mxu0 0.0
        %1798 = vmatpush1.msra.mxu0 0.0
        %1799 = vmatprep.subr.mxu0 0.0
        %1800 = vmatpush1.msra.mxu0 0.0
        %1801 = vmatprep.subr.mxu0 0.0
        %1802 = vmatpush1.msra.mxu0 0.0
        %1803 = vmatprep.subr.mxu0 0.0
        %1804 = vmatpush1.msra.mxu0 0.0
        %1805 = vmatprep.subr.mxu0 0.0
        %1806 = vmatpush1.msra.mxu0 0.0
        %1807 = vmatprep.subr.mxu0 0.0
        %1808 = vmatpush1.msra.mxu0 0.0
        %1809 = vmatprep.subr.mxu0 0.0
        %1810 = vmatpush1.msra.mxu0 0.0
        %1811 = vmatprep.subr.mxu0 0.0
        %1812 = vmatpush1.msra.mxu0 0.0
        %1813 = vmatprep.subr.mxu0 0.0
        %1814 = vmatpush1.msra.mxu0 0.0
        %1815 = vmatprep.subr.mxu0 0.0
        %1816 = vmatpush1.msra.mxu0 0.0
        %1817 = vmatprep.subr.mxu0 0.0
        %1818 = vmatpush1.msra.mxu0 0.0
        %1819 = vmatprep.mubr.f32.mxu0 0.0
        %1820 = vmatmul.mubr.f32.gmra.mrb[0].mxu0 %v1753
        %v1821 = vpop.f32.mrb[0].mxu0
        %v1822 = vadd.f32 0.0, %v1821
        %v1823 = vpop.f32.mrb[0].mxu0
        %1824 = vdwg.mxu0
        %1825 = vrot.lane.b32.xlu0 %v893, 48
        %v1826 = vpop.permute.xlu0 %1825
        %v1829 = vsel %vm913, %v1748, 0
        %1831 = vmatprep.subr.mxu0 0.0
        %1832 = vmatpush1.msra.mxu0 %v1826
        %1833 = vmatprep.subr.mxu0 0.0
        %1834 = vmatpush1.msra.mxu0 0.0
        %1835 = vmatprep.subr.mxu0 0.0
        %1836 = vmatpush1.msra.mxu0 0.0
        %1837 = vmatprep.subr.mxu0 0.0
        %1838 = vmatpush1.msra.mxu0 0.0
        %1839 = vmatprep.subr.mxu0 0.0
        %1840 = vmatpush1.msra.mxu0 0.0
        %1841 = vmatprep.subr.mxu0 0.0
        %1842 = vmatpush1.msra.mxu0 0.0
        %1843 = vmatprep.subr.mxu0 0.0
        %1844 = vmatpush1.msra.mxu0 0.0
        %1845 = vmatprep.subr.mxu0 0.0
        %1846 = vmatpush1.msra.mxu0 0.0
        %1847 = vmatprep.subr.mxu0 0.0
        %1848 = vmatpush1.msra.mxu0 0.0
        %1849 = vmatprep.subr.mxu0 0.0
        %1850 = vmatpush1.msra.mxu0 0.0
        %1851 = vmatprep.subr.mxu0 0.0
        %1852 = vmatpush1.msra.mxu0 0.0
        %1853 = vmatprep.subr.mxu0 0.0
        %1854 = vmatpush1.msra.mxu0 0.0
        %1855 = vmatprep.subr.mxu0 0.0
        %1856 = vmatpush1.msra.mxu0 0.0
        %1857 = vmatprep.subr.mxu0 0.0
        %1858 = vmatpush1.msra.mxu0 0.0
        %1859 = vmatprep.subr.mxu0 0.0
        %1860 = vmatpush1.msra.mxu0 0.0
        %1861 = vmatprep.subr.mxu0 0.0
        %1862 = vmatpush1.msra.mxu0 0.0
        %1863 = vmatprep.subr.mxu0 0.0
        %1864 = vmatpush1.msra.mxu0 0.0
        %1865 = vmatprep.subr.mxu0 0.0
        %1866 = vmatpush1.msra.mxu0 0.0
        %1867 = vmatprep.subr.mxu0 0.0
        %1868 = vmatpush1.msra.mxu0 0.0
        %1869 = vmatprep.subr.mxu0 0.0
        %1870 = vmatpush1.msra.mxu0 0.0
        %1871 = vmatprep.subr.mxu0 0.0
        %1872 = vmatpush1.msra.mxu0 0.0
        %1873 = vmatprep.subr.mxu0 0.0
        %1874 = vmatpush1.msra.mxu0 0.0
        %1875 = vmatprep.subr.mxu0 0.0
        %1876 = vmatpush1.msra.mxu0 0.0
        %1877 = vmatprep.subr.mxu0 0.0
        %1878 = vmatpush1.msra.mxu0 0.0
        %1879 = vmatprep.subr.mxu0 0.0
        %1880 = vmatpush1.msra.mxu0 0.0
        %1881 = vmatprep.subr.mxu0 0.0
        %1882 = vmatpush1.msra.mxu0 0.0
        %1883 = vmatprep.subr.mxu0 0.0
        %1884 = vmatpush1.msra.mxu0 0.0
        %1885 = vmatprep.subr.mxu0 0.0
        %1886 = vmatpush1.msra.mxu0 0.0
        %1887 = vmatprep.subr.mxu0 0.0
        %1888 = vmatpush1.msra.mxu0 0.0
        %1889 = vmatprep.subr.mxu0 0.0
        %1890 = vmatpush1.msra.mxu0 0.0
        %1891 = vmatprep.subr.mxu0 0.0
        %1892 = vmatpush1.msra.mxu0 0.0
        %1893 = vmatprep.subr.mxu0 0.0
        %1894 = vmatpush1.msra.mxu0 0.0
        %1895 = vmatprep.mubr.f32.mxu0 0.0
        %1896 = vmatmul.mubr.f32.gmra.mrb[0].mxu0 %v1829
        %v1897 = vpop.f32.mrb[0].mxu0
        %v1898 = vadd.f32 0.0, %v1897
        %v1899 = vpop.f32.mrb[0].mxu0
        %1900 = vdwg.mxu0
        %1901 = vrot.lane.b32.xlu0 %v896, 104
        %v1902 = vpop.permute.xlu0 %1901
        %1903 = vrot.lane.b32.xlu0 %v888, 72
        %v1904 = vpop.permute.xlu0 %1903
        %v1905 = vsel %vm913, %v1902, 0
        %v1907 = vsel %vm913, %v1904, 0
        %1909 = vmatprep.subr.mxu0 0.0
        %1910 = vmatpush1.xpose.msra.mxu0 %v1907
        %1911 = vmatprep.subr.mxu0 0.0
        %1912 = vmatpush1.xpose.msra.mxu0 0.0
        %1913 = vmatprep.subr.mxu0 0.0
        %1914 = vmatpush1.xpose.msra.mxu0 0.0
        %1915 = vmatprep.subr.mxu0 0.0
        %1916 = vmatpush1.xpose.msra.mxu0 0.0
        %1917 = vmatprep.subr.mxu0 0.0
        %1918 = vmatpush1.xpose.msra.mxu0 0.0
        %1919 = vmatprep.subr.mxu0 0.0
        %1920 = vmatpush1.xpose.msra.mxu0 0.0
        %1921 = vmatprep.subr.mxu0 0.0
        %1922 = vmatpush1.xpose.msra.mxu0 0.0
        %1923 = vmatprep.subr.mxu0 0.0
        %1924 = vmatpush1.xpose.msra.mxu0 0.0
        %1925 = vmatprep.subr.mxu0 0.0
        %1926 = vmatpush1.xpose.msra.mxu0 0.0
        %1927 = vmatprep.subr.mxu0 0.0
        %1928 = vmatpush1.xpose.msra.mxu0 0.0
        %1929 = vmatprep.subr.mxu0 0.0
        %1930 = vmatpush1.xpose.msra.mxu0 0.0
        %1931 = vmatprep.subr.mxu0 0.0
        %1932 = vmatpush1.xpose.msra.mxu0 0.0
        %1933 = vmatprep.subr.mxu0 0.0
        %1934 = vmatpush1.xpose.msra.mxu0 0.0
        %1935 = vmatprep.subr.mxu0 0.0
        %1936 = vmatpush1.xpose.msra.mxu0 0.0
        %1937 = vmatprep.subr.mxu0 0.0
        %1938 = vmatpush1.xpose.msra.mxu0 0.0
        %1939 = vmatprep.subr.mxu0 0.0
        %1940 = vmatpush1.xpose.msra.mxu0 0.0
        %1941 = vmatprep.subr.mxu0 0.0
        %1942 = vmatpush1.xpose.msra.mxu0 0.0
        %1943 = vmatprep.subr.mxu0 0.0
        %1944 = vmatpush1.xpose.msra.mxu0 0.0
        %1945 = vmatprep.subr.mxu0 0.0
        %1946 = vmatpush1.xpose.msra.mxu0 0.0
        %1947 = vmatprep.subr.mxu0 0.0
        %1948 = vmatpush1.xpose.msra.mxu0 0.0
        %1949 = vmatprep.subr.mxu0 0.0
        %1950 = vmatpush1.xpose.msra.mxu0 0.0
        %1951 = vmatprep.subr.mxu0 0.0
        %1952 = vmatpush1.xpose.msra.mxu0 0.0
        %1953 = vmatprep.subr.mxu0 0.0
        %1954 = vmatpush1.xpose.msra.mxu0 0.0
        %1955 = vmatprep.subr.mxu0 0.0
        %1956 = vmatpush1.xpose.msra.mxu0 0.0
        %1957 = vmatprep.subr.mxu0 0.0
        %1958 = vmatpush1.xpose.msra.mxu0 0.0
        %1959 = vmatprep.subr.mxu0 0.0
        %1960 = vmatpush1.xpose.msra.mxu0 0.0
        %1961 = vmatprep.subr.mxu0 0.0
        %1962 = vmatpush1.xpose.msra.mxu0 0.0
        %1963 = vmatprep.subr.mxu0 0.0
        %1964 = vmatpush1.xpose.msra.mxu0 0.0
        %1965 = vmatprep.subr.mxu0 0.0
        %1966 = vmatpush1.xpose.msra.mxu0 0.0
        %1967 = vmatprep.subr.mxu0 0.0
        %1968 = vmatpush1.xpose.msra.mxu0 0.0
        %1969 = vmatprep.subr.mxu0 0.0
        %1970 = vmatpush1.xpose.msra.mxu0 0.0
        %1971 = vmatprep.subr.mxu0 0.0
        %1972 = vmatpush1.xpose.msra.mxu0 0.0
        %1973 = vmatprep.mubr.f32.mxu0 0.0
        %1974 = vmatmul.mubr.f32.gmra.mrb[0].mxu0 %v1905
        %v1975 = vpop.f32.mrb[0].mxu0
        %v1976 = vadd.f32 %v903, %v1975
        %v1977 = vpop.f32.mrb[0].mxu0
        %1978 = vdwg.mxu0
        %1979 = vrot.lane.b32.xlu0 %v897, 104
        %v1980 = vpop.permute.xlu0 %1979
        %1981 = vrot.lane.b32.xlu0 %v893, 72
        %v1982 = vpop.permute.xlu0 %1981
        %v1983 = vsel %vm913, %v1980, 0
        %v1985 = vsel %vm913, %v1982, 0
        %1987 = vmatprep.subr.mxu0 0.0
        %1988 = vmatpush1.xpose.msra.mxu0 %v1985
        %1989 = vmatprep.subr.mxu0 0.0
        %1990 = vmatpush1.xpose.msra.mxu0 0.0
        %1991 = vmatprep.subr.mxu0 0.0
        %1992 = vmatpush1.xpose.msra.mxu0 0.0
        %1993 = vmatprep.subr.mxu0 0.0
        %1994 = vmatpush1.xpose.msra.mxu0 0.0
        %1995 = vmatprep.subr.mxu0 0.0
        %1996 = vmatpush1.xpose.msra.mxu0 0.0
        %1997 = vmatprep.subr.mxu0 0.0
        %1998 = vmatpush1.xpose.msra.mxu0 0.0
        %1999 = vmatprep.subr.mxu0 0.0
        %2000 = vmatpush1.xpose.msra.mxu0 0.0
        %2001 = vmatprep.subr.mxu0 0.0
        %2002 = vmatpush1.xpose.msra.mxu0 0.0
        %2003 = vmatprep.subr.mxu0 0.0
        %2004 = vmatpush1.xpose.msra.mxu0 0.0
        %2005 = vmatprep.subr.mxu0 0.0
        %2006 = vmatpush1.xpose.msra.mxu0 0.0
        %2007 = vmatprep.subr.mxu0 0.0
        %2008 = vmatpush1.xpose.msra.mxu0 0.0
        %2009 = vmatprep.subr.mxu0 0.0
        %2010 = vmatpush1.xpose.msra.mxu0 0.0
        %2011 = vmatprep.subr.mxu0 0.0
        %2012 = vmatpush1.xpose.msra.mxu0 0.0
        %2013 = vmatprep.subr.mxu0 0.0
        %2014 = vmatpush1.xpose.msra.mxu0 0.0
        %2015 = vmatprep.subr.mxu0 0.0
        %2016 = vmatpush1.xpose.msra.mxu0 0.0
        %2017 = vmatprep.subr.mxu0 0.0
        %2018 = vmatpush1.xpose.msra.mxu0 0.0
        %2019 = vmatprep.subr.mxu0 0.0
        %2020 = vmatpush1.xpose.msra.mxu0 0.0
        %2021 = vmatprep.subr.mxu0 0.0
        %2022 = vmatpush1.xpose.msra.mxu0 0.0
        %2023 = vmatprep.subr.mxu0 0.0
        %2024 = vmatpush1.xpose.msra.mxu0 0.0
        %2025 = vmatprep.subr.mxu0 0.0
        %2026 = vmatpush1.xpose.msra.mxu0 0.0
        %2027 = vmatprep.subr.mxu0 0.0
        %2028 = vmatpush1.xpose.msra.mxu0 0.0
        %2029 = vmatprep.subr.mxu0 0.0
        %2030 = vmatpush1.xpose.msra.mxu0 0.0
        %2031 = vmatprep.subr.mxu0 0.0
        %2032 = vmatpush1.xpose.msra.mxu0 0.0
        %2033 = vmatprep.subr.mxu0 0.0
        %2034 = vmatpush1.xpose.msra.mxu0 0.0
        %2035 = vmatprep.subr.mxu0 0.0
        %2036 = vmatpush1.xpose.msra.mxu0 0.0
        %2037 = vmatprep.subr.mxu0 0.0
        %2038 = vmatpush1.xpose.msra.mxu0 0.0
        %2039 = vmatprep.subr.mxu0 0.0
        %2040 = vmatpush1.xpose.msra.mxu0 0.0
        %2041 = vmatprep.subr.mxu0 0.0
        %2042 = vmatpush1.xpose.msra.mxu0 0.0
        %2043 = vmatprep.subr.mxu0 0.0
        %2044 = vmatpush1.xpose.msra.mxu0 0.0
        %2045 = vmatprep.subr.mxu0 0.0
        %2046 = vmatpush1.xpose.msra.mxu0 0.0
        %2047 = vmatprep.subr.mxu0 0.0
        %2048 = vmatpush1.xpose.msra.mxu0 0.0
        %2049 = vmatprep.subr.mxu0 0.0
        %2050 = vmatpush1.xpose.msra.mxu0 0.0
        %2051 = vmatprep.mubr.f32.mxu0 0.0
        %2052 = vmatmul.mubr.f32.gmra.mrb[0].mxu0 %v1983
        %v2053 = vpop.f32.mrb[0].mxu0
        %v2054 = vadd.f32 %v907, %v2053
        %v2055 = vpop.f32.mrb[0].mxu0
        %2056 = vdwg.mxu0
        %v2057 = vsel %vm913, %v1976, -inf
        %2058 = vmax.xlane.f32.xlu0 %v2057
        %v2059 = vpop.xlane.xlu0 %2058
        %v2060 = vsel %vm913, %v2054, -inf
        %2061 = vmax.xlane.f32.xlu0 %v2060
        %v2062 = vpop.xlane.xlu0 %2061
        %v2063 = vsub.f32 %v1976, %v2059
        %v2064 = vsub.f32 %v2054, %v2062
        %v2065 = vmul.f32 %v2063, 1.442695
        %v2066 = vpow.pop %v2065
        %v2067 = vmul.f32 %v2064, 1.442695
        %v2068 = vpow.pop %v2067
        %v2069 = vsel %vm913, %v2066, 0.0
        %2070 = vadd.xlane.f32.xlu0 %v2069
        %v2071 = vpop.xlane.xlu0 %2070
        %v2072 = vsel %vm913, %v2068, 0.0
        %2073 = vadd.xlane.f32.xlu0 %v2072
        %v2074 = vpop.xlane.xlu0 %2073
        %v2075 = vrcp.pop %v2071
        %v2076 = vrcp.pop %v2074
        %v2077 = vmul.f32 %v2066, %v2075
        %v2078 = vmul.f32 %v2068, %v2076
        %2079 = vrot.lane.b32.xlu0 %v888, 40
        %v2080 = vpop.permute.xlu0 %2079
        %v2083 = vsel %vm913, %v2077, 0
        %2085 = vmatprep.subr.mxu0 0.0
        %2086 = vmatpush1.msra.mxu0 %v2080
        %2087 = vmatprep.subr.mxu0 0.0
        %2088 = vmatpush1.msra.mxu0 0.0
        %2089 = vmatprep.subr.mxu0 0.0
        %2090 = vmatpush1.msra.mxu0 0.0
        %2091 = vmatprep.subr.mxu0 0.0
        %2092 = vmatpush1.msra.mxu0 0.0
        %2093 = vmatprep.subr.mxu0 0.0
        %2094 = vmatpush1.msra.mxu0 0.0
        %2095 = vmatprep.subr.mxu0 0.0
        %2096 = vmatpush1.msra.mxu0 0.0
        %2097 = vmatprep.subr.mxu0 0.0
        %2098 = vmatpush1.msra.mxu0 0.0
        %2099 = vmatprep.subr.mxu0 0.0
        %2100 = vmatpush1.msra.mxu0 0.0
        %2101 = vmatprep.subr.mxu0 0.0
        %2102 = vmatpush1.msra.mxu0 0.0
        %2103 = vmatprep.subr.mxu0 0.0
        %2104 = vmatpush1.msra.mxu0 0.0
        %2105 = vmatprep.subr.mxu0 0.0
        %2106 = vmatpush1.msra.mxu0 0.0
        %2107 = vmatprep.subr.mxu0 0.0
        %2108 = vmatpush1.msra.mxu0 0.0
        %2109 = vmatprep.subr.mxu0 0.0
        %2110 = vmatpush1.msra.mxu0 0.0
        %2111 = vmatprep.subr.mxu0 0.0
        %2112 = vmatpush1.msra.mxu0 0.0
        %2113 = vmatprep.subr.mxu0 0.0
        %2114 = vmatpush1.msra.mxu0 0.0
        %2115 = vmatprep.subr.mxu0 0.0
        %2116 = vmatpush1.msra.mxu0 0.0
        %2117 = vmatprep.subr.mxu0 0.0
        %2118 = vmatpush1.msra.mxu0 0.0
        %2119 = vmatprep.subr.mxu0 0.0
        %2120 = vmatpush1.msra.mxu0 0.0
        %2121 = vmatprep.subr.mxu0 0.0
        %2122 = vmatpush1.msra.mxu0 0.0
        %2123 = vmatprep.subr.mxu0 0.0
        %2124 = vmatpush1.msra.mxu0 0.0
        %2125 = vmatprep.subr.mxu0 0.0
        %2126 = vmatpush1.msra.mxu0 0.0
        %2127 = vmatprep.subr.mxu0 0.0
        %2128 = vmatpush1.msra.mxu0 0.0
        %2129 = vmatprep.subr.mxu0 0.0
        %2130 = vmatpush1.msra.mxu0 0.0
        %2131 = vmatprep.subr.mxu0 0.0
        %2132 = vmatpush1.msra.mxu0 0.0
        %2133 = vmatprep.subr.mxu0 0.0
        %2134 = vmatpush1.msra.mxu0 0.0
        %2135 = vmatprep.subr.mxu0 0.0
        %2136 = vmatpush1.msra.mxu0 0.0
        %2137 = vmatprep.subr.mxu0 0.0
        %2138 = vmatpush1.msra.mxu0 0.0
        %2139 = vmatprep.subr.mxu0 0.0
        %2140 = vmatpush1.msra.mxu0 0.0
        %2141 = vmatprep.subr.mxu0 0.0
        %2142 = vmatpush1.msra.mxu0 0.0
        %2143 = vmatprep.subr.mxu0 0.0
        %2144 = vmatpush1.msra.mxu0 0.0
        %2145 = vmatprep.subr.mxu0 0.0
        %2146 = vmatpush1.msra.mxu0 0.0
        %2147 = vmatprep.subr.mxu0 0.0
        %2148 = vmatpush1.msra.mxu0 0.0
        %2149 = vmatprep.mubr.f32.mxu0 0.0
        %2150 = vmatmul.mubr.f32.gmra.mrb[0].mxu0 %v2083
        %v2151 = vpop.f32.mrb[0].mxu0
        %v2152 = vadd.f32 0.0, %v2151
        %v2153 = vpop.f32.mrb[0].mxu0
        %2154 = vdwg.mxu0
        %2155 = vrot.lane.b32.xlu0 %v893, 40
        %v2156 = vpop.permute.xlu0 %2155
        %v2159 = vsel %vm913, %v2078, 0
        %2161 = vmatprep.subr.mxu0 0.0
        %2162 = vmatpush1.msra.mxu0 %v2156
        %2163 = vmatprep.subr.mxu0 0.0
        %2164 = vmatpush1.msra.mxu0 0.0
        %2165 = vmatprep.subr.mxu0 0.0
        %2166 = vmatpush1.msra.mxu0 0.0
        %2167 = vmatprep.subr.mxu0 0.0
        %2168 = vmatpush1.msra.mxu0 0.0
        %2169 = vmatprep.subr.mxu0 0.0
        %2170 = vmatpush1.msra.mxu0 0.0
        %2171 = vmatprep.subr.mxu0 0.0
        %2172 = vmatpush1.msra.mxu0 0.0
        %2173 = vmatprep.subr.mxu0 0.0
        %2174 = vmatpush1.msra.mxu0 0.0
        %2175 = vmatprep.subr.mxu0 0.0
        %2176 = vmatpush1.msra.mxu0 0.0
        %2177 = vmatprep.subr.mxu0 0.0
        %2178 = vmatpush1.msra.mxu0 0.0
        %2179 = vmatprep.subr.mxu0 0.0
        %2180 = vmatpush1.msra.mxu0 0.0
        %2181 = vmatprep.subr.mxu0 0.0
        %2182 = vmatpush1.msra.mxu0 0.0
        %2183 = vmatprep.subr.mxu0 0.0
        %2184 = vmatpush1.msra.mxu0 0.0
        %2185 = vmatprep.subr.mxu0 0.0
        %2186 = vmatpush1.msra.mxu0 0.0
        %2187 = vmatprep.subr.mxu0 0.0
        %2188 = vmatpush1.msra.mxu0 0.0
        %2189 = vmatprep.subr.mxu0 0.0
        %2190 = vmatpush1.msra.mxu0 0.0
        %2191 = vmatprep.subr.mxu0 0.0
        %2192 = vmatpush1.msra.mxu0 0.0
        %2193 = vmatprep.subr.mxu0 0.0
        %2194 = vmatpush1.msra.mxu0 0.0
        %2195 = vmatprep.subr.mxu0 0.0
        %2196 = vmatpush1.msra.mxu0 0.0
        %2197 = vmatprep.subr.mxu0 0.0
        %2198 = vmatpush1.msra.mxu0 0.0
        %2199 = vmatprep.subr.mxu0 0.0
        %2200 = vmatpush1.msra.mxu0 0.0
        %2201 = vmatprep.subr.mxu0 0.0
        %2202 = vmatpush1.msra.mxu0 0.0
        %2203 = vmatprep.subr.mxu0 0.0
        %2204 = vmatpush1.msra.mxu0 0.0
        %2205 = vmatprep.subr.mxu0 0.0
        %2206 = vmatpush1.msra.mxu0 0.0
        %2207 = vmatprep.subr.mxu0 0.0
        %2208 = vmatpush1.msra.mxu0 0.0
        %2209 = vmatprep.subr.mxu0 0.0
        %2210 = vmatpush1.msra.mxu0 0.0
        %2211 = vmatprep.subr.mxu0 0.0
        %2212 = vmatpush1.msra.mxu0 0.0
        %2213 = vmatprep.subr.mxu0 0.0
        %2214 = vmatpush1.msra.mxu0 0.0
        %2215 = vmatprep.subr.mxu0 0.0
        %2216 = vmatpush1.msra.mxu0 0.0
        %2217 = vmatprep.subr.mxu0 0.0
        %2218 = vmatpush1.msra.mxu0 0.0
        %2219 = vmatprep.subr.mxu0 0.0
        %2220 = vmatpush1.msra.mxu0 0.0
        %2221 = vmatprep.subr.mxu0 0.0
        %2222 = vmatpush1.msra.mxu0 0.0
        %2223 = vmatprep.subr.mxu0 0.0
        %2224 = vmatpush1.msra.mxu0 0.0
        %2225 = vmatprep.mubr.f32.mxu0 0.0
        %2226 = vmatmul.mubr.f32.gmra.mrb[0].mxu0 %v2159
        %v2227 = vpop.f32.mrb[0].mxu0
        %v2228 = vadd.f32 0.0, %v2227
        %v2229 = vpop.f32.mrb[0].mxu0
        %2230 = vdwg.mxu0
        %2233 = vrot.lane.b32.xlu0 %v1492, 8
        %v2234 = vpop.permute.xlu0 %2233
        %2235 = vrot.lane.b32.xlu0 %v1568, 8
        %v2236 = vpop.permute.xlu0 %2235
        %2241 = vrot.lane.b32.xlu0 %v1822, 16
        %v2242 = vpop.permute.xlu0 %2241
        %2243 = vrot.lane.b32.xlu0 %v1898, 16
        %v2244 = vpop.permute.xlu0 %2243
        %2249 = vrot.lane.b32.xlu0 %v2152, 24
        %v2250 = vpop.permute.xlu0 %2249
        %2251 = vrot.lane.b32.xlu0 %v2228, 24
        %v2252 = vpop.permute.xlu0 %2251
        %v2255 = vsel %vm913, %v1162, %v2234
        %v2256 = vsel %vm913, %v1238, %v2236
        %vm2257 = vcmask 130048
        %v2258 = vsel %vm2257, %v2255, %v2242
        %v2259 = vsel %vm2257, %v2256, %v2244
        %vm2260 = vcmask 195584
        %v2261 = vsel %vm2260, %v2258, %v2250
        %v2262 = vsel %vm2260, %v2259, %v2252
        %v2263 = vld [vmem:[%s714] sm:$0xff]
        %v2264 = vld [vmem:[%s714 + $0x8] sm:$0xff]
        %v2265 = vld [vmem:[%s714 + $0x10] sm:$0xff]
        %v2266 = vld [vmem:[%s714 + $0x18] sm:$0xff]
        %v2267 = vld [vmem:[%s717] sm:$0x1]
        %v2269 = vlaneseq
        %v2270 = vshrl.u32 %v2269, 7
        %v2271 = vsub.s32 0, %v2270
        %v2272 = vrot.slane %v2267, %v2271
        %v2275 = vsel %vm760, %v2261, 0
        %v2278 = vsel %vm760, %v2262, 0
        %2280 = vmatprep.subr.mxu0 0.0
        %2281 = vmatpush1.msra.mxu0 %v2263
        %2282 = vmatprep.subr.mxu0 0.0
        %2283 = vmatpush1.msra.mxu0 %v2264
        %2284 = vmatprep.subr.mxu0 0.0
        %2285 = vmatpush1.msra.mxu0 %v2265
        %2286 = vmatprep.subr.mxu0 0.0
        %2287 = vmatpush1.msra.mxu0 %v2266
        %2288 = vmatprep.subr.mxu0 0.0
        %2289 = vmatpush1.msra.mxu0 0.0
        %2290 = vmatprep.subr.mxu0 0.0
        %2291 = vmatpush1.msra.mxu0 0.0
        %2292 = vmatprep.subr.mxu0 0.0
        %2293 = vmatpush1.msra.mxu0 0.0
        %2294 = vmatprep.subr.mxu0 0.0
        %2295 = vmatpush1.msra.mxu0 0.0
        %2296 = vmatprep.subr.mxu0 0.0
        %2297 = vmatpush1.msra.mxu0 0.0
        %2298 = vmatprep.subr.mxu0 0.0
        %2299 = vmatpush1.msra.mxu0 0.0
        %2300 = vmatprep.subr.mxu0 0.0
        %2301 = vmatpush1.msra.mxu0 0.0
        %2302 = vmatprep.subr.mxu0 0.0
        %2303 = vmatpush1.msra.mxu0 0.0
        %2304 = vmatprep.subr.mxu0 0.0
        %2305 = vmatpush1.msra.mxu0 0.0
        %2306 = vmatprep.subr.mxu0 0.0
        %2307 = vmatpush1.msra.mxu0 0.0
        %2308 = vmatprep.subr.mxu0 0.0
        %2309 = vmatpush1.msra.mxu0 0.0
        %2310 = vmatprep.subr.mxu0 0.0
        %2311 = vmatpush1.msra.mxu0 0.0
        %2312 = vmatprep.subr.mxu0 0.0
        %2313 = vmatpush1.msra.mxu0 0.0
        %2314 = vmatprep.subr.mxu0 0.0
        %2315 = vmatpush1.msra.mxu0 0.0
        %2316 = vmatprep.subr.mxu0 0.0
        %2317 = vmatpush1.msra.mxu0 0.0
        %2318 = vmatprep.subr.mxu0 0.0
        %2319 = vmatpush1.msra.mxu0 0.0
        %2320 = vmatprep.subr.mxu0 0.0
        %2321 = vmatpush1.msra.mxu0 0.0
        %2322 = vmatprep.subr.mxu0 0.0
        %2323 = vmatpush1.msra.mxu0 0.0
        %2324 = vmatprep.subr.mxu0 0.0
        %2325 = vmatpush1.msra.mxu0 0.0
        %2326 = vmatprep.subr.mxu0 0.0
        %2327 = vmatpush1.msra.mxu0 0.0
        %2328 = vmatprep.subr.mxu0 0.0
        %2329 = vmatpush1.msra.mxu0 0.0
        %2330 = vmatprep.subr.mxu0 0.0
        %2331 = vmatpush1.msra.mxu0 0.0
        %2332 = vmatprep.subr.mxu0 0.0
        %2333 = vmatpush1.msra.mxu0 0.0
        %2334 = vmatprep.subr.mxu0 0.0
        %2335 = vmatpush1.msra.mxu0 0.0
        %2336 = vmatprep.subr.mxu0 0.0
        %2337 = vmatpush1.msra.mxu0 0.0
        %2338 = vmatprep.subr.mxu0 0.0
        %2339 = vmatpush1.msra.mxu0 0.0
        %2340 = vmatprep.subr.mxu0 0.0
        %2341 = vmatpush1.msra.mxu0 0.0
        %2342 = vmatprep.subr.mxu0 0.0
        %2343 = vmatpush1.msra.mxu0 0.0
        %2344 = vmatprep.mubr.f32.mxu0 0.0
        %2345 = vmatmul.mubr.f32.gmra.mrb[0].mxu0 %v2275
        %v2346 = vpop.f32.mrb[0].mxu0
        %v2347 = vadd.f32 %v2272, %v2346
        %v2348 = vpop.f32.mrb[0].mxu0
        %2349 = vmatprep.mubr.f32.mxu0 0.0
        %2350 = vmatmul.mubr.f32.gmra.mrb[0].mxu0 %v2278
        %v2351 = vpop.f32.mrb[0].mxu0
        %v2352 = vadd.f32 %v2272, %v2351
        %v2353 = vpop.f32.mrb[0].mxu0
        %2354 = vdwg.mxu0
        %v2355 = vadd.f32 %v750, %v2347
        %v2356 = vadd.f32 %v751, %v2352
        %v2357 = vld [vmem:[%s720] sm:$0x1]
        %v2358 = vld [vmem:[%s723] sm:$0x1]
        %v2359 = vsel %vm760, %v2355, 0.0
        %2360 = vadd.xlane.f32.xlu0 %v2359
        %v2361 = vpop.xlane.xlu0 %2360
        %v2362 = vsel %vm760, %v2356, 0.0
        %2363 = vadd.xlane.f32.xlu0 %v2362
        %v2364 = vpop.xlane.xlu0 %2363
        %v2365 = vmul.f32 %v2361, %v767
        %v2366 = vmul.f32 %v2364, %v767
        %v2367 = vsub.f32 %v2355, %v2365
        %v2368 = vsub.f32 %v2356, %v2366
        %v2369 = vmul.f32 %v2367, %v2367
        %v2370 = vmul.f32 %v2368, %v2368
        %v2371 = vsel %vm760, %v2369, 0.0
        %2372 = vadd.xlane.f32.xlu0 %v2371
        %v2373 = vpop.xlane.xlu0 %2372
        %v2374 = vsel %vm760, %v2370, 0.0
        %2375 = vadd.xlane.f32.xlu0 %v2374
        %v2376 = vpop.xlane.xlu0 %2375
        %v2377 = vmul.f32 %v2373, %v767
        %v2378 = vmul.f32 %v2376, %v767
        %v2379 = vadd.f32 %v2377, 1e-06
        %v2380 = vadd.f32 %v2378, 1e-06
        %v2381 = vrsqrt.pop %v2379
        %v2382 = vrsqrt.pop %v2380
        %v2384 = vlaneseq
        %v2385 = vshrl.u32 %v2384, 7
        %v2386 = vsub.s32 0, %v2385
        %v2387 = vrot.slane %v2357, %v2386
        %v2389 = vmul.f32 %v2381, %v2387
        %v2390 = vmul.f32 %v2382, %v2387
        %v2391 = vmul.f32 %v2367, %v2389
        %v2392 = vmul.f32 %v2368, %v2390
        %v2394 = vlaneseq
        %v2395 = vshrl.u32 %v2394, 7
        %v2396 = vsub.s32 0, %v2395
        %v2397 = vrot.slane %v2358, %v2396
        %v2399 = vadd.f32 %v2391, %v2397
        %v2400 = vadd.f32 %v2392, %v2397
        %v2401 = vld [vmem:[%s728] sm:$0xff]
        %v2402 = vld [vmem:[%s728 + $0x8] sm:$0xff]
        %v2403 = vld [vmem:[%s728 + $0x10] sm:$0xff]
        %v2404 = vld [vmem:[%s728 + $0x18] sm:$0xff]
        %v2405 = vld [vmem:[%s731] sm:$0x1]
        %v2407 = vlaneseq
        %v2408 = vshrl.u32 %v2407, 7
        %v2409 = vsub.s32 0, %v2408
        %v2410 = vrot.slane %v2405, %v2409
        %v2413 = vsel %vm760, %v2399, 0
        %v2416 = vsel %vm760, %v2400, 0
        %2418 = vmatprep.subr.mxu0 0.0
        %2419 = vmatpush1.msra.mxu0 %v2401
        %2420 = vmatprep.subr.mxu0 0.0
        %2421 = vmatpush1.msra.mxu0 %v2402
        %2422 = vmatprep.subr.mxu0 0.0
        %2423 = vmatpush1.msra.mxu0 %v2403
        %2424 = vmatprep.subr.mxu0 0.0
        %2425 = vmatpush1.msra.mxu0 %v2404
        %2426 = vmatprep.subr.mxu0 0.0
        %2427 = vmatpush1.msra.mxu0 0.0
        %2428 = vmatprep.subr.mxu0 0.0
        %2429 = vmatpush1.msra.mxu0 0.0
        %2430 = vmatprep.subr.mxu0 0.0
        %2431 = vmatpush1.msra.mxu0 0.0
        %2432 = vmatprep.subr.mxu0 0.0
        %2433 = vmatpush1.msra.mxu0 0.0
        %2434 = vmatprep.subr.mxu0 0.0
        %2435 = vmatpush1.msra.mxu0 0.0
        %2436 = vmatprep.subr.mxu0 0.0
        %2437 = vmatpush1.msra.mxu0 0.0
        %2438 = vmatprep.subr.mxu0 0.0
        %2439 = vmatpush1.msra.mxu0 0.0
        %2440 = vmatprep.subr.mxu0 0.0
        %2441 = vmatpush1.msra.mxu0 0.0
        %2442 = vmatprep.subr.mxu0 0.0
        %2443 = vmatpush1.msra.mxu0 0.0
        %2444 = vmatprep.subr.mxu0 0.0
        %2445 = vmatpush1.msra.mxu0 0.0
        %2446 = vmatprep.subr.mxu0 0.0
        %2447 = vmatpush1.msra.mxu0 0.0
        %2448 = vmatprep.subr.mxu0 0.0
        %2449 = vmatpush1.msra.mxu0 0.0
        %2450 = vmatprep.subr.mxu0 0.0
        %2451 = vmatpush1.msra.mxu0 0.0
        %2452 = vmatprep.subr.mxu0 0.0
        %2453 = vmatpush1.msra.mxu0 0.0
        %2454 = vmatprep.subr.mxu0 0.0
        %2455 = vmatpush1.msra.mxu0 0.0
        %2456 = vmatprep.subr.mxu0 0.0
        %2457 = vmatpush1.msra.mxu0 0.0
        %2458 = vmatprep.subr.mxu0 0.0
        %2459 = vmatpush1.msra.mxu0 0.0
        %2460 = vmatprep.subr.mxu0 0.0
        %2461 = vmatpush1.msra.mxu0 0.0
        %2462 = vmatprep.subr.mxu0 0.0
        %2463 = vmatpush1.msra.mxu0 0.0
        %2464 = vmatprep.subr.mxu0 0.0
        %2465 = vmatpush1.msra.mxu0 0.0
        %2466 = vmatprep.subr.mxu0 0.0
        %2467 = vmatpush1.msra.mxu0 0.0
        %2468 = vmatprep.subr.mxu0 0.0
        %2469 = vmatpush1.msra.mxu0 0.0
        %2470 = vmatprep.subr.mxu0 0.0
        %2471 = vmatpush1.msra.mxu0 0.0
        %2472 = vmatprep.subr.mxu0 0.0
        %2473 = vmatpush1.msra.mxu0 0.0
        %2474 = vmatprep.subr.mxu0 0.0
        %2475 = vmatpush1.msra.mxu0 0.0
        %2476 = vmatprep.subr.mxu0 0.0
        %2477 = vmatpush1.msra.mxu0 0.0
        %2478 = vmatprep.subr.mxu0 0.0
        %2479 = vmatpush1.msra.mxu0 0.0
        %2480 = vmatprep.subr.mxu0 0.0
        %2481 = vmatpush1.msra.mxu0 0.0
        %2482 = vmatprep.mubr.f32.mxu0 0.0
        %2483 = vmatmul.mubr.f32.gmra.mrb[0].mxu0 %v2413
        %v2484 = vpop.f32.mrb[0].mxu0
        %v2485 = vadd.f32 %v2410, %v2484
        %v2486 = vpop.f32.mrb[0].mxu0
        %2487 = vmatprep.mubr.f32.mxu0 0.0
        %2488 = vmatmul.mubr.f32.gmra.mrb[0].mxu0 %v2416
        %v2489 = vpop.f32.mrb[0].mxu0
        %v2490 = vadd.f32 %v2410, %v2489
        %v2491 = vpop.f32.mrb[0].mxu0
        %2492 = vdwg.mxu0
        %v2493 = vmax.f32 %v2485, 0.0
        %v2494 = vmax.f32 %v2490, 0.0
        %v2495 = vld [vmem:[%s736] sm:$0xff]
        %v2496 = vld [vmem:[%s736 + $0x8] sm:$0xff]
        %v2497 = vld [vmem:[%s736 + $0x10] sm:$0xff]
        %v2498 = vld [vmem:[%s736 + $0x18] sm:$0xff]
        %v2499 = vld [vmem:[%s736 + $0x20] sm:$0xff]
        %v2500 = vld [vmem:[%s736 + $0x28] sm:$0xff]
        %v2501 = vld [vmem:[%s736 + $0x30] sm:$0xff]
        %v2502 = vld [vmem:[%s736 + $0x38] sm:$0xff]
        %v2503 = vld [vmem:[%s739] sm:$0x1]
        %v2505 = vlaneseq
        %v2506 = vshrl.u32 %v2505, 7
        %v2507 = vsub.s32 0, %v2506
        %v2508 = vrot.slane %v2503, %v2507
        %vm2510 = vcmask 523264
        %v2512 = vsel %vm2510, %v2493, 0
        %v2515 = vsel %vm2510, %v2494, 0
        %2517 = vmatprep.subr.mxu0 0.0
        %2518 = vmatpush1.msra.mxu0 %v2495
        %2519 = vmatprep.subr.mxu0 0.0
        %2520 = vmatpush1.msra.mxu0 %v2496
        %2521 = vmatprep.subr.mxu0 0.0
        %2522 = vmatpush1.msra.mxu0 %v2497
        %2523 = vmatprep.subr.mxu0 0.0
        %2524 = vmatpush1.msra.mxu0 %v2498
        %2525 = vmatprep.subr.mxu0 0.0
        %2526 = vmatpush1.msra.mxu0 %v2499
        %2527 = vmatprep.subr.mxu0 0.0
        %2528 = vmatpush1.msra.mxu0 %v2500
        %2529 = vmatprep.subr.mxu0 0.0
        %2530 = vmatpush1.msra.mxu0 %v2501
        %2531 = vmatprep.subr.mxu0 0.0
        %2532 = vmatpush1.msra.mxu0 %v2502
        %2533 = vmatprep.subr.mxu0 0.0
        %2534 = vmatpush1.msra.mxu0 0.0
        %2535 = vmatprep.subr.mxu0 0.0
        %2536 = vmatpush1.msra.mxu0 0.0
        %2537 = vmatprep.subr.mxu0 0.0
        %2538 = vmatpush1.msra.mxu0 0.0
        %2539 = vmatprep.subr.mxu0 0.0
        %2540 = vmatpush1.msra.mxu0 0.0
        %2541 = vmatprep.subr.mxu0 0.0
        %2542 = vmatpush1.msra.mxu0 0.0
        %2543 = vmatprep.subr.mxu0 0.0
        %2544 = vmatpush1.msra.mxu0 0.0
        %2545 = vmatprep.subr.mxu0 0.0
        %2546 = vmatpush1.msra.mxu0 0.0
        %2547 = vmatprep.subr.mxu0 0.0
        %2548 = vmatpush1.msra.mxu0 0.0
        %2549 = vmatprep.subr.mxu0 0.0
        %2550 = vmatpush1.msra.mxu0 0.0
        %2551 = vmatprep.subr.mxu0 0.0
        %2552 = vmatpush1.msra.mxu0 0.0
        %2553 = vmatprep.subr.mxu0 0.0
        %2554 = vmatpush1.msra.mxu0 0.0
        %2555 = vmatprep.subr.mxu0 0.0
        %2556 = vmatpush1.msra.mxu0 0.0
        %2557 = vmatprep.subr.mxu0 0.0
        %2558 = vmatpush1.msra.mxu0 0.0
        %2559 = vmatprep.subr.mxu0 0.0
        %2560 = vmatpush1.msra.mxu0 0.0
        %2561 = vmatprep.subr.mxu0 0.0
        %2562 = vmatpush1.msra.mxu0 0.0
        %2563 = vmatprep.subr.mxu0 0.0
        %2564 = vmatpush1.msra.mxu0 0.0
        %2565 = vmatprep.subr.mxu0 0.0
        %2566 = vmatpush1.msra.mxu0 0.0
        %2567 = vmatprep.subr.mxu0 0.0
        %2568 = vmatpush1.msra.mxu0 0.0
        %2569 = vmatprep.subr.mxu0 0.0
        %2570 = vmatpush1.msra.mxu0 0.0
        %2571 = vmatprep.subr.mxu0 0.0
        %2572 = vmatpush1.msra.mxu0 0.0
        %2573 = vmatprep.subr.mxu0 0.0
        %2574 = vmatpush1.msra.mxu0 0.0
        %2575 = vmatprep.subr.mxu0 0.0
        %2576 = vmatpush1.msra.mxu0 0.0
        %2577 = vmatprep.subr.mxu0 0.0
        %2578 = vmatpush1.msra.mxu0 0.0
        %2579 = vmatprep.subr.mxu0 0.0
        %2580 = vmatpush1.msra.mxu0 0.0
        %2581 = vmatprep.mubr.f32.mxu0 0.0
        %2582 = vmatmul.mubr.f32.gmra.mrb[0].mxu0 %v2512
        %v2583 = vpop.f32.mrb[0].mxu0
        %v2584 = vadd.f32 %v2508, %v2583
        %v2585 = vpop.f32.mrb[0].mxu0
        %2586 = vmatprep.mubr.f32.mxu0 0.0
        %2587 = vmatmul.mubr.f32.gmra.mrb[0].mxu0 %v2515
        %v2588 = vpop.f32.mrb[0].mxu0
        %v2589 = vadd.f32 %v2508, %v2588
        %v2590 = vpop.f32.mrb[0].mxu0
        %2591 = vdwg.mxu0
        %v2592 = vadd.f32 %v2355, %v2584
        %v2593 = vadd.f32 %v2356, %v2589
        %2594 = vst.msk [vmem:[#allocation2] sm:$0xff] %vm760, %v2592
        %2595 = vst.msk [vmem:[#allocation2 + $0x8] sm:$0xff] %vm760, %v2593
        %p2596 = scmp.eq.s32.totalorder %s34, 1
        // Predicated region
        $region93: #{tpu_custom_call.1} parent=83 // pred_check
          %p2597 = pneg %p2596
        $region94: #{tpu_custom_call.1} parent=83 // pred_check_branch
          %2599 = sbr.rel (%p2597) target = $region96
        $region95: #{tpu_custom_call.1} parent=83 // pred_region
          %v2600 = vld [vmem:[%s14] sm:$0x1]
          %v2601 = vld [vmem:[%s15] sm:$0x1]
          %v2602 = vsel %vm760, %v2592, 0.0
          %2603 = vadd.xlane.f32.xlu0 %v2602
          %v2604 = vpop.xlane.xlu0 %2603
          %v2605 = vsel %vm760, %v2593, 0.0
          %2606 = vadd.xlane.f32.xlu0 %v2605
          %v2607 = vpop.xlane.xlu0 %2606
          %v2608 = vmul.f32 %v2604, %v767
          %v2609 = vmul.f32 %v2607, %v767
          %v2610 = vsub.f32 %v2592, %v2608
          %v2611 = vsub.f32 %v2593, %v2609
          %v2612 = vmul.f32 %v2610, %v2610
          %v2613 = vmul.f32 %v2611, %v2611
          %v2614 = vsel %vm760, %v2612, 0.0
          %2615 = vadd.xlane.f32.xlu0 %v2614
          %v2616 = vpop.xlane.xlu0 %2615
          %v2617 = vsel %vm760, %v2613, 0.0
          %2618 = vadd.xlane.f32.xlu0 %v2617
          %v2619 = vpop.xlane.xlu0 %2618
          %v2620 = vmul.f32 %v2616, %v767
          %v2621 = vmul.f32 %v2619, %v767
          %v2622 = vadd.f32 %v2620, 1e-06
          %v2623 = vadd.f32 %v2621, 1e-06
          %v2624 = vrsqrt.pop %v2622
          %v2625 = vrsqrt.pop %v2623
          %v2627 = vlaneseq
          %v2628 = vshrl.u32 %v2627, 7
          %v2629 = vsub.s32 0, %v2628
          %v2630 = vrot.slane %v2600, %v2629
          %v2632 = vmul.f32 %v2624, %v2630
          %v2633 = vmul.f32 %v2625, %v2630
          %v2634 = vmul.f32 %v2610, %v2632
          %v2635 = vmul.f32 %v2611, %v2633
          %v2637 = vlaneseq
          %v2638 = vshrl.u32 %v2637, 7
          %v2639 = vsub.s32 0, %v2638
          %v2640 = vrot.slane %v2601, %v2639
          %v2642 = vadd.f32 %v2634, %v2640
          %v2643 = vadd.f32 %v2635, %v2640
          %2644 = vst.msk [vmem:[#allocation6] sm:$0xff] %vm760, %v2642
          %2645 = vst.msk [vmem:[#allocation6 + $0x8] sm:$0xff] %vm760, %v2643
        $region96: #{tpu_custom_call.1} parent=83 // pred_fallthru
          _
        // Predicated region
        $region97: #{tpu_custom_call.1} parent=83 // pred_check
          %p2646 = pneg %p465
        $region98: #{tpu_custom_call.1} parent=83 // pred_check_branch
          %2648 = sbr.rel (%p2646) target = $region100
        $region99: #{tpu_custom_call.1} parent=83 // pred_region
          %s2649 = smul.u32 2, %s33
          %s2651 = ssub.s32 256, 256
          %2652 = vsyncadd [#allocation5], %s2651
          %s2653 = smul.addr %s2649, 128
          %s2654 = scalar_lea.hbm %s16, %s2653
          %s2655 = sshll.u32 [#allocation6], 4
          %s2656 = int_to_ptr.vmem [resolvable:$true] %s2655
          %2661 = dma.vmem_to_hbm [thread:$0]  %s2656, 256, %s2654, [#allocation5], 128, 128, 8
        $region100: #{tpu_custom_call.1} parent=83 // pred_fallthru
          _
        // Predicated region
        $region101: #{tpu_custom_call.1} parent=83 // pred_check
          %p2662 = pneg %p465
        $region102: #{tpu_custom_call.1} parent=83 // pred_check_branch
          %2664 = sbr.rel (%p2662) target = $region104
        $region103: #{tpu_custom_call.1} parent=83 // pred_region
          %2665 = dma.done [#allocation5], 256
        $region104: #{tpu_custom_call.1} parent=83 // pred_fallthru
          _
      $region84: #{tpu_custom_call.1} parent=5 // pred_fallthru
        _
      %p2666 = scmp.le.s32.totalorder 2, %s24
      // Predicated region
      $region105: #{tpu_custom_call.1} parent=5 // pred_check
        %p2667 = pneg %p2666
      $region106: #{tpu_custom_call.1} parent=5 // pred_check_branch
        %2669 = sbr.rel (%p2667) target = $region108
      $region107: #{tpu_custom_call.1} parent=5 // pred_region
        %s2670 = ssub.s32 %s24, 2
      $region108: #{tpu_custom_call.1} parent=5 // pred_fallthru
        _
    $region6: #{tpu_custom_call.1} parent=1 // loop_footer
      %s28 = sadd.s32 1, %s24
    $region7: #{tpu_custom_call.1} parent=1 // loop_footer_branch
      %23 = sbr.rel target = $region3
    $region8: #{tpu_custom_call.1} parent=1 // loop_exit
      _
    %2671 = vsyncpa [#allocation4], 1
    %s2672 = scalar_lea.sflag [#allocation4], 1
    %2673 = vsyncpa %s2672, 1
    %2674 = vsyncpa [#allocation5], 1
    %s2675 = scalar_lea.sflag [#allocation5], 1
    %2676 = vsyncpa %s2675, 1

</llo_original>
